<compile_context>
chip_gen: v7x
topology: tpu7x:2x2x1
jax: 0.10.0
libtpu: 0.0.40
codegen_flags: <defaults>
</compile_context>

<pallas_src>
import math

import jax
import jax.numpy as jnp
from jax.experimental import pallas as pl
from jax.experimental.pallas import tpu as pltpu

EPS = 1e-6
NUM_JOINTS = 21
ARR_COLS = 4
LANE = 128
SUB = 8                     # sublanes per batch tile -> 1024 samples / grid step
NUM_CORES = 2               # leading "parallel" grid axis (sharded across TCs on v7x)

MCP_IDX = [1, 4, 10, 7, 13]
PIP_IDX = [2, 5, 11, 8, 14]
RECTIFY = [0.189, 0.1331, -0.1491, 0.0347, 0.0]
PLANE_MCP = [1, 4, 10, 7]                      # reference jidx order for arr[:, 1]
JIDX = [[0, 1, 2, 3, 17], [0, 4, 5, 6, 18], [0, 7, 8, 9, 20],
        [0, 10, 11, 12, 19], [0, 13, 14, 15, 16]]
FLEX_JOINTS = [f[i + 1] for f in JIDX for i in range(3)]   # 15 middle joints
NUM_SEG = len(FLEX_JOINTS)
# TODO(synk): epsilon/unit_vector/getPalmNormByIndex/getFingerStdDir/
# projectPoint2Plane/euDist/rotation_matrix are NOT defined in the reference
# file; deterministic conventional definitions are used (palm normal i =
# cross(wrist->mcp_a, wrist->mcp_b) for neighbouring MCP pair i, std finger
# dir i = unit(cross(palm_norm_i, wrist->mcp_i))).
PALM_PAIRS = [(1, 4), (4, 10), (10, 7), (7, 13), (13, 1)]


# ----------------------- small vector helpers (tuples of 2-D arrays) ---------
def _vsub(a, b):
    return tuple(x - y for x, y in zip(a, b))


def _vadd(a, b):
    return tuple(x + y for x, y in zip(a, b))


def _vscale(a, s):
    return tuple(x * s for x in a)


def _vdot(a, b):
    return a[0] * b[0] + a[1] * b[1] + a[2] * b[2]


def _vcross(a, b):
    return (a[1] * b[2] - a[2] * b[1],
            a[2] * b[0] - a[0] * b[2],
            a[0] * b[1] - a[1] * b[0])


def _vunit(a):
    inv = 1.0 / (jnp.sqrt(_vdot(a, a)) + EPS)
    return _vscale(a, inv)


# torch.acos(clamp(x, -1+eps, 1-eps)); acos via the Abramowitz & Stegun 4.4.45
# polynomial (|abs err| <= 2e-8, f32-exact) using only sqrt/mul/add/select.
_ACOS_COEFFS = (-0.0012624911, 0.0066700901, -0.0170881256, 0.0308918810,
                -0.0501743046, 0.0889789874, -0.2145988016, 1.5707963050)


def _safe_acos(x):
    x = jnp.clip(x, -1.0 + EPS, 1.0 - EPS)
    ax = jnp.abs(x)
    p = _ACOS_COEFFS[0]
    for c in _ACOS_COEFFS[1:]:
        p = p * ax + c
    r = jnp.sqrt(1.0 - ax) * p
    return jnp.where(x >= 0.0, r, math.pi - r)


def _rodrigues_rotate(axis, cos_t, sin_t, v):
    # rotation_matrix(axis, theta) @ v via the Rodrigues formula (axis normalised).
    k = _vunit(axis)
    kv = _vdot(k, v)
    return _vadd(_vadd(_vscale(v, cos_t), _vscale(_vcross(k, v), sin_t)),
                 _vscale(k, kv * (1.0 - cos_t)))


# ----------------- kernel 1: full-batch flexion sign flags -------------------
def _sign_flags_kernel(j_ref, out_ref):
    # j_ref:  (21, 3, 1, SUB, LANE)  one batch tile, batch-minor / lane-dense
    # out_ref:(1, 15, SUB, LANE)     per-segment max of (sign < 0) indicator,
    #                                resident accumulator across the batch axis
    step = pl.program_id(1)

    @pl.when(step == 0)
    def _():
        out_ref[...] = jnp.zeros_like(out_ref)

    def P(i):  # -> ((SUB,LANE),)*3 ; joint/coord indexed on leading untiled axes
        return (j_ref[i, 0, 0], j_ref[i, 1, 0], j_ref[i, 2, 0])

    wrist = P(0)
    # per-finger scoping: only this finger's joints / edges are live at a time
    for fidx, finger in enumerate(JIDX):
        pa, pb = PALM_PAIRS[fidx]
        # getPalmNormByIndex / getFingerStdDir; reference indexes the std dir by
        # fidx, i.e. in MCP order [1,4,10,7,13] (quirk reproduced on purpose).
        palm_n = _vcross(_vsub(P(pa), wrist), _vsub(P(pb), wrist))
        std_dir = _vunit(_vcross(palm_n, _vsub(P(MCP_IDX[fidx]), wrist)))
        edges = [_vunit(_vsub(P(finger[k + 1]), P(finger[k]))) for k in range(4)]
        for i in range(3):
            fnorm = _vunit(_vcross(edges[i], edges[i + 1]))
            sign = _vdot(fnorm, std_dir)
            neg = jnp.where(sign < 0.0, 1.0, 0.0).astype(jnp.float32)
            s = 3 * fidx + i
            out_ref[0, s] = jnp.maximum(out_ref[0, s], neg)


# --------------- kernel 2: batch-element-0 angle math (runs once) ------------
def _batch0_angles_kernel(j_ref, out_ref):
    # j_ref: (3, 21, 1) joints of batch element 0
    # out_ref: (8, 128) lane-dense slab:
    #   lanes 0..4  : abduction angles (deg)      -> arr[MCP_IDX, 0]
    #   lanes 5..8  : plane-rotation angles (deg) -> arr[PLANE_MCP, 1]
    #   lanes 9..23 : flexion magnitudes (deg)    -> arr[FLEX_JOINTS, 2 or 3]
    J = j_ref[...]

    def P(i):
        return (J[0:1, i, :], J[1:2, i, :], J[2:3, i, :])   # each (1, 1)

    wrist = P(0)

    def palm_norm(i):
        a, b = PALM_PAIRS[i]
        return _vcross(_vsub(P(a), wrist), _vsub(P(b), wrist))

    vals = []

    # ----------------- AbductionLegitimize  ->  arr[mcp][0] ------------------
    for i in range(5):
        pn = palm_norm(i)
        mcp, pip = P(MCP_IDX[i]), P(PIP_IDX[i])
        # projectPoint2Plane(pip, vh, vd)[1] with vd = -<mcp, vh>
        tproj = _vdot(_vsub(pip, mcp), pn) / (_vdot(pn, pn) + EPS)
        projpip = _vsub(pip, _vscale(pn, tproj))
        # euDist / flexRatio are dead w.r.t. the arr output -> omitted.
        wristmcp = _vunit(_vsub(mcp, wrist))
        mcpprojpip = _vunit(_vsub(projpip, mcp))
        mcppip = _vunit(_vsub(pip, mcp))
        overflex = _safe_acos(_vdot(wristmcp, mcppip)) > (3.14 / 2.0)
        rect_wm = _rodrigues_rotate(pn, math.cos(RECTIFY[i]),
                                    math.sin(RECTIFY[i]), wristmcp)
        angle = _safe_acos(_vdot(rect_wm, mcpprojpip))
        angle = jnp.where(overflex, 0.0, angle)              # angle[mask] *= 0
        vals.append(angle / 3.14 * 180.0)

    # --------------- PlaneRotationLegitimize  ->  arr[mcp][1] ----------------
    fingeridx = {1: [1, 2, 3], 4: [4, 5, 6], 10: [10, 11, 12], 7: [7, 8, 9]}
    std_of_mcp = {1: 0, 4: 1, 10: 2, 7: 3}
    for mcp_j in PLANE_MCP:
        fi = fingeridx[mcp_j]
        mcppip = _vunit(_vsub(P(fi[1]), P(fi[0])))
        pipdip = _vunit(_vsub(P(fi[2]), P(fi[1])))
        mask_line = jnp.abs(_vdot(mcppip, pipdip)) > 0.95
        calc_dir = _vunit(_vcross(mcppip, pipdip))
        si = std_of_mcp[mcp_j]
        std_dir = _vunit(_vcross(palm_norm(si), _vsub(P(MCP_IDX[si]), wrist)))
        angle = _safe_acos(_vdot(calc_dir, std_dir))
        angle = jnp.where(mask_line, 0.0, angle)
        vals.append(angle / 3.14 * 180.0)

    # ----- Flexion magnitudes (>= 0); batch-global sign applied in wrapper ----
    for finger in JIDX:
        for i in range(3):
            a0, a1, a2 = P(finger[i]), P(finger[i + 1]), P(finger[i + 2])
            a, b = _vunit(_vsub(a1, a0)), _vunit(_vsub(a2, a1))
            angle = _safe_acos(_vdot(a, b))
            vals.append(angle / 3.14 * 180.0)

    lane = jax.lax.broadcasted_iota(jnp.int32, (8, LANE), 1)
    vec = jnp.zeros((8, LANE), jnp.float32)
    for k, v in enumerate(vals):
        vec = jnp.where(lane == k, v, vec)
    out_ref[...] = vec


# ------------------------------- wrapper --------------------------------------
def hand_pose_legitimize(joints, arr):
    """joints: (N, 21, 3), arr: (21, 4) -> (joints, updated arr).
    Matches the PyTorch forward (returns joints; arr is "mutated")."""
    jf = joints.astype(jnp.float32)
    arr = arr.astype(jnp.float32)
    n = jf.shape[0]

    # ---- kernel 1: the only O(N) pass (batch tiled, 2-way core-parallel) ----
    tile = SUB * LANE
    tiles_per_core = max(1, -(-n // (tile * NUM_CORES)))
    total_tiles = tiles_per_core * NUM_CORES
    n_pad = total_tiles * tile
    jp = jnp.pad(jf, ((0, n_pad - n), (0, 0), (0, 0)))       # zero pad -> sign == 0
    jt = jnp.transpose(jp, (1, 2, 0)).reshape(
        NUM_JOINTS, 3, total_tiles, SUB, LANE)               # batch-minor, lane dense

    neg_acc = pl.pallas_call(
        _sign_flags_kernel,
        grid=(NUM_CORES, tiles_per_core),
        in_specs=[pl.BlockSpec(
            (NUM_JOINTS, 3, 1, SUB, LANE),
            lambda c, b: (0, 0, c * tiles_per_core + b, 0, 0))],
        out_specs=pl.BlockSpec((1, NUM_SEG, SUB, LANE), lambda c, b: (c, 0, 0, 0)),
        out_shape=jax.ShapeDtypeStruct((NUM_CORES, NUM_SEG, SUB, LANE), jnp.float32),
        compiler_params=pltpu.CompilerParams(
            dimension_semantics=("parallel", "arbitrary")),
    )(jt)
    neg_flags = jnp.max(neg_acc, axis=(0, 2, 3)) > 0.0       # (15,) bool

    # ---- kernel 2: batch-element-0 angles (tiny, runs once) -----------------
    joints0 = jnp.transpose(jf[0:1], (2, 1, 0))              # (3, 21, 1)
    vals = pl.pallas_call(
        _batch0_angles_kernel,
        grid=(1,),
        in_specs=[pl.BlockSpec((3, NUM_JOINTS, 1), lambda i: (0, 0, 0))],
        out_specs=pl.BlockSpec((8, LANE), lambda i: (0, 0)),
        out_shape=jax.ShapeDtypeStruct((8, LANE), jnp.float32),
        compiler_params=pltpu.CompilerParams(dimension_semantics=("arbitrary",)),
    )(joints0)[0]

    # ---- tiny (21, 4) scatter done wrapper-side (lane-dense kernel output) --
    abd = vals[0:5]
    plane = vals[5:9]
    flex = vals[9:9 + NUM_SEG]
    # reference quirk reproduced: `if torch.sum(maskN): angle = -angle`
    signed = jnp.where(neg_flags, -flex, flex)
    pos = signed > 0.0
    fj = jnp.array(FLEX_JOINTS)
    arr = arr.at[jnp.array(MCP_IDX), 0].set(abd)
    arr = arr.at[jnp.array(PLANE_MCP), 1].set(plane)
    arr = arr.at[fj, 2].set(jnp.where(pos, signed, arr[fj, 2]))
    arr = arr.at[fj, 3].set(jnp.where(pos, arr[fj, 3], -signed))
    # the PyTorch forward returns `joints` unchanged; `arr` is mutated in place.
    return joints, arr


if __name__ == "__main__":
    key = jax.random.PRNGKey(0)
    N = 2
    joints = jax.random.normal(key, (N, NUM_JOINTS, 3), dtype=jnp.float32)
    arr = jnp.zeros((NUM_JOINTS, ARR_COLS), dtype=jnp.float32)

    joints_out, arr_out = hand_pose_legitimize(joints, arr)
    jax.block_until_ready((joints_out, arr_out))
    print("KERNEL_OK")
</pallas_src>

<mosaic_0001>
module attributes {stable_mosaic.version = 11 : i64} {
  func.func @_sign_flags_kernel(%arg0: i32, %arg1: i32, %arg2: memref<21x3x1x8x128xf32, #tpu.memory_space<vmem>>, %arg3: memref<1x15x8x128xf32, #tpu.memory_space<vmem>>) attributes {dimension_semantics = [#tpu.dimension_semantics<parallel>, #tpu.dimension_semantics<arbitrary>], iteration_bounds = array<i64: 2, 1>, scalar_prefetch = 0 : i64, scratch_operands = 0 : i64, tpu.core_type = #tpu.core_type<tc>, window_params = [{transform_indices = @transform_0, window_bounds = array<i64: 21, 3, 1, 8, 128>}, {transform_indices = @transform_1, window_bounds = array<i64: 1, 15, 8, 128>}]} {
    %c0_i32 = arith.constant 0 : i32
    %0 = arith.cmpi eq, %arg1, %c0_i32 : i32
    %1 = arith.extui %0 : i1 to i32
    %c0_i32_0 = arith.constant 0 : i32
    %2 = arith.cmpi ne, %1, %c0_i32_0 : i32
    scf.if %2 {
      %cst_1064 = arith.constant 0.000000e+00 : f32
      %1429 = vector.broadcast %cst_1064 : f32 to vector<1x15x8x128xf32>
      %c0_1065 = arith.constant 0 : index
      %c0_1066 = arith.constant 0 : index
      %c0_1067 = arith.constant 0 : index
      %c0_1068 = arith.constant 0 : index
      %1430 = vector.load %arg3[%c0_1065, %c0_1066, %c0_1067, %c0_1068] : memref<1x15x8x128xf32, #tpu.memory_space<vmem>>, vector<1x15x8x128xf32>
      tpu.vector_store %arg3[%c0_1065, %c0_1066, %c0_1067, %c0_1068], %1429 {strides = array<i32>} : memref<1x15x8x128xf32, #tpu.memory_space<vmem>>, vector<1x15x8x128xf32>,
    } else {
    }
    %c0 = arith.constant 0 : index
    %c0_1 = arith.constant 0 : index
    %c0_2 = arith.constant 0 : index
    %c0_3 = arith.constant 0 : index
    %c0_4 = arith.constant 0 : index
    %3 = vector.load %arg2[%c0, %c0_1, %c0_2, %c0_3, %c0_4] : memref<21x3x1x8x128xf32, #tpu.memory_space<vmem>>, vector<1x1x1x8x128xf32>
    %4 = vector.shape_cast %3 : vector<1x1x1x8x128xf32> to vector<8x128xf32>
    %c0_5 = arith.constant 0 : index
    %c1 = arith.constant 1 : index
    %c0_6 = arith.constant 0 : index
    %c0_7 = arith.constant 0 : index
    %c0_8 = arith.constant 0 : index
    %5 = vector.load %arg2[%c0_5, %c1, %c0_6, %c0_7, %c0_8] : memref<21x3x1x8x128xf32, #tpu.memory_space<vmem>>, vector<1x1x1x8x128xf32>
    %6 = vector.shape_cast %5 : vector<1x1x1x8x128xf32> to vector<8x128xf32>
    %c0_9 = arith.constant 0 : index
    %c2 = arith.constant 2 : index
    %c0_10 = arith.constant 0 : index
    %c0_11 = arith.constant 0 : index
    %c0_12 = arith.constant 0 : index
    %7 = vector.load %arg2[%c0_9, %c2, %c0_10, %c0_11, %c0_12] : memref<21x3x1x8x128xf32, #tpu.memory_space<vmem>>, vector<1x1x1x8x128xf32>
    %8 = vector.shape_cast %7 : vector<1x1x1x8x128xf32> to vector<8x128xf32>
    %c1_13 = arith.constant 1 : index
    %c0_14 = arith.constant 0 : index
    %c0_15 = arith.constant 0 : index
    %c0_16 = arith.constant 0 : index
    %c0_17 = arith.constant 0 : index
    %9 = vector.load %arg2[%c1_13, %c0_14, %c0_15, %c0_16, %c0_17] : memref<21x3x1x8x128xf32, #tpu.memory_space<vmem>>, vector<1x1x1x8x128xf32>
    %10 = vector.shape_cast %9 : vector<1x1x1x8x128xf32> to vector<8x128xf32>
    %c1_18 = arith.constant 1 : index
    %c1_19 = arith.constant 1 : index
    %c0_20 = arith.constant 0 : index
    %c0_21 = arith.constant 0 : index
    %c0_22 = arith.constant 0 : index
    %11 = vector.load %arg2[%c1_18, %c1_19, %c0_20, %c0_21, %c0_22] : memref<21x3x1x8x128xf32, #tpu.memory_space<vmem>>, vector<1x1x1x8x128xf32>
    %12 = vector.shape_cast %11 : vector<1x1x1x8x128xf32> to vector<8x128xf32>
    %c1_23 = arith.constant 1 : index
    %c2_24 = arith.constant 2 : index
    %c0_25 = arith.constant 0 : index
    %c0_26 = arith.constant 0 : index
    %c0_27 = arith.constant 0 : index
    %13 = vector.load %arg2[%c1_23, %c2_24, %c0_25, %c0_26, %c0_27] : memref<21x3x1x8x128xf32, #tpu.memory_space<vmem>>, vector<1x1x1x8x128xf32>
    %14 = vector.shape_cast %13 : vector<1x1x1x8x128xf32> to vector<8x128xf32>
    %15 = arith.subf %10, %4 : vector<8x128xf32>
    %16 = arith.subf %12, %6 : vector<8x128xf32>
    %17 = arith.subf %14, %8 : vector<8x128xf32>
    %c4 = arith.constant 4 : index
    %c0_28 = arith.constant 0 : index
    %c0_29 = arith.constant 0 : index
    %c0_30 = arith.constant 0 : index
    %c0_31 = arith.constant 0 : index
    %18 = vector.load %arg2[%c4, %c0_28, %c0_29, %c0_30, %c0_31] : memref<21x3x1x8x128xf32, #tpu.memory_space<vmem>>, vector<1x1x1x8x128xf32>
    %19 = vector.shape_cast %18 : vector<1x1x1x8x128xf32> to vector<8x128xf32>
    %c4_32 = arith.constant 4 : index
    %c1_33 = arith.constant 1 : index
    %c0_34 = arith.constant 0 : index
    %c0_35 = arith.constant 0 : index
    %c0_36 = arith.constant 0 : index
    %20 = vector.load %arg2[%c4_32, %c1_33, %c0_34, %c0_35, %c0_36] : memref<21x3x1x8x128xf32, #tpu.memory_space<vmem>>, vector<1x1x1x8x128xf32>
    %21 = vector.shape_cast %20 : vector<1x1x1x8x128xf32> to vector<8x128xf32>
    %c4_37 = arith.constant 4 : index
    %c2_38 = arith.constant 2 : index
    %c0_39 = arith.constant 0 : index
    %c0_40 = arith.constant 0 : index
    %c0_41 = arith.constant 0 : index
    %22 = vector.load %arg2[%c4_37, %c2_38, %c0_39, %c0_40, %c0_41] : memref<21x3x1x8x128xf32, #tpu.memory_space<vmem>>, vector<1x1x1x8x128xf32>
    %23 = vector.shape_cast %22 : vector<1x1x1x8x128xf32> to vector<8x128xf32>
    %24 = arith.subf %19, %4 : vector<8x128xf32>
    %25 = arith.subf %21, %6 : vector<8x128xf32>
    %26 = arith.subf %23, %8 : vector<8x128xf32>
    %27 = arith.mulf %16, %26 : vector<8x128xf32>
    %28 = arith.mulf %17, %25 : vector<8x128xf32>
    %29 = arith.subf %27, %28 : vector<8x128xf32>
    %30 = arith.mulf %17, %24 : vector<8x128xf32>
    %31 = arith.mulf %15, %26 : vector<8x128xf32>
    %32 = arith.subf %30, %31 : vector<8x128xf32>
    %33 = arith.mulf %15, %25 : vector<8x128xf32>
    %34 = arith.mulf %16, %24 : vector<8x128xf32>
    %35 = arith.subf %33, %34 : vector<8x128xf32>
    %c1_42 = arith.constant 1 : index
    %c0_43 = arith.constant 0 : index
    %c0_44 = arith.constant 0 : index
    %c0_45 = arith.constant 0 : index
    %c0_46 = arith.constant 0 : index
    %36 = vector.load %arg2[%c1_42, %c0_43, %c0_44, %c0_45, %c0_46] : memref<21x3x1x8x128xf32, #tpu.memory_space<vmem>>, vector<1x1x1x8x128xf32>
    %37 = vector.shape_cast %36 : vector<1x1x1x8x128xf32> to vector<8x128xf32>
    %c1_47 = arith.constant 1 : index
    %c1_48 = arith.constant 1 : index
    %c0_49 = arith.constant 0 : index
    %c0_50 = arith.constant 0 : index
    %c0_51 = arith.constant 0 : index
    %38 = vector.load %arg2[%c1_47, %c1_48, %c0_49, %c0_50, %c0_51] : memref<21x3x1x8x128xf32, #tpu.memory_space<vmem>>, vector<1x1x1x8x128xf32>
    %39 = vector.shape_cast %38 : vector<1x1x1x8x128xf32> to vector<8x128xf32>
    %c1_52 = arith.constant 1 : index
    %c2_53 = arith.constant 2 : index
    %c0_54 = arith.constant 0 : index
    %c0_55 = arith.constant 0 : index
    %c0_56 = arith.constant 0 : index
    %40 = vector.load %arg2[%c1_52, %c2_53, %c0_54, %c0_55, %c0_56] : memref<21x3x1x8x128xf32, #tpu.memory_space<vmem>>, vector<1x1x1x8x128xf32>
    %41 = vector.shape_cast %40 : vector<1x1x1x8x128xf32> to vector<8x128xf32>
    %42 = arith.subf %37, %4 : vector<8x128xf32>
    %43 = arith.subf %39, %6 : vector<8x128xf32>
    %44 = arith.subf %41, %8 : vector<8x128xf32>
    %45 = arith.mulf %32, %44 : vector<8x128xf32>
    %46 = arith.mulf %35, %43 : vector<8x128xf32>
    %47 = arith.subf %45, %46 : vector<8x128xf32>
    %48 = arith.mulf %35, %42 : vector<8x128xf32>
    %49 = arith.mulf %29, %44 : vector<8x128xf32>
    %50 = arith.subf %48, %49 : vector<8x128xf32>
    %51 = arith.mulf %29, %43 : vector<8x128xf32>
    %52 = arith.mulf %32, %42 : vector<8x128xf32>
    %53 = arith.subf %51, %52 : vector<8x128xf32>
    %54 = arith.mulf %47, %47 : vector<8x128xf32>
    %55 = arith.mulf %50, %50 : vector<8x128xf32>
    %56 = arith.addf %54, %55 : vector<8x128xf32>
    %57 = arith.mulf %53, %53 : vector<8x128xf32>
    %58 = arith.addf %56, %57 : vector<8x128xf32>
    %59 = math.sqrt %58 : vector<8x128xf32>
    %cst = arith.constant 9.99999997E-7 : f32
    %60 = vector.broadcast %cst : f32 to vector<8x128xf32>
    %61 = arith.addf %59, %60 : vector<8x128xf32>
    %cst_57 = arith.constant 1.000000e+00 : f32
    %62 = vector.broadcast %cst_57 : f32 to vector<8x128xf32>
    %63 = arith.divf %62, %61 : vector<8x128xf32>
    %64 = arith.mulf %47, %63 : vector<8x128xf32>
    %65 = arith.mulf %50, %63 : vector<8x128xf32>
    %66 = arith.mulf %53, %63 : vector<8x128xf32>
    %c1_58 = arith.constant 1 : index
    %c0_59 = arith.constant 0 : index
    %c0_60 = arith.constant 0 : index
    %c0_61 = arith.constant 0 : index
    %c0_62 = arith.constant 0 : index
    %67 = vector.load %arg2[%c1_58, %c0_59, %c0_60, %c0_61, %c0_62] : memref<21x3x1x8x128xf32, #tpu.memory_space<vmem>>, vector<1x1x1x8x128xf32>
    %68 = vector.shape_cast %67 : vector<1x1x1x8x128xf32> to vector<8x128xf32>
    %c1_63 = arith.constant 1 : index
    %c1_64 = arith.constant 1 : index
    %c0_65 = arith.constant 0 : index
    %c0_66 = arith.constant 0 : index
    %c0_67 = arith.constant 0 : index
    %69 = vector.load %arg2[%c1_63, %c1_64, %c0_65, %c0_66, %c0_67] : memref<21x3x1x8x128xf32, #tpu.memory_space<vmem>>, vector<1x1x1x8x128xf32>
    %70 = vector.shape_cast %69 : vector<1x1x1x8x128xf32> to vector<8x128xf32>
    %c1_68 = arith.constant 1 : index
    %c2_69 = arith.constant 2 : index
    %c0_70 = arith.constant 0 : index
    %c0_71 = arith.constant 0 : index
    %c0_72 = arith.constant 0 : index
    %71 = vector.load %arg2[%c1_68, %c2_69, %c0_70, %c0_71, %c0_72] : memref<21x3x1x8x128xf32, #tpu.memory_space<vmem>>, vector<1x1x1x8x128xf32>
    %72 = vector.shape_cast %71 : vector<1x1x1x8x128xf32> to vector<8x128xf32>
    %c0_73 = arith.constant 0 : index
    %c0_74 = arith.constant 0 : index
    %c0_75 = arith.constant 0 : index
    %c0_76 = arith.constant 0 : index
    %c0_77 = arith.constant 0 : index
    %73 = vector.load %arg2[%c0_73, %c0_74, %c0_75, %c0_76, %c0_77] : memref<21x3x1x8x128xf32, #tpu.memory_space<vmem>>, vector<1x1x1x8x128xf32>
    %74 = vector.shape_cast %73 : vector<1x1x1x8x128xf32> to vector<8x128xf32>
    %c0_78 = arith.constant 0 : index
    %c1_79 = arith.constant 1 : index
    %c0_80 = arith.constant 0 : index
    %c0_81 = arith.constant 0 : index
    %c0_82 = arith.constant 0 : index
    %75 = vector.load %arg2[%c0_78, %c1_79, %c0_80, %c0_81, %c0_82] : memref<21x3x1x8x128xf32, #tpu.memory_space<vmem>>, vector<1x1x1x8x128xf32>
    %76 = vector.shape_cast %75 : vector<1x1x1x8x128xf32> to vector<8x128xf32>
    %c0_83 = arith.constant 0 : index
    %c2_84 = arith.constant 2 : index
    %c0_85 = arith.constant 0 : index
    %c0_86 = arith.constant 0 : index
    %c0_87 = arith.constant 0 : index
    %77 = vector.load %arg2[%c0_83, %c2_84, %c0_85, %c0_86, %c0_87] : memref<21x3x1x8x128xf32, #tpu.memory_space<vmem>>, vector<1x1x1x8x128xf32>
    %78 = vector.shape_cast %77 : vector<1x1x1x8x128xf32> to vector<8x128xf32>
    %79 = arith.subf %68, %74 : vector<8x128xf32>
    %80 = arith.subf %70, %76 : vector<8x128xf32>
    %81 = arith.subf %72, %78 : vector<8x128xf32>
    %82 = arith.mulf %79, %79 : vector<8x128xf32>
    %83 = arith.mulf %80, %80 : vector<8x128xf32>
    %84 = arith.addf %82, %83 : vector<8x128xf32>
    %85 = arith.mulf %81, %81 : vector<8x128xf32>
    %86 = arith.addf %84, %85 : vector<8x128xf32>
    %87 = math.sqrt %86 : vector<8x128xf32>
    %cst_88 = arith.constant 9.99999997E-7 : f32
    %88 = vector.broadcast %cst_88 : f32 to vector<8x128xf32>
    %89 = arith.addf %87, %88 : vector<8x128xf32>
    %cst_89 = arith.constant 1.000000e+00 : f32
    %90 = vector.broadcast %cst_89 : f32 to vector<8x128xf32>
    %91 = arith.divf %90, %89 : vector<8x128xf32>
    %92 = arith.mulf %79, %91 : vector<8x128xf32>
    %93 = arith.mulf %80, %91 : vector<8x128xf32>
    %94 = arith.mulf %81, %91 : vector<8x128xf32>
    %c2_90 = arith.constant 2 : index
    %c0_91 = arith.constant 0 : index
    %c0_92 = arith.constant 0 : index
    %c0_93 = arith.constant 0 : index
    %c0_94 = arith.constant 0 : index
    %95 = vector.load %arg2[%c2_90, %c0_91, %c0_92, %c0_93, %c0_94] : memref<21x3x1x8x128xf32, #tpu.memory_space<vmem>>, vector<1x1x1x8x128xf32>
    %96 = vector.shape_cast %95 : vector<1x1x1x8x128xf32> to vector<8x128xf32>
    %c2_95 = arith.constant 2 : index
    %c1_96 = arith.constant 1 : index
    %c0_97 = arith.constant 0 : index
    %c0_98 = arith.constant 0 : index
    %c0_99 = arith.constant 0 : index
    %97 = vector.load %arg2[%c2_95, %c1_96, %c0_97, %c0_98, %c0_99] : memref<21x3x1x8x128xf32, #tpu.memory_space<vmem>>, vector<1x1x1x8x128xf32>
    %98 = vector.shape_cast %97 : vector<1x1x1x8x128xf32> to vector<8x128xf32>
    %c2_100 = arith.constant 2 : index
    %c2_101 = arith.constant 2 : index
    %c0_102 = arith.constant 0 : index
    %c0_103 = arith.constant 0 : index
    %c0_104 = arith.constant 0 : index
    %99 = vector.load %arg2[%c2_100, %c2_101, %c0_102, %c0_103, %c0_104] : memref<21x3x1x8x128xf32, #tpu.memory_space<vmem>>, vector<1x1x1x8x128xf32>
    %100 = vector.shape_cast %99 : vector<1x1x1x8x128xf32> to vector<8x128xf32>
    %c1_105 = arith.constant 1 : index
    %c0_106 = arith.constant 0 : index
    %c0_107 = arith.constant 0 : index
    %c0_108 = arith.constant 0 : index
    %c0_109 = arith.constant 0 : index
    %101 = vector.load %arg2[%c1_105, %c0_106, %c0_107, %c0_108, %c0_109] : memref<21x3x1x8x128xf32, #tpu.memory_space<vmem>>, vector<1x1x1x8x128xf32>
    %102 = vector.shape_cast %101 : vector<1x1x1x8x128xf32> to vector<8x128xf32>
    %c1_110 = arith.constant 1 : index
    %c1_111 = arith.constant 1 : index
    %c0_112 = arith.constant 0 : index
    %c0_113 = arith.constant 0 : index
    %c0_114 = arith.constant 0 : index
    %103 = vector.load %arg2[%c1_110, %c1_111, %c0_112, %c0_113, %c0_114] : memref<21x3x1x8x128xf32, #tpu.memory_space<vmem>>, vector<1x1x1x8x128xf32>
    %104 = vector.shape_cast %103 : vector<1x1x1x8x128xf32> to vector<8x128xf32>
    %c1_115 = arith.constant 1 : index
    %c2_116 = arith.constant 2 : index
    %c0_117 = arith.constant 0 : index
    %c0_118 = arith.constant 0 : index
    %c0_119 = arith.constant 0 : index
    %105 = vector.load %arg2[%c1_115, %c2_116, %c0_117, %c0_118, %c0_119] : memref<21x3x1x8x128xf32, #tpu.memory_space<vmem>>, vector<1x1x1x8x128xf32>
    %106 = vector.shape_cast %105 : vector<1x1x1x8x128xf32> to vector<8x128xf32>
    %107 = arith.subf %96, %102 : vector<8x128xf32>
    %108 = arith.subf %98, %104 : vector<8x128xf32>
    %109 = arith.subf %100, %106 : vector<8x128xf32>
    %110 = arith.mulf %107, %107 : vector<8x128xf32>
    %111 = arith.mulf %108, %108 : vector<8x128xf32>
    %112 = arith.addf %110, %111 : vector<8x128xf32>
    %113 = arith.mulf %109, %109 : vector<8x128xf32>
    %114 = arith.addf %112, %113 : vector<8x128xf32>
    %115 = math.sqrt %114 : vector<8x128xf32>
    %cst_120 = arith.constant 9.99999997E-7 : f32
    %116 = vector.broadcast %cst_120 : f32 to vector<8x128xf32>
    %117 = arith.addf %115, %116 : vector<8x128xf32>
    %cst_121 = arith.constant 1.000000e+00 : f32
    %118 = vector.broadcast %cst_121 : f32 to vector<8x128xf32>
    %119 = arith.divf %118, %117 : vector<8x128xf32>
    %120 = arith.mulf %107, %119 : vector<8x128xf32>
    %121 = arith.mulf %108, %119 : vector<8x128xf32>
    %122 = arith.mulf %109, %119 : vector<8x128xf32>
    %c3 = arith.constant 3 : index
    %c0_122 = arith.constant 0 : index
    %c0_123 = arith.constant 0 : index
    %c0_124 = arith.constant 0 : index
    %c0_125 = arith.constant 0 : index
    %123 = vector.load %arg2[%c3, %c0_122, %c0_123, %c0_124, %c0_125] : memref<21x3x1x8x128xf32, #tpu.memory_space<vmem>>, vector<1x1x1x8x128xf32>
    %124 = vector.shape_cast %123 : vector<1x1x1x8x128xf32> to vector<8x128xf32>
    %c3_126 = arith.constant 3 : index
    %c1_127 = arith.constant 1 : index
    %c0_128 = arith.constant 0 : index
    %c0_129 = arith.constant 0 : index
    %c0_130 = arith.constant 0 : index
    %125 = vector.load %arg2[%c3_126, %c1_127, %c0_128, %c0_129, %c0_130] : memref<21x3x1x8x128xf32, #tpu.memory_space<vmem>>, vector<1x1x1x8x128xf32>
    %126 = vector.shape_cast %125 : vector<1x1x1x8x128xf32> to vector<8x128xf32>
    %c3_131 = arith.constant 3 : index
    %c2_132 = arith.constant 2 : index
    %c0_133 = arith.constant 0 : index
    %c0_134 = arith.constant 0 : index
    %c0_135 = arith.constant 0 : index
    %127 = vector.load %arg2[%c3_131, %c2_132, %c0_133, %c0_134, %c0_135] : memref<21x3x1x8x128xf32, #tpu.memory_space<vmem>>, vector<1x1x1x8x128xf32>
    %128 = vector.shape_cast %127 : vector<1x1x1x8x128xf32> to vector<8x128xf32>
    %c2_136 = arith.constant 2 : index
    %c0_137 = arith.constant 0 : index
    %c0_138 = arith.constant 0 : index
    %c0_139 = arith.constant 0 : index
    %c0_140 = arith.constant 0 : index
    %129 = vector.load %arg2[%c2_136, %c0_137, %c0_138, %c0_139, %c0_140] : memref<21x3x1x8x128xf32, #tpu.memory_space<vmem>>, vector<1x1x1x8x128xf32>
    %130 = vector.shape_cast %129 : vector<1x1x1x8x128xf32> to vector<8x128xf32>
    %c2_141 = arith.constant 2 : index
    %c1_142 = arith.constant 1 : index
    %c0_143 = arith.constant 0 : index
    %c0_144 = arith.constant 0 : index
    %c0_145 = arith.constant 0 : index
    %131 = vector.load %arg2[%c2_141, %c1_142, %c0_143, %c0_144, %c0_145] : memref<21x3x1x8x128xf32, #tpu.memory_space<vmem>>, vector<1x1x1x8x128xf32>
    %132 = vector.shape_cast %131 : vector<1x1x1x8x128xf32> to vector<8x128xf32>
    %c2_146 = arith.constant 2 : index
    %c2_147 = arith.constant 2 : index
    %c0_148 = arith.constant 0 : index
    %c0_149 = arith.constant 0 : index
    %c0_150 = arith.constant 0 : index
    %133 = vector.load %arg2[%c2_146, %c2_147, %c0_148, %c0_149, %c0_150] : memref<21x3x1x8x128xf32, #tpu.memory_space<vmem>>, vector<1x1x1x8x128xf32>
    %134 = vector.shape_cast %133 : vector<1x1x1x8x128xf32> to vector<8x128xf32>
    %135 = arith.subf %124, %130 : vector<8x128xf32>
    %136 = arith.subf %126, %132 : vector<8x128xf32>
    %137 = arith.subf %128, %134 : vector<8x128xf32>
    %138 = arith.mulf %135, %135 : vector<8x128xf32>
    %139 = arith.mulf %136, %136 : vector<8x128xf32>
    %140 = arith.addf %138, %139 : vector<8x128xf32>
    %141 = arith.mulf %137, %137 : vector<8x128xf32>
    %142 = arith.addf %140, %141 : vector<8x128xf32>
    %143 = math.sqrt %142 : vector<8x128xf32>
    %cst_151 = arith.constant 9.99999997E-7 : f32
    %144 = vector.broadcast %cst_151 : f32 to vector<8x128xf32>
    %145 = arith.addf %143, %144 : vector<8x128xf32>
    %cst_152 = arith.constant 1.000000e+00 : f32
    %146 = vector.broadcast %cst_152 : f32 to vector<8x128xf32>
    %147 = arith.divf %146, %145 : vector<8x128xf32>
    %148 = arith.mulf %135, %147 : vector<8x128xf32>
    %149 = arith.mulf %136, %147 : vector<8x128xf32>
    %150 = arith.mulf %137, %147 : vector<8x128xf32>
    %c17 = arith.constant 17 : index
    %c0_153 = arith.constant 0 : index
    %c0_154 = arith.constant 0 : index
    %c0_155 = arith.constant 0 : index
    %c0_156 = arith.constant 0 : index
    %151 = vector.load %arg2[%c17, %c0_153, %c0_154, %c0_155, %c0_156] : memref<21x3x1x8x128xf32, #tpu.memory_space<vmem>>, vector<1x1x1x8x128xf32>
    %152 = vector.shape_cast %151 : vector<1x1x1x8x128xf32> to vector<8x128xf32>
    %c17_157 = arith.constant 17 : index
    %c1_158 = arith.constant 1 : index
    %c0_159 = arith.constant 0 : index
    %c0_160 = arith.constant 0 : index
    %c0_161 = arith.constant 0 : index
    %153 = vector.load %arg2[%c17_157, %c1_158, %c0_159, %c0_160, %c0_161] : memref<21x3x1x8x128xf32, #tpu.memory_space<vmem>>, vector<1x1x1x8x128xf32>
    %154 = vector.shape_cast %153 : vector<1x1x1x8x128xf32> to vector<8x128xf32>
    %c17_162 = arith.constant 17 : index
    %c2_163 = arith.constant 2 : index
    %c0_164 = arith.constant 0 : index
    %c0_165 = arith.constant 0 : index
    %c0_166 = arith.constant 0 : index
    %155 = vector.load %arg2[%c17_162, %c2_163, %c0_164, %c0_165, %c0_166] : memref<21x3x1x8x128xf32, #tpu.memory_space<vmem>>, vector<1x1x1x8x128xf32>
    %156 = vector.shape_cast %155 : vector<1x1x1x8x128xf32> to vector<8x128xf32>
    %c3_167 = arith.constant 3 : index
    %c0_168 = arith.constant 0 : index
    %c0_169 = arith.constant 0 : index
    %c0_170 = arith.constant 0 : index
    %c0_171 = arith.constant 0 : index
    %157 = vector.load %arg2[%c3_167, %c0_168, %c0_169, %c0_170, %c0_171] : memref<21x3x1x8x128xf32, #tpu.memory_space<vmem>>, vector<1x1x1x8x128xf32>
    %158 = vector.shape_cast %157 : vector<1x1x1x8x128xf32> to vector<8x128xf32>
    %c3_172 = arith.constant 3 : index
    %c1_173 = arith.constant 1 : index
    %c0_174 = arith.constant 0 : index
    %c0_175 = arith.constant 0 : index
    %c0_176 = arith.constant 0 : index
    %159 = vector.load %arg2[%c3_172, %c1_173, %c0_174, %c0_175, %c0_176] : memref<21x3x1x8x128xf32, #tpu.memory_space<vmem>>, vector<1x1x1x8x128xf32>
    %160 = vector.shape_cast %159 : vector<1x1x1x8x128xf32> to vector<8x128xf32>
    %c3_177 = arith.constant 3 : index
    %c2_178 = arith.constant 2 : index
    %c0_179 = arith.constant 0 : index
    %c0_180 = arith.constant 0 : index
    %c0_181 = arith.constant 0 : index
    %161 = vector.load %arg2[%c3_177, %c2_178, %c0_179, %c0_180, %c0_181] : memref<21x3x1x8x128xf32, #tpu.memory_space<vmem>>, vector<1x1x1x8x128xf32>
    %162 = vector.shape_cast %161 : vector<1x1x1x8x128xf32> to vector<8x128xf32>
    %163 = arith.subf %152, %158 : vector<8x128xf32>
    %164 = arith.subf %154, %160 : vector<8x128xf32>
    %165 = arith.subf %156, %162 : vector<8x128xf32>
    %166 = arith.mulf %163, %163 : vector<8x128xf32>
    %167 = arith.mulf %164, %164 : vector<8x128xf32>
    %168 = arith.addf %166, %167 : vector<8x128xf32>
    %169 = arith.mulf %165, %165 : vector<8x128xf32>
    %170 = arith.addf %168, %169 : vector<8x128xf32>
    %171 = math.sqrt %170 : vector<8x128xf32>
    %cst_182 = arith.constant 9.99999997E-7 : f32
    %172 = vector.broadcast %cst_182 : f32 to vector<8x128xf32>
    %173 = arith.addf %171, %172 : vector<8x128xf32>
    %cst_183 = arith.constant 1.000000e+00 : f32
    %174 = vector.broadcast %cst_183 : f32 to vector<8x128xf32>
    %175 = arith.divf %174, %173 : vector<8x128xf32>
    %176 = arith.mulf %163, %175 : vector<8x128xf32>
    %177 = arith.mulf %164, %175 : vector<8x128xf32>
    %178 = arith.mulf %165, %175 : vector<8x128xf32>
    %179 = arith.mulf %93, %122 : vector<8x128xf32>
    %180 = arith.mulf %94, %121 : vector<8x128xf32>
    %181 = arith.subf %179, %180 : vector<8x128xf32>
    %182 = arith.mulf %94, %120 : vector<8x128xf32>
    %183 = arith.mulf %92, %122 : vector<8x128xf32>
    %184 = arith.subf %182, %183 : vector<8x128xf32>
    %185 = arith.mulf %92, %121 : vector<8x128xf32>
    %186 = arith.mulf %93, %120 : vector<8x128xf32>
    %187 = arith.subf %185, %186 : vector<8x128xf32>
    %188 = arith.mulf %181, %181 : vector<8x128xf32>
    %189 = arith.mulf %184, %184 : vector<8x128xf32>
    %190 = arith.addf %188, %189 : vector<8x128xf32>
    %191 = arith.mulf %187, %187 : vector<8x128xf32>
    %192 = arith.addf %190, %191 : vector<8x128xf32>
    %193 = math.sqrt %192 : vector<8x128xf32>
    %cst_184 = arith.constant 9.99999997E-7 : f32
    %194 = vector.broadcast %cst_184 : f32 to vector<8x128xf32>
    %195 = arith.addf %193, %194 : vector<8x128xf32>
    %cst_185 = arith.constant 1.000000e+00 : f32
    %196 = vector.broadcast %cst_185 : f32 to vector<8x128xf32>
    %197 = arith.divf %196, %195 : vector<8x128xf32>
    %198 = arith.mulf %181, %197 : vector<8x128xf32>
    %199 = arith.mulf %184, %197 : vector<8x128xf32>
    %200 = arith.mulf %187, %197 : vector<8x128xf32>
    %201 = arith.mulf %198, %64 : vector<8x128xf32>
    %202 = arith.mulf %199, %65 : vector<8x128xf32>
    %203 = arith.addf %201, %202 : vector<8x128xf32>
    %204 = arith.mulf %200, %66 : vector<8x128xf32>
    %205 = arith.addf %203, %204 : vector<8x128xf32>
    %cst_186 = arith.constant 0.000000e+00 : f32
    %206 = vector.broadcast %cst_186 : f32 to vector<8x128xf32>
    %207 = arith.cmpf olt, %205, %206 : vector<8x128xf32>
    %cst_187 = arith.constant 1.000000e+00 : f32
    %cst_188 = arith.constant 0.000000e+00 : f32
    %208 = vector.broadcast %cst_187 : f32 to vector<8x128xf32>
    %209 = vector.broadcast %cst_188 : f32 to vector<8x128xf32>
    %210 = arith.select %207, %208, %209 : vector<8x128xi1>, vector<8x128xf32>
    %c0_189 = arith.constant 0 : index
    %c0_190 = arith.constant 0 : index
    %c0_191 = arith.constant 0 : index
    %c0_192 = arith.constant 0 : index
    %211 = vector.load %arg3[%c0_189, %c0_190, %c0_191, %c0_192] : memref<1x15x8x128xf32, #tpu.memory_space<vmem>>, vector<1x1x8x128xf32>
    %212 = vector.shape_cast %211 : vector<1x1x8x128xf32> to vector<8x128xf32>
    %213 = arith.maximumf %212, %210 : vector<8x128xf32>
    %c0_193 = arith.constant 0 : index
    %c0_194 = arith.constant 0 : index
    %c0_195 = arith.constant 0 : index
    %c0_196 = arith.constant 0 : index
    %214 = vector.load %arg3[%c0_193, %c0_194, %c0_195, %c0_196] : memref<1x15x8x128xf32, #tpu.memory_space<vmem>>, vector<1x1x8x128xf32>
    %215 = vector.shape_cast %214 : vector<1x1x8x128xf32> to vector<8x128xf32>
    %216 = vector.shape_cast %213 : vector<8x128xf32> to vector<1x1x8x128xf32>
    tpu.vector_store %arg3[%c0_193, %c0_194, %c0_195, %c0_196], %216 {strides = array<i32>} : memref<1x15x8x128xf32, #tpu.memory_space<vmem>>, vector<1x1x8x128xf32>,
    %217 = arith.mulf %121, %150 : vector<8x128xf32>
    %218 = arith.mulf %122, %149 : vector<8x128xf32>
    %219 = arith.subf %217, %218 : vector<8x128xf32>
    %220 = arith.mulf %122, %148 : vector<8x128xf32>
    %221 = arith.mulf %120, %150 : vector<8x128xf32>
    %222 = arith.subf %220, %221 : vector<8x128xf32>
    %223 = arith.mulf %120, %149 : vector<8x128xf32>
    %224 = arith.mulf %121, %148 : vector<8x128xf32>
    %225 = arith.subf %223, %224 : vector<8x128xf32>
    %226 = arith.mulf %219, %219 : vector<8x128xf32>
    %227 = arith.mulf %222, %222 : vector<8x128xf32>
    %228 = arith.addf %226, %227 : vector<8x128xf32>
    %229 = arith.mulf %225, %225 : vector<8x128xf32>
    %230 = arith.addf %228, %229 : vector<8x128xf32>
    %231 = math.sqrt %230 : vector<8x128xf32>
    %cst_197 = arith.constant 9.99999997E-7 : f32
    %232 = vector.broadcast %cst_197 : f32 to vector<8x128xf32>
    %233 = arith.addf %231, %232 : vector<8x128xf32>
    %cst_198 = arith.constant 1.000000e+00 : f32
    %234 = vector.broadcast %cst_198 : f32 to vector<8x128xf32>
    %235 = arith.divf %234, %233 : vector<8x128xf32>
    %236 = arith.mulf %219, %235 : vector<8x128xf32>
    %237 = arith.mulf %222, %235 : vector<8x128xf32>
    %238 = arith.mulf %225, %235 : vector<8x128xf32>
    %239 = arith.mulf %236, %64 : vector<8x128xf32>
    %240 = arith.mulf %237, %65 : vector<8x128xf32>
    %241 = arith.addf %239, %240 : vector<8x128xf32>
    %242 = arith.mulf %238, %66 : vector<8x128xf32>
    %243 = arith.addf %241, %242 : vector<8x128xf32>
    %cst_199 = arith.constant 0.000000e+00 : f32
    %244 = vector.broadcast %cst_199 : f32 to vector<8x128xf32>
    %245 = arith.cmpf olt, %243, %244 : vector<8x128xf32>
    %cst_200 = arith.constant 1.000000e+00 : f32
    %cst_201 = arith.constant 0.000000e+00 : f32
    %246 = vector.broadcast %cst_200 : f32 to vector<8x128xf32>
    %247 = vector.broadcast %cst_201 : f32 to vector<8x128xf32>
    %248 = arith.select %245, %246, %247 : vector<8x128xi1>, vector<8x128xf32>
    %c0_202 = arith.constant 0 : index
    %c1_203 = arith.constant 1 : index
    %c0_204 = arith.constant 0 : index
    %c0_205 = arith.constant 0 : index
    %249 = vector.load %arg3[%c0_202, %c1_203, %c0_204, %c0_205] : memref<1x15x8x128xf32, #tpu.memory_space<vmem>>, vector<1x1x8x128xf32>
    %250 = vector.shape_cast %249 : vector<1x1x8x128xf32> to vector<8x128xf32>
    %251 = arith.maximumf %250, %248 : vector<8x128xf32>
    %c0_206 = arith.constant 0 : index
    %c1_207 = arith.constant 1 : index
    %c0_208 = arith.constant 0 : index
    %c0_209 = arith.constant 0 : index
    %252 = vector.load %arg3[%c0_206, %c1_207, %c0_208, %c0_209] : memref<1x15x8x128xf32, #tpu.memory_space<vmem>>, vector<1x1x8x128xf32>
    %253 = vector.shape_cast %252 : vector<1x1x8x128xf32> to vector<8x128xf32>
    %254 = vector.shape_cast %251 : vector<8x128xf32> to vector<1x1x8x128xf32>
    tpu.vector_store %arg3[%c0_206, %c1_207, %c0_208, %c0_209], %254 {strides = array<i32>} : memref<1x15x8x128xf32, #tpu.memory_space<vmem>>, vector<1x1x8x128xf32>,
    %255 = arith.mulf %149, %178 : vector<8x128xf32>
    %256 = arith.mulf %150, %177 : vector<8x128xf32>
    %257 = arith.subf %255, %256 : vector<8x128xf32>
    %258 = arith.mulf %150, %176 : vector<8x128xf32>
    %259 = arith.mulf %148, %178 : vector<8x128xf32>
    %260 = arith.subf %258, %259 : vector<8x128xf32>
    %261 = arith.mulf %148, %177 : vector<8x128xf32>
    %262 = arith.mulf %149, %176 : vector<8x128xf32>
    %263 = arith.subf %261, %262 : vector<8x128xf32>
    %264 = arith.mulf %257, %257 : vector<8x128xf32>
    %265 = arith.mulf %260, %260 : vector<8x128xf32>
    %266 = arith.addf %264, %265 : vector<8x128xf32>
    %267 = arith.mulf %263, %263 : vector<8x128xf32>
    %268 = arith.addf %266, %267 : vector<8x128xf32>
    %269 = math.sqrt %268 : vector<8x128xf32>
    %cst_210 = arith.constant 9.99999997E-7 : f32
    %270 = vector.broadcast %cst_210 : f32 to vector<8x128xf32>
    %271 = arith.addf %269, %270 : vector<8x128xf32>
    %cst_211 = arith.constant 1.000000e+00 : f32
    %272 = vector.broadcast %cst_211 : f32 to vector<8x128xf32>
    %273 = arith.divf %272, %271 : vector<8x128xf32>
    %274 = arith.mulf %257, %273 : vector<8x128xf32>
    %275 = arith.mulf %260, %273 : vector<8x128xf32>
    %276 = arith.mulf %263, %273 : vector<8x128xf32>
    %277 = arith.mulf %274, %64 : vector<8x128xf32>
    %278 = arith.mulf %275, %65 : vector<8x128xf32>
    %279 = arith.addf %277, %278 : vector<8x128xf32>
    %280 = arith.mulf %276, %66 : vector<8x128xf32>
    %281 = arith.addf %279, %280 : vector<8x128xf32>
    %cst_212 = arith.constant 0.000000e+00 : f32
    %282 = vector.broadcast %cst_212 : f32 to vector<8x128xf32>
    %283 = arith.cmpf olt, %281, %282 : vector<8x128xf32>
    %cst_213 = arith.constant 1.000000e+00 : f32
    %cst_214 = arith.constant 0.000000e+00 : f32
    %284 = vector.broadcast %cst_213 : f32 to vector<8x128xf32>
    %285 = vector.broadcast %cst_214 : f32 to vector<8x128xf32>
    %286 = arith.select %283, %284, %285 : vector<8x128xi1>, vector<8x128xf32>
    %c0_215 = arith.constant 0 : index
    %c2_216 = arith.constant 2 : index
    %c0_217 = arith.constant 0 : index
    %c0_218 = arith.constant 0 : index
    %287 = vector.load %arg3[%c0_215, %c2_216, %c0_217, %c0_218] : memref<1x15x8x128xf32, #tpu.memory_space<vmem>>, vector<1x1x8x128xf32>
    %288 = vector.shape_cast %287 : vector<1x1x8x128xf32> to vector<8x128xf32>
    %289 = arith.maximumf %288, %286 : vector<8x128xf32>
    %c0_219 = arith.constant 0 : index
    %c2_220 = arith.constant 2 : index
    %c0_221 = arith.constant 0 : index
    %c0_222 = arith.constant 0 : index
    %290 = vector.load %arg3[%c0_219, %c2_220, %c0_221, %c0_222] : memref<1x15x8x128xf32, #tpu.memory_space<vmem>>, vector<1x1x8x128xf32>
    %291 = vector.shape_cast %290 : vector<1x1x8x128xf32> to vector<8x128xf32>
    %292 = vector.shape_cast %289 : vector<8x128xf32> to vector<1x1x8x128xf32>
    tpu.vector_store %arg3[%c0_219, %c2_220, %c0_221, %c0_222], %292 {strides = array<i32>} : memref<1x15x8x128xf32, #tpu.memory_space<vmem>>, vector<1x1x8x128xf32>,
    %c4_223 = arith.constant 4 : index
    %c0_224 = arith.constant 0 : index
    %c0_225 = arith.constant 0 : index
    %c0_226 = arith.constant 0 : index
    %c0_227 = arith.constant 0 : index
    %293 = vector.load %arg2[%c4_223, %c0_224, %c0_225, %c0_226, %c0_227] : memref<21x3x1x8x128xf32, #tpu.memory_space<vmem>>, vector<1x1x1x8x128xf32>
    %294 = vector.shape_cast %293 : vector<1x1x1x8x128xf32> to vector<8x128xf32>
    %c4_228 = arith.constant 4 : index
    %c1_229 = arith.constant 1 : index
    %c0_230 = arith.constant 0 : index
    %c0_231 = arith.constant 0 : index
    %c0_232 = arith.constant 0 : index
    %295 = vector.load %arg2[%c4_228, %c1_229, %c0_230, %c0_231, %c0_232] : memref<21x3x1x8x128xf32, #tpu.memory_space<vmem>>, vector<1x1x1x8x128xf32>
    %296 = vector.shape_cast %295 : vector<1x1x1x8x128xf32> to vector<8x128xf32>
    %c4_233 = arith.constant 4 : index
    %c2_234 = arith.constant 2 : index
    %c0_235 = arith.constant 0 : index
    %c0_236 = arith.constant 0 : index
    %c0_237 = arith.constant 0 : index
    %297 = vector.load %arg2[%c4_233, %c2_234, %c0_235, %c0_236, %c0_237] : memref<21x3x1x8x128xf32, #tpu.memory_space<vmem>>, vector<1x1x1x8x128xf32>
    %298 = vector.shape_cast %297 : vector<1x1x1x8x128xf32> to vector<8x128xf32>
    %299 = arith.subf %294, %4 : vector<8x128xf32>
    %300 = arith.subf %296, %6 : vector<8x128xf32>
    %301 = arith.subf %298, %8 : vector<8x128xf32>
    %c10 = arith.constant 10 : index
    %c0_238 = arith.constant 0 : index
    %c0_239 = arith.constant 0 : index
    %c0_240 = arith.constant 0 : index
    %c0_241 = arith.constant 0 : index
    %302 = vector.load %arg2[%c10, %c0_238, %c0_239, %c0_240, %c0_241] : memref<21x3x1x8x128xf32, #tpu.memory_space<vmem>>, vector<1x1x1x8x128xf32>
    %303 = vector.shape_cast %302 : vector<1x1x1x8x128xf32> to vector<8x128xf32>
    %c10_242 = arith.constant 10 : index
    %c1_243 = arith.constant 1 : index
    %c0_244 = arith.constant 0 : index
    %c0_245 = arith.constant 0 : index
    %c0_246 = arith.constant 0 : index
    %304 = vector.load %arg2[%c10_242, %c1_243, %c0_244, %c0_245, %c0_246] : memref<21x3x1x8x128xf32, #tpu.memory_space<vmem>>, vector<1x1x1x8x128xf32>
    %305 = vector.shape_cast %304 : vector<1x1x1x8x128xf32> to vector<8x128xf32>
    %c10_247 = arith.constant 10 : index
    %c2_248 = arith.constant 2 : index
    %c0_249 = arith.constant 0 : index
    %c0_250 = arith.constant 0 : index
    %c0_251 = arith.constant 0 : index
    %306 = vector.load %arg2[%c10_247, %c2_248, %c0_249, %c0_250, %c0_251] : memref<21x3x1x8x128xf32, #tpu.memory_space<vmem>>, vector<1x1x1x8x128xf32>
    %307 = vector.shape_cast %306 : vector<1x1x1x8x128xf32> to vector<8x128xf32>
    %308 = arith.subf %303, %4 : vector<8x128xf32>
    %309 = arith.subf %305, %6 : vector<8x128xf32>
    %310 = arith.subf %307, %8 : vector<8x128xf32>
    %311 = arith.mulf %300, %310 : vector<8x128xf32>
    %312 = arith.mulf %301, %309 : vector<8x128xf32>
    %313 = arith.subf %311, %312 : vector<8x128xf32>
    %314 = arith.mulf %301, %308 : vector<8x128xf32>
    %315 = arith.mulf %299, %310 : vector<8x128xf32>
    %316 = arith.subf %314, %315 : vector<8x128xf32>
    %317 = arith.mulf %299, %309 : vector<8x128xf32>
    %318 = arith.mulf %300, %308 : vector<8x128xf32>
    %319 = arith.subf %317, %318 : vector<8x128xf32>
    %c4_252 = arith.constant 4 : index
    %c0_253 = arith.constant 0 : index
    %c0_254 = arith.constant 0 : index
    %c0_255 = arith.constant 0 : index
    %c0_256 = arith.constant 0 : index
    %320 = vector.load %arg2[%c4_252, %c0_253, %c0_254, %c0_255, %c0_256] : memref<21x3x1x8x128xf32, #tpu.memory_space<vmem>>, vector<1x1x1x8x128xf32>
    %321 = vector.shape_cast %320 : vector<1x1x1x8x128xf32> to vector<8x128xf32>
    %c4_257 = arith.constant 4 : index
    %c1_258 = arith.constant 1 : index
    %c0_259 = arith.constant 0 : index
    %c0_260 = arith.constant 0 : index
    %c0_261 = arith.constant 0 : index
    %322 = vector.load %arg2[%c4_257, %c1_258, %c0_259, %c0_260, %c0_261] : memref<21x3x1x8x128xf32, #tpu.memory_space<vmem>>, vector<1x1x1x8x128xf32>
    %323 = vector.shape_cast %322 : vector<1x1x1x8x128xf32> to vector<8x128xf32>
    %c4_262 = arith.constant 4 : index
    %c2_263 = arith.constant 2 : index
    %c0_264 = arith.constant 0 : index
    %c0_265 = arith.constant 0 : index
    %c0_266 = arith.constant 0 : index
    %324 = vector.load %arg2[%c4_262, %c2_263, %c0_264, %c0_265, %c0_266] : memref<21x3x1x8x128xf32, #tpu.memory_space<vmem>>, vector<1x1x1x8x128xf32>
    %325 = vector.shape_cast %324 : vector<1x1x1x8x128xf32> to vector<8x128xf32>
    %326 = arith.subf %321, %4 : vector<8x128xf32>
    %327 = arith.subf %323, %6 : vector<8x128xf32>
    %328 = arith.subf %325, %8 : vector<8x128xf32>
    %329 = arith.mulf %316, %328 : vector<8x128xf32>
    %330 = arith.mulf %319, %327 : vector<8x128xf32>
    %331 = arith.subf %329, %330 : vector<8x128xf32>
    %332 = arith.mulf %319, %326 : vector<8x128xf32>
    %333 = arith.mulf %313, %328 : vector<8x128xf32>
    %334 = arith.subf %332, %333 : vector<8x128xf32>
    %335 = arith.mulf %313, %327 : vector<8x128xf32>
    %336 = arith.mulf %316, %326 : vector<8x128xf32>
    %337 = arith.subf %335, %336 : vector<8x128xf32>
    %338 = arith.mulf %331, %331 : vector<8x128xf32>
    %339 = arith.mulf %334, %334 : vector<8x128xf32>
    %340 = arith.addf %338, %339 : vector<8x128xf32>
    %341 = arith.mulf %337, %337 : vector<8x128xf32>
    %342 = arith.addf %340, %341 : vector<8x128xf32>
    %343 = math.sqrt %342 : vector<8x128xf32>
    %cst_267 = arith.constant 9.99999997E-7 : f32
    %344 = vector.broadcast %cst_267 : f32 to vector<8x128xf32>
    %345 = arith.addf %343, %344 : vector<8x128xf32>
    %cst_268 = arith.constant 1.000000e+00 : f32
    %346 = vector.broadcast %cst_268 : f32 to vector<8x128xf32>
    %347 = arith.divf %346, %345 : vector<8x128xf32>
    %348 = arith.mulf %331, %347 : vector<8x128xf32>
    %349 = arith.mulf %334, %347 : vector<8x128xf32>
    %350 = arith.mulf %337, %347 : vector<8x128xf32>
    %c4_269 = arith.constant 4 : index
    %c0_270 = arith.constant 0 : index
    %c0_271 = arith.constant 0 : index
    %c0_272 = arith.constant 0 : index
    %c0_273 = arith.constant 0 : index
    %351 = vector.load %arg2[%c4_269, %c0_270, %c0_271, %c0_272, %c0_273] : memref<21x3x1x8x128xf32, #tpu.memory_space<vmem>>, vector<1x1x1x8x128xf32>
    %352 = vector.shape_cast %351 : vector<1x1x1x8x128xf32> to vector<8x128xf32>
    %c4_274 = arith.constant 4 : index
    %c1_275 = arith.constant 1 : index
    %c0_276 = arith.constant 0 : index
    %c0_277 = arith.constant 0 : index
    %c0_278 = arith.constant 0 : index
    %353 = vector.load %arg2[%c4_274, %c1_275, %c0_276, %c0_277, %c0_278] : memref<21x3x1x8x128xf32, #tpu.memory_space<vmem>>, vector<1x1x1x8x128xf32>
    %354 = vector.shape_cast %353 : vector<1x1x1x8x128xf32> to vector<8x128xf32>
    %c4_279 = arith.constant 4 : index
    %c2_280 = arith.constant 2 : index
    %c0_281 = arith.constant 0 : index
    %c0_282 = arith.constant 0 : index
    %c0_283 = arith.constant 0 : index
    %355 = vector.load %arg2[%c4_279, %c2_280, %c0_281, %c0_282, %c0_283] : memref<21x3x1x8x128xf32, #tpu.memory_space<vmem>>, vector<1x1x1x8x128xf32>
    %356 = vector.shape_cast %355 : vector<1x1x1x8x128xf32> to vector<8x128xf32>
    %c0_284 = arith.constant 0 : index
    %c0_285 = arith.constant 0 : index
    %c0_286 = arith.constant 0 : index
    %c0_287 = arith.constant 0 : index
    %c0_288 = arith.constant 0 : index
    %357 = vector.load %arg2[%c0_284, %c0_285, %c0_286, %c0_287, %c0_288] : memref<21x3x1x8x128xf32, #tpu.memory_space<vmem>>, vector<1x1x1x8x128xf32>
    %358 = vector.shape_cast %357 : vector<1x1x1x8x128xf32> to vector<8x128xf32>
    %c0_289 = arith.constant 0 : index
    %c1_290 = arith.constant 1 : index
    %c0_291 = arith.constant 0 : index
    %c0_292 = arith.constant 0 : index
    %c0_293 = arith.constant 0 : index
    %359 = vector.load %arg2[%c0_289, %c1_290, %c0_291, %c0_292, %c0_293] : memref<21x3x1x8x128xf32, #tpu.memory_space<vmem>>, vector<1x1x1x8x128xf32>
    %360 = vector.shape_cast %359 : vector<1x1x1x8x128xf32> to vector<8x128xf32>
    %c0_294 = arith.constant 0 : index
    %c2_295 = arith.constant 2 : index
    %c0_296 = arith.constant 0 : index
    %c0_297 = arith.constant 0 : index
    %c0_298 = arith.constant 0 : index
    %361 = vector.load %arg2[%c0_294, %c2_295, %c0_296, %c0_297, %c0_298] : memref<21x3x1x8x128xf32, #tpu.memory_space<vmem>>, vector<1x1x1x8x128xf32>
    %362 = vector.shape_cast %361 : vector<1x1x1x8x128xf32> to vector<8x128xf32>
    %363 = arith.subf %352, %358 : vector<8x128xf32>
    %364 = arith.subf %354, %360 : vector<8x128xf32>
    %365 = arith.subf %356, %362 : vector<8x128xf32>
    %366 = arith.mulf %363, %363 : vector<8x128xf32>
    %367 = arith.mulf %364, %364 : vector<8x128xf32>
    %368 = arith.addf %366, %367 : vector<8x128xf32>
    %369 = arith.mulf %365, %365 : vector<8x128xf32>
    %370 = arith.addf %368, %369 : vector<8x128xf32>
    %371 = math.sqrt %370 : vector<8x128xf32>
    %cst_299 = arith.constant 9.99999997E-7 : f32
    %372 = vector.broadcast %cst_299 : f32 to vector<8x128xf32>
    %373 = arith.addf %371, %372 : vector<8x128xf32>
    %cst_300 = arith.constant 1.000000e+00 : f32
    %374 = vector.broadcast %cst_300 : f32 to vector<8x128xf32>
    %375 = arith.divf %374, %373 : vector<8x128xf32>
    %376 = arith.mulf %363, %375 : vector<8x128xf32>
    %377 = arith.mulf %364, %375 : vector<8x128xf32>
    %378 = arith.mulf %365, %375 : vector<8x128xf32>
    %c5 = arith.constant 5 : index
    %c0_301 = arith.constant 0 : index
    %c0_302 = arith.constant 0 : index
    %c0_303 = arith.constant 0 : index
    %c0_304 = arith.constant 0 : index
    %379 = vector.load %arg2[%c5, %c0_301, %c0_302, %c0_303, %c0_304] : memref<21x3x1x8x128xf32, #tpu.memory_space<vmem>>, vector<1x1x1x8x128xf32>
    %380 = vector.shape_cast %379 : vector<1x1x1x8x128xf32> to vector<8x128xf32>
    %c5_305 = arith.constant 5 : index
    %c1_306 = arith.constant 1 : index
    %c0_307 = arith.constant 0 : index
    %c0_308 = arith.constant 0 : index
    %c0_309 = arith.constant 0 : index
    %381 = vector.load %arg2[%c5_305, %c1_306, %c0_307, %c0_308, %c0_309] : memref<21x3x1x8x128xf32, #tpu.memory_space<vmem>>, vector<1x1x1x8x128xf32>
    %382 = vector.shape_cast %381 : vector<1x1x1x8x128xf32> to vector<8x128xf32>
    %c5_310 = arith.constant 5 : index
    %c2_311 = arith.constant 2 : index
    %c0_312 = arith.constant 0 : index
    %c0_313 = arith.constant 0 : index
    %c0_314 = arith.constant 0 : index
    %383 = vector.load %arg2[%c5_310, %c2_311, %c0_312, %c0_313, %c0_314] : memref<21x3x1x8x128xf32, #tpu.memory_space<vmem>>, vector<1x1x1x8x128xf32>
    %384 = vector.shape_cast %383 : vector<1x1x1x8x128xf32> to vector<8x128xf32>
    %c4_315 = arith.constant 4 : index
    %c0_316 = arith.constant 0 : index
    %c0_317 = arith.constant 0 : index
    %c0_318 = arith.constant 0 : index
    %c0_319 = arith.constant 0 : index
    %385 = vector.load %arg2[%c4_315, %c0_316, %c0_317, %c0_318, %c0_319] : memref<21x3x1x8x128xf32, #tpu.memory_space<vmem>>, vector<1x1x1x8x128xf32>
    %386 = vector.shape_cast %385 : vector<1x1x1x8x128xf32> to vector<8x128xf32>
    %c4_320 = arith.constant 4 : index
    %c1_321 = arith.constant 1 : index
    %c0_322 = arith.constant 0 : index
    %c0_323 = arith.constant 0 : index
    %c0_324 = arith.constant 0 : index
    %387 = vector.load %arg2[%c4_320, %c1_321, %c0_322, %c0_323, %c0_324] : memref<21x3x1x8x128xf32, #tpu.memory_space<vmem>>, vector<1x1x1x8x128xf32>
    %388 = vector.shape_cast %387 : vector<1x1x1x8x128xf32> to vector<8x128xf32>
    %c4_325 = arith.constant 4 : index
    %c2_326 = arith.constant 2 : index
    %c0_327 = arith.constant 0 : index
    %c0_328 = arith.constant 0 : index
    %c0_329 = arith.constant 0 : index
    %389 = vector.load %arg2[%c4_325, %c2_326, %c0_327, %c0_328, %c0_329] : memref<21x3x1x8x128xf32, #tpu.memory_space<vmem>>, vector<1x1x1x8x128xf32>
    %390 = vector.shape_cast %389 : vector<1x1x1x8x128xf32> to vector<8x128xf32>
    %391 = arith.subf %380, %386 : vector<8x128xf32>
    %392 = arith.subf %382, %388 : vector<8x128xf32>
    %393 = arith.subf %384, %390 : vector<8x128xf32>
    %394 = arith.mulf %391, %391 : vector<8x128xf32>
    %395 = arith.mulf %392, %392 : vector<8x128xf32>
    %396 = arith.addf %394, %395 : vector<8x128xf32>
    %397 = arith.mulf %393, %393 : vector<8x128xf32>
    %398 = arith.addf %396, %397 : vector<8x128xf32>
    %399 = math.sqrt %398 : vector<8x128xf32>
    %cst_330 = arith.constant 9.99999997E-7 : f32
    %400 = vector.broadcast %cst_330 : f32 to vector<8x128xf32>
    %401 = arith.addf %399, %400 : vector<8x128xf32>
    %cst_331 = arith.constant 1.000000e+00 : f32
    %402 = vector.broadcast %cst_331 : f32 to vector<8x128xf32>
    %403 = arith.divf %402, %401 : vector<8x128xf32>
    %404 = arith.mulf %391, %403 : vector<8x128xf32>
    %405 = arith.mulf %392, %403 : vector<8x128xf32>
    %406 = arith.mulf %393, %403 : vector<8x128xf32>
    %c6 = arith.constant 6 : index
    %c0_332 = arith.constant 0 : index
    %c0_333 = arith.constant 0 : index
    %c0_334 = arith.constant 0 : index
    %c0_335 = arith.constant 0 : index
    %407 = vector.load %arg2[%c6, %c0_332, %c0_333, %c0_334, %c0_335] : memref<21x3x1x8x128xf32, #tpu.memory_space<vmem>>, vector<1x1x1x8x128xf32>
    %408 = vector.shape_cast %407 : vector<1x1x1x8x128xf32> to vector<8x128xf32>
    %c6_336 = arith.constant 6 : index
    %c1_337 = arith.constant 1 : index
    %c0_338 = arith.constant 0 : index
    %c0_339 = arith.constant 0 : index
    %c0_340 = arith.constant 0 : index
    %409 = vector.load %arg2[%c6_336, %c1_337, %c0_338, %c0_339, %c0_340] : memref<21x3x1x8x128xf32, #tpu.memory_space<vmem>>, vector<1x1x1x8x128xf32>
    %410 = vector.shape_cast %409 : vector<1x1x1x8x128xf32> to vector<8x128xf32>
    %c6_341 = arith.constant 6 : index
    %c2_342 = arith.constant 2 : index
    %c0_343 = arith.constant 0 : index
    %c0_344 = arith.constant 0 : index
    %c0_345 = arith.constant 0 : index
    %411 = vector.load %arg2[%c6_341, %c2_342, %c0_343, %c0_344, %c0_345] : memref<21x3x1x8x128xf32, #tpu.memory_space<vmem>>, vector<1x1x1x8x128xf32>
    %412 = vector.shape_cast %411 : vector<1x1x1x8x128xf32> to vector<8x128xf32>
    %c5_346 = arith.constant 5 : index
    %c0_347 = arith.constant 0 : index
    %c0_348 = arith.constant 0 : index
    %c0_349 = arith.constant 0 : index
    %c0_350 = arith.constant 0 : index
    %413 = vector.load %arg2[%c5_346, %c0_347, %c0_348, %c0_349, %c0_350] : memref<21x3x1x8x128xf32, #tpu.memory_space<vmem>>, vector<1x1x1x8x128xf32>
    %414 = vector.shape_cast %413 : vector<1x1x1x8x128xf32> to vector<8x128xf32>
    %c5_351 = arith.constant 5 : index
    %c1_352 = arith.constant 1 : index
    %c0_353 = arith.constant 0 : index
    %c0_354 = arith.constant 0 : index
    %c0_355 = arith.constant 0 : index
    %415 = vector.load %arg2[%c5_351, %c1_352, %c0_353, %c0_354, %c0_355] : memref<21x3x1x8x128xf32, #tpu.memory_space<vmem>>, vector<1x1x1x8x128xf32>
    %416 = vector.shape_cast %415 : vector<1x1x1x8x128xf32> to vector<8x128xf32>
    %c5_356 = arith.constant 5 : index
    %c2_357 = arith.constant 2 : index
    %c0_358 = arith.constant 0 : index
    %c0_359 = arith.constant 0 : index
    %c0_360 = arith.constant 0 : index
    %417 = vector.load %arg2[%c5_356, %c2_357, %c0_358, %c0_359, %c0_360] : memref<21x3x1x8x128xf32, #tpu.memory_space<vmem>>, vector<1x1x1x8x128xf32>
    %418 = vector.shape_cast %417 : vector<1x1x1x8x128xf32> to vector<8x128xf32>
    %419 = arith.subf %408, %414 : vector<8x128xf32>
    %420 = arith.subf %410, %416 : vector<8x128xf32>
    %421 = arith.subf %412, %418 : vector<8x128xf32>
    %422 = arith.mulf %419, %419 : vector<8x128xf32>
    %423 = arith.mulf %420, %420 : vector<8x128xf32>
    %424 = arith.addf %422, %423 : vector<8x128xf32>
    %425 = arith.mulf %421, %421 : vector<8x128xf32>
    %426 = arith.addf %424, %425 : vector<8x128xf32>
    %427 = math.sqrt %426 : vector<8x128xf32>
    %cst_361 = arith.constant 9.99999997E-7 : f32
    %428 = vector.broadcast %cst_361 : f32 to vector<8x128xf32>
    %429 = arith.addf %427, %428 : vector<8x128xf32>
    %cst_362 = arith.constant 1.000000e+00 : f32
    %430 = vector.broadcast %cst_362 : f32 to vector<8x128xf32>
    %431 = arith.divf %430, %429 : vector<8x128xf32>
    %432 = arith.mulf %419, %431 : vector<8x128xf32>
    %433 = arith.mulf %420, %431 : vector<8x128xf32>
    %434 = arith.mulf %421, %431 : vector<8x128xf32>
    %c18 = arith.constant 18 : index
    %c0_363 = arith.constant 0 : index
    %c0_364 = arith.constant 0 : index
    %c0_365 = arith.constant 0 : index
    %c0_366 = arith.constant 0 : index
    %435 = vector.load %arg2[%c18, %c0_363, %c0_364, %c0_365, %c0_366] : memref<21x3x1x8x128xf32, #tpu.memory_space<vmem>>, vector<1x1x1x8x128xf32>
    %436 = vector.shape_cast %435 : vector<1x1x1x8x128xf32> to vector<8x128xf32>
    %c18_367 = arith.constant 18 : index
    %c1_368 = arith.constant 1 : index
    %c0_369 = arith.constant 0 : index
    %c0_370 = arith.constant 0 : index
    %c0_371 = arith.constant 0 : index
    %437 = vector.load %arg2[%c18_367, %c1_368, %c0_369, %c0_370, %c0_371] : memref<21x3x1x8x128xf32, #tpu.memory_space<vmem>>, vector<1x1x1x8x128xf32>
    %438 = vector.shape_cast %437 : vector<1x1x1x8x128xf32> to vector<8x128xf32>
    %c18_372 = arith.constant 18 : index
    %c2_373 = arith.constant 2 : index
    %c0_374 = arith.constant 0 : index
    %c0_375 = arith.constant 0 : index
    %c0_376 = arith.constant 0 : index
    %439 = vector.load %arg2[%c18_372, %c2_373, %c0_374, %c0_375, %c0_376] : memref<21x3x1x8x128xf32, #tpu.memory_space<vmem>>, vector<1x1x1x8x128xf32>
    %440 = vector.shape_cast %439 : vector<1x1x1x8x128xf32> to vector<8x128xf32>
    %c6_377 = arith.constant 6 : index
    %c0_378 = arith.constant 0 : index
    %c0_379 = arith.constant 0 : index
    %c0_380 = arith.constant 0 : index
    %c0_381 = arith.constant 0 : index
    %441 = vector.load %arg2[%c6_377, %c0_378, %c0_379, %c0_380, %c0_381] : memref<21x3x1x8x128xf32, #tpu.memory_space<vmem>>, vector<1x1x1x8x128xf32>
    %442 = vector.shape_cast %441 : vector<1x1x1x8x128xf32> to vector<8x128xf32>
    %c6_382 = arith.constant 6 : index
    %c1_383 = arith.constant 1 : index
    %c0_384 = arith.constant 0 : index
    %c0_385 = arith.constant 0 : index
    %c0_386 = arith.constant 0 : index
    %443 = vector.load %arg2[%c6_382, %c1_383, %c0_384, %c0_385, %c0_386] : memref<21x3x1x8x128xf32, #tpu.memory_space<vmem>>, vector<1x1x1x8x128xf32>
    %444 = vector.shape_cast %443 : vector<1x1x1x8x128xf32> to vector<8x128xf32>
    %c6_387 = arith.constant 6 : index
    %c2_388 = arith.constant 2 : index
    %c0_389 = arith.constant 0 : index
    %c0_390 = arith.constant 0 : index
    %c0_391 = arith.constant 0 : index
    %445 = vector.load %arg2[%c6_387, %c2_388, %c0_389, %c0_390, %c0_391] : memref<21x3x1x8x128xf32, #tpu.memory_space<vmem>>, vector<1x1x1x8x128xf32>
    %446 = vector.shape_cast %445 : vector<1x1x1x8x128xf32> to vector<8x128xf32>
    %447 = arith.subf %436, %442 : vector<8x128xf32>
    %448 = arith.subf %438, %444 : vector<8x128xf32>
    %449 = arith.subf %440, %446 : vector<8x128xf32>
    %450 = arith.mulf %447, %447 : vector<8x128xf32>
    %451 = arith.mulf %448, %448 : vector<8x128xf32>
    %452 = arith.addf %450, %451 : vector<8x128xf32>
    %453 = arith.mulf %449, %449 : vector<8x128xf32>
    %454 = arith.addf %452, %453 : vector<8x128xf32>
    %455 = math.sqrt %454 : vector<8x128xf32>
    %cst_392 = arith.constant 9.99999997E-7 : f32
    %456 = vector.broadcast %cst_392 : f32 to vector<8x128xf32>
    %457 = arith.addf %455, %456 : vector<8x128xf32>
    %cst_393 = arith.constant 1.000000e+00 : f32
    %458 = vector.broadcast %cst_393 : f32 to vector<8x128xf32>
    %459 = arith.divf %458, %457 : vector<8x128xf32>
    %460 = arith.mulf %447, %459 : vector<8x128xf32>
    %461 = arith.mulf %448, %459 : vector<8x128xf32>
    %462 = arith.mulf %449, %459 : vector<8x128xf32>
    %463 = arith.mulf %377, %406 : vector<8x128xf32>
    %464 = arith.mulf %378, %405 : vector<8x128xf32>
    %465 = arith.subf %463, %464 : vector<8x128xf32>
    %466 = arith.mulf %378, %404 : vector<8x128xf32>
    %467 = arith.mulf %376, %406 : vector<8x128xf32>
    %468 = arith.subf %466, %467 : vector<8x128xf32>
    %469 = arith.mulf %376, %405 : vector<8x128xf32>
    %470 = arith.mulf %377, %404 : vector<8x128xf32>
    %471 = arith.subf %469, %470 : vector<8x128xf32>
    %472 = arith.mulf %465, %465 : vector<8x128xf32>
    %473 = arith.mulf %468, %468 : vector<8x128xf32>
    %474 = arith.addf %472, %473 : vector<8x128xf32>
    %475 = arith.mulf %471, %471 : vector<8x128xf32>
    %476 = arith.addf %474, %475 : vector<8x128xf32>
    %477 = math.sqrt %476 : vector<8x128xf32>
    %cst_394 = arith.constant 9.99999997E-7 : f32
    %478 = vector.broadcast %cst_394 : f32 to vector<8x128xf32>
    %479 = arith.addf %477, %478 : vector<8x128xf32>
    %cst_395 = arith.constant 1.000000e+00 : f32
    %480 = vector.broadcast %cst_395 : f32 to vector<8x128xf32>
    %481 = arith.divf %480, %479 : vector<8x128xf32>
    %482 = arith.mulf %465, %481 : vector<8x128xf32>
    %483 = arith.mulf %468, %481 : vector<8x128xf32>
    %484 = arith.mulf %471, %481 : vector<8x128xf32>
    %485 = arith.mulf %482, %348 : vector<8x128xf32>
    %486 = arith.mulf %483, %349 : vector<8x128xf32>
    %487 = arith.addf %485, %486 : vector<8x128xf32>
    %488 = arith.mulf %484, %350 : vector<8x128xf32>
    %489 = arith.addf %487, %488 : vector<8x128xf32>
    %cst_396 = arith.constant 0.000000e+00 : f32
    %490 = vector.broadcast %cst_396 : f32 to vector<8x128xf32>
    %491 = arith.cmpf olt, %489, %490 : vector<8x128xf32>
    %cst_397 = arith.constant 1.000000e+00 : f32
    %cst_398 = arith.constant 0.000000e+00 : f32
    %492 = vector.broadcast %cst_397 : f32 to vector<8x128xf32>
    %493 = vector.broadcast %cst_398 : f32 to vector<8x128xf32>
    %494 = arith.select %491, %492, %493 : vector<8x128xi1>, vector<8x128xf32>
    %c0_399 = arith.constant 0 : index
    %c3_400 = arith.constant 3 : index
    %c0_401 = arith.constant 0 : index
    %c0_402 = arith.constant 0 : index
    %495 = vector.load %arg3[%c0_399, %c3_400, %c0_401, %c0_402] : memref<1x15x8x128xf32, #tpu.memory_space<vmem>>, vector<1x1x8x128xf32>
    %496 = vector.shape_cast %495 : vector<1x1x8x128xf32> to vector<8x128xf32>
    %497 = arith.maximumf %496, %494 : vector<8x128xf32>
    %c0_403 = arith.constant 0 : index
    %c3_404 = arith.constant 3 : index
    %c0_405 = arith.constant 0 : index
    %c0_406 = arith.constant 0 : index
    %498 = vector.load %arg3[%c0_403, %c3_404, %c0_405, %c0_406] : memref<1x15x8x128xf32, #tpu.memory_space<vmem>>, vector<1x1x8x128xf32>
    %499 = vector.shape_cast %498 : vector<1x1x8x128xf32> to vector<8x128xf32>
    %500 = vector.shape_cast %497 : vector<8x128xf32> to vector<1x1x8x128xf32>
    tpu.vector_store %arg3[%c0_403, %c3_404, %c0_405, %c0_406], %500 {strides = array<i32>} : memref<1x15x8x128xf32, #tpu.memory_space<vmem>>, vector<1x1x8x128xf32>,
    %501 = arith.mulf %405, %434 : vector<8x128xf32>
    %502 = arith.mulf %406, %433 : vector<8x128xf32>
    %503 = arith.subf %501, %502 : vector<8x128xf32>
    %504 = arith.mulf %406, %432 : vector<8x128xf32>
    %505 = arith.mulf %404, %434 : vector<8x128xf32>
    %506 = arith.subf %504, %505 : vector<8x128xf32>
    %507 = arith.mulf %404, %433 : vector<8x128xf32>
    %508 = arith.mulf %405, %432 : vector<8x128xf32>
    %509 = arith.subf %507, %508 : vector<8x128xf32>
    %510 = arith.mulf %503, %503 : vector<8x128xf32>
    %511 = arith.mulf %506, %506 : vector<8x128xf32>
    %512 = arith.addf %510, %511 : vector<8x128xf32>
    %513 = arith.mulf %509, %509 : vector<8x128xf32>
    %514 = arith.addf %512, %513 : vector<8x128xf32>
    %515 = math.sqrt %514 : vector<8x128xf32>
    %cst_407 = arith.constant 9.99999997E-7 : f32
    %516 = vector.broadcast %cst_407 : f32 to vector<8x128xf32>
    %517 = arith.addf %515, %516 : vector<8x128xf32>
    %cst_408 = arith.constant 1.000000e+00 : f32
    %518 = vector.broadcast %cst_408 : f32 to vector<8x128xf32>
    %519 = arith.divf %518, %517 : vector<8x128xf32>
    %520 = arith.mulf %503, %519 : vector<8x128xf32>
    %521 = arith.mulf %506, %519 : vector<8x128xf32>
    %522 = arith.mulf %509, %519 : vector<8x128xf32>
    %523 = arith.mulf %520, %348 : vector<8x128xf32>
    %524 = arith.mulf %521, %349 : vector<8x128xf32>
    %525 = arith.addf %523, %524 : vector<8x128xf32>
    %526 = arith.mulf %522, %350 : vector<8x128xf32>
    %527 = arith.addf %525, %526 : vector<8x128xf32>
    %cst_409 = arith.constant 0.000000e+00 : f32
    %528 = vector.broadcast %cst_409 : f32 to vector<8x128xf32>
    %529 = arith.cmpf olt, %527, %528 : vector<8x128xf32>
    %cst_410 = arith.constant 1.000000e+00 : f32
    %cst_411 = arith.constant 0.000000e+00 : f32
    %530 = vector.broadcast %cst_410 : f32 to vector<8x128xf32>
    %531 = vector.broadcast %cst_411 : f32 to vector<8x128xf32>
    %532 = arith.select %529, %530, %531 : vector<8x128xi1>, vector<8x128xf32>
    %c0_412 = arith.constant 0 : index
    %c4_413 = arith.constant 4 : index
    %c0_414 = arith.constant 0 : index
    %c0_415 = arith.constant 0 : index
    %533 = vector.load %arg3[%c0_412, %c4_413, %c0_414, %c0_415] : memref<1x15x8x128xf32, #tpu.memory_space<vmem>>, vector<1x1x8x128xf32>
    %534 = vector.shape_cast %533 : vector<1x1x8x128xf32> to vector<8x128xf32>
    %535 = arith.maximumf %534, %532 : vector<8x128xf32>
    %c0_416 = arith.constant 0 : index
    %c4_417 = arith.constant 4 : index
    %c0_418 = arith.constant 0 : index
    %c0_419 = arith.constant 0 : index
    %536 = vector.load %arg3[%c0_416, %c4_417, %c0_418, %c0_419] : memref<1x15x8x128xf32, #tpu.memory_space<vmem>>, vector<1x1x8x128xf32>
    %537 = vector.shape_cast %536 : vector<1x1x8x128xf32> to vector<8x128xf32>
    %538 = vector.shape_cast %535 : vector<8x128xf32> to vector<1x1x8x128xf32>
    tpu.vector_store %arg3[%c0_416, %c4_417, %c0_418, %c0_419], %538 {strides = array<i32>} : memref<1x15x8x128xf32, #tpu.memory_space<vmem>>, vector<1x1x8x128xf32>,
    %539 = arith.mulf %433, %462 : vector<8x128xf32>
    %540 = arith.mulf %434, %461 : vector<8x128xf32>
    %541 = arith.subf %539, %540 : vector<8x128xf32>
    %542 = arith.mulf %434, %460 : vector<8x128xf32>
    %543 = arith.mulf %432, %462 : vector<8x128xf32>
    %544 = arith.subf %542, %543 : vector<8x128xf32>
    %545 = arith.mulf %432, %461 : vector<8x128xf32>
    %546 = arith.mulf %433, %460 : vector<8x128xf32>
    %547 = arith.subf %545, %546 : vector<8x128xf32>
    %548 = arith.mulf %541, %541 : vector<8x128xf32>
    %549 = arith.mulf %544, %544 : vector<8x128xf32>
    %550 = arith.addf %548, %549 : vector<8x128xf32>
    %551 = arith.mulf %547, %547 : vector<8x128xf32>
    %552 = arith.addf %550, %551 : vector<8x128xf32>
    %553 = math.sqrt %552 : vector<8x128xf32>
    %cst_420 = arith.constant 9.99999997E-7 : f32
    %554 = vector.broadcast %cst_420 : f32 to vector<8x128xf32>
    %555 = arith.addf %553, %554 : vector<8x128xf32>
    %cst_421 = arith.constant 1.000000e+00 : f32
    %556 = vector.broadcast %cst_421 : f32 to vector<8x128xf32>
    %557 = arith.divf %556, %555 : vector<8x128xf32>
    %558 = arith.mulf %541, %557 : vector<8x128xf32>
    %559 = arith.mulf %544, %557 : vector<8x128xf32>
    %560 = arith.mulf %547, %557 : vector<8x128xf32>
    %561 = arith.mulf %558, %348 : vector<8x128xf32>
    %562 = arith.mulf %559, %349 : vector<8x128xf32>
    %563 = arith.addf %561, %562 : vector<8x128xf32>
    %564 = arith.mulf %560, %350 : vector<8x128xf32>
    %565 = arith.addf %563, %564 : vector<8x128xf32>
    %cst_422 = arith.constant 0.000000e+00 : f32
    %566 = vector.broadcast %cst_422 : f32 to vector<8x128xf32>
    %567 = arith.cmpf olt, %565, %566 : vector<8x128xf32>
    %cst_423 = arith.constant 1.000000e+00 : f32
    %cst_424 = arith.constant 0.000000e+00 : f32
    %568 = vector.broadcast %cst_423 : f32 to vector<8x128xf32>
    %569 = vector.broadcast %cst_424 : f32 to vector<8x128xf32>
    %570 = arith.select %567, %568, %569 : vector<8x128xi1>, vector<8x128xf32>
    %c0_425 = arith.constant 0 : index
    %c5_426 = arith.constant 5 : index
    %c0_427 = arith.constant 0 : index
    %c0_428 = arith.constant 0 : index
    %571 = vector.load %arg3[%c0_425, %c5_426, %c0_427, %c0_428] : memref<1x15x8x128xf32, #tpu.memory_space<vmem>>, vector<1x1x8x128xf32>
    %572 = vector.shape_cast %571 : vector<1x1x8x128xf32> to vector<8x128xf32>
    %573 = arith.maximumf %572, %570 : vector<8x128xf32>
    %c0_429 = arith.constant 0 : index
    %c5_430 = arith.constant 5 : index
    %c0_431 = arith.constant 0 : index
    %c0_432 = arith.constant 0 : index
    %574 = vector.load %arg3[%c0_429, %c5_430, %c0_431, %c0_432] : memref<1x15x8x128xf32, #tpu.memory_space<vmem>>, vector<1x1x8x128xf32>
    %575 = vector.shape_cast %574 : vector<1x1x8x128xf32> to vector<8x128xf32>
    %576 = vector.shape_cast %573 : vector<8x128xf32> to vector<1x1x8x128xf32>
    tpu.vector_store %arg3[%c0_429, %c5_430, %c0_431, %c0_432], %576 {strides = array<i32>} : memref<1x15x8x128xf32, #tpu.memory_space<vmem>>, vector<1x1x8x128xf32>,
    %c10_433 = arith.constant 10 : index
    %c0_434 = arith.constant 0 : index
    %c0_435 = arith.constant 0 : index
    %c0_436 = arith.constant 0 : index
    %c0_437 = arith.constant 0 : index
    %577 = vector.load %arg2[%c10_433, %c0_434, %c0_435, %c0_436, %c0_437] : memref<21x3x1x8x128xf32, #tpu.memory_space<vmem>>, vector<1x1x1x8x128xf32>
    %578 = vector.shape_cast %577 : vector<1x1x1x8x128xf32> to vector<8x128xf32>
    %c10_438 = arith.constant 10 : index
    %c1_439 = arith.constant 1 : index
    %c0_440 = arith.constant 0 : index
    %c0_441 = arith.constant 0 : index
    %c0_442 = arith.constant 0 : index
    %579 = vector.load %arg2[%c10_438, %c1_439, %c0_440, %c0_441, %c0_442] : memref<21x3x1x8x128xf32, #tpu.memory_space<vmem>>, vector<1x1x1x8x128xf32>
    %580 = vector.shape_cast %579 : vector<1x1x1x8x128xf32> to vector<8x128xf32>
    %c10_443 = arith.constant 10 : index
    %c2_444 = arith.constant 2 : index
    %c0_445 = arith.constant 0 : index
    %c0_446 = arith.constant 0 : index
    %c0_447 = arith.constant 0 : index
    %581 = vector.load %arg2[%c10_443, %c2_444, %c0_445, %c0_446, %c0_447] : memref<21x3x1x8x128xf32, #tpu.memory_space<vmem>>, vector<1x1x1x8x128xf32>
    %582 = vector.shape_cast %581 : vector<1x1x1x8x128xf32> to vector<8x128xf32>
    %583 = arith.subf %578, %4 : vector<8x128xf32>
    %584 = arith.subf %580, %6 : vector<8x128xf32>
    %585 = arith.subf %582, %8 : vector<8x128xf32>
    %c7 = arith.constant 7 : index
    %c0_448 = arith.constant 0 : index
    %c0_449 = arith.constant 0 : index
    %c0_450 = arith.constant 0 : index
    %c0_451 = arith.constant 0 : index
    %586 = vector.load %arg2[%c7, %c0_448, %c0_449, %c0_450, %c0_451] : memref<21x3x1x8x128xf32, #tpu.memory_space<vmem>>, vector<1x1x1x8x128xf32>
    %587 = vector.shape_cast %586 : vector<1x1x1x8x128xf32> to vector<8x128xf32>
    %c7_452 = arith.constant 7 : index
    %c1_453 = arith.constant 1 : index
    %c0_454 = arith.constant 0 : index
    %c0_455 = arith.constant 0 : index
    %c0_456 = arith.constant 0 : index
    %588 = vector.load %arg2[%c7_452, %c1_453, %c0_454, %c0_455, %c0_456] : memref<21x3x1x8x128xf32, #tpu.memory_space<vmem>>, vector<1x1x1x8x128xf32>
    %589 = vector.shape_cast %588 : vector<1x1x1x8x128xf32> to vector<8x128xf32>
    %c7_457 = arith.constant 7 : index
    %c2_458 = arith.constant 2 : index
    %c0_459 = arith.constant 0 : index
    %c0_460 = arith.constant 0 : index
    %c0_461 = arith.constant 0 : index
    %590 = vector.load %arg2[%c7_457, %c2_458, %c0_459, %c0_460, %c0_461] : memref<21x3x1x8x128xf32, #tpu.memory_space<vmem>>, vector<1x1x1x8x128xf32>
    %591 = vector.shape_cast %590 : vector<1x1x1x8x128xf32> to vector<8x128xf32>
    %592 = arith.subf %587, %4 : vector<8x128xf32>
    %593 = arith.subf %589, %6 : vector<8x128xf32>
    %594 = arith.subf %591, %8 : vector<8x128xf32>
    %595 = arith.mulf %584, %594 : vector<8x128xf32>
    %596 = arith.mulf %585, %593 : vector<8x128xf32>
    %597 = arith.subf %595, %596 : vector<8x128xf32>
    %598 = arith.mulf %585, %592 : vector<8x128xf32>
    %599 = arith.mulf %583, %594 : vector<8x128xf32>
    %600 = arith.subf %598, %599 : vector<8x128xf32>
    %601 = arith.mulf %583, %593 : vector<8x128xf32>
    %602 = arith.mulf %584, %592 : vector<8x128xf32>
    %603 = arith.subf %601, %602 : vector<8x128xf32>
    %c10_462 = arith.constant 10 : index
    %c0_463 = arith.constant 0 : index
    %c0_464 = arith.constant 0 : index
    %c0_465 = arith.constant 0 : index
    %c0_466 = arith.constant 0 : index
    %604 = vector.load %arg2[%c10_462, %c0_463, %c0_464, %c0_465, %c0_466] : memref<21x3x1x8x128xf32, #tpu.memory_space<vmem>>, vector<1x1x1x8x128xf32>
    %605 = vector.shape_cast %604 : vector<1x1x1x8x128xf32> to vector<8x128xf32>
    %c10_467 = arith.constant 10 : index
    %c1_468 = arith.constant 1 : index
    %c0_469 = arith.constant 0 : index
    %c0_470 = arith.constant 0 : index
    %c0_471 = arith.constant 0 : index
    %606 = vector.load %arg2[%c10_467, %c1_468, %c0_469, %c0_470, %c0_471] : memref<21x3x1x8x128xf32, #tpu.memory_space<vmem>>, vector<1x1x1x8x128xf32>
    %607 = vector.shape_cast %606 : vector<1x1x1x8x128xf32> to vector<8x128xf32>
    %c10_472 = arith.constant 10 : index
    %c2_473 = arith.constant 2 : index
    %c0_474 = arith.constant 0 : index
    %c0_475 = arith.constant 0 : index
    %c0_476 = arith.constant 0 : index
    %608 = vector.load %arg2[%c10_472, %c2_473, %c0_474, %c0_475, %c0_476] : memref<21x3x1x8x128xf32, #tpu.memory_space<vmem>>, vector<1x1x1x8x128xf32>
    %609 = vector.shape_cast %608 : vector<1x1x1x8x128xf32> to vector<8x128xf32>
    %610 = arith.subf %605, %4 : vector<8x128xf32>
    %611 = arith.subf %607, %6 : vector<8x128xf32>
    %612 = arith.subf %609, %8 : vector<8x128xf32>
    %613 = arith.mulf %600, %612 : vector<8x128xf32>
    %614 = arith.mulf %603, %611 : vector<8x128xf32>
    %615 = arith.subf %613, %614 : vector<8x128xf32>
    %616 = arith.mulf %603, %610 : vector<8x128xf32>
    %617 = arith.mulf %597, %612 : vector<8x128xf32>
    %618 = arith.subf %616, %617 : vector<8x128xf32>
    %619 = arith.mulf %597, %611 : vector<8x128xf32>
    %620 = arith.mulf %600, %610 : vector<8x128xf32>
    %621 = arith.subf %619, %620 : vector<8x128xf32>
    %622 = arith.mulf %615, %615 : vector<8x128xf32>
    %623 = arith.mulf %618, %618 : vector<8x128xf32>
    %624 = arith.addf %622, %623 : vector<8x128xf32>
    %625 = arith.mulf %621, %621 : vector<8x128xf32>
    %626 = arith.addf %624, %625 : vector<8x128xf32>
    %627 = math.sqrt %626 : vector<8x128xf32>
    %cst_477 = arith.constant 9.99999997E-7 : f32
    %628 = vector.broadcast %cst_477 : f32 to vector<8x128xf32>
    %629 = arith.addf %627, %628 : vector<8x128xf32>
    %cst_478 = arith.constant 1.000000e+00 : f32
    %630 = vector.broadcast %cst_478 : f32 to vector<8x128xf32>
    %631 = arith.divf %630, %629 : vector<8x128xf32>
    %632 = arith.mulf %615, %631 : vector<8x128xf32>
    %633 = arith.mulf %618, %631 : vector<8x128xf32>
    %634 = arith.mulf %621, %631 : vector<8x128xf32>
    %c7_479 = arith.constant 7 : index
    %c0_480 = arith.constant 0 : index
    %c0_481 = arith.constant 0 : index
    %c0_482 = arith.constant 0 : index
    %c0_483 = arith.constant 0 : index
    %635 = vector.load %arg2[%c7_479, %c0_480, %c0_481, %c0_482, %c0_483] : memref<21x3x1x8x128xf32, #tpu.memory_space<vmem>>, vector<1x1x1x8x128xf32>
    %636 = vector.shape_cast %635 : vector<1x1x1x8x128xf32> to vector<8x128xf32>
    %c7_484 = arith.constant 7 : index
    %c1_485 = arith.constant 1 : index
    %c0_486 = arith.constant 0 : index
    %c0_487 = arith.constant 0 : index
    %c0_488 = arith.constant 0 : index
    %637 = vector.load %arg2[%c7_484, %c1_485, %c0_486, %c0_487, %c0_488] : memref<21x3x1x8x128xf32, #tpu.memory_space<vmem>>, vector<1x1x1x8x128xf32>
    %638 = vector.shape_cast %637 : vector<1x1x1x8x128xf32> to vector<8x128xf32>
    %c7_489 = arith.constant 7 : index
    %c2_490 = arith.constant 2 : index
    %c0_491 = arith.constant 0 : index
    %c0_492 = arith.constant 0 : index
    %c0_493 = arith.constant 0 : index
    %639 = vector.load %arg2[%c7_489, %c2_490, %c0_491, %c0_492, %c0_493] : memref<21x3x1x8x128xf32, #tpu.memory_space<vmem>>, vector<1x1x1x8x128xf32>
    %640 = vector.shape_cast %639 : vector<1x1x1x8x128xf32> to vector<8x128xf32>
    %c0_494 = arith.constant 0 : index
    %c0_495 = arith.constant 0 : index
    %c0_496 = arith.constant 0 : index
    %c0_497 = arith.constant 0 : index
    %c0_498 = arith.constant 0 : index
    %641 = vector.load %arg2[%c0_494, %c0_495, %c0_496, %c0_497, %c0_498] : memref<21x3x1x8x128xf32, #tpu.memory_space<vmem>>, vector<1x1x1x8x128xf32>
    %642 = vector.shape_cast %641 : vector<1x1x1x8x128xf32> to vector<8x128xf32>
    %c0_499 = arith.constant 0 : index
    %c1_500 = arith.constant 1 : index
    %c0_501 = arith.constant 0 : index
    %c0_502 = arith.constant 0 : index
    %c0_503 = arith.constant 0 : index
    %643 = vector.load %arg2[%c0_499, %c1_500, %c0_501, %c0_502, %c0_503] : memref<21x3x1x8x128xf32, #tpu.memory_space<vmem>>, vector<1x1x1x8x128xf32>
    %644 = vector.shape_cast %643 : vector<1x1x1x8x128xf32> to vector<8x128xf32>
    %c0_504 = arith.constant 0 : index
    %c2_505 = arith.constant 2 : index
    %c0_506 = arith.constant 0 : index
    %c0_507 = arith.constant 0 : index
    %c0_508 = arith.constant 0 : index
    %645 = vector.load %arg2[%c0_504, %c2_505, %c0_506, %c0_507, %c0_508] : memref<21x3x1x8x128xf32, #tpu.memory_space<vmem>>, vector<1x1x1x8x128xf32>
    %646 = vector.shape_cast %645 : vector<1x1x1x8x128xf32> to vector<8x128xf32>
    %647 = arith.subf %636, %642 : vector<8x128xf32>
    %648 = arith.subf %638, %644 : vector<8x128xf32>
    %649 = arith.subf %640, %646 : vector<8x128xf32>
    %650 = arith.mulf %647, %647 : vector<8x128xf32>
    %651 = arith.mulf %648, %648 : vector<8x128xf32>
    %652 = arith.addf %650, %651 : vector<8x128xf32>
    %653 = arith.mulf %649, %649 : vector<8x128xf32>
    %654 = arith.addf %652, %653 : vector<8x128xf32>
    %655 = math.sqrt %654 : vector<8x128xf32>
    %cst_509 = arith.constant 9.99999997E-7 : f32
    %656 = vector.broadcast %cst_509 : f32 to vector<8x128xf32>
    %657 = arith.addf %655, %656 : vector<8x128xf32>
    %cst_510 = arith.constant 1.000000e+00 : f32
    %658 = vector.broadcast %cst_510 : f32 to vector<8x128xf32>
    %659 = arith.divf %658, %657 : vector<8x128xf32>
    %660 = arith.mulf %647, %659 : vector<8x128xf32>
    %661 = arith.mulf %648, %659 : vector<8x128xf32>
    %662 = arith.mulf %649, %659 : vector<8x128xf32>
    %c8 = arith.constant 8 : index
    %c0_511 = arith.constant 0 : index
    %c0_512 = arith.constant 0 : index
    %c0_513 = arith.constant 0 : index
    %c0_514 = arith.constant 0 : index
    %663 = vector.load %arg2[%c8, %c0_511, %c0_512, %c0_513, %c0_514] : memref<21x3x1x8x128xf32, #tpu.memory_space<vmem>>, vector<1x1x1x8x128xf32>
    %664 = vector.shape_cast %663 : vector<1x1x1x8x128xf32> to vector<8x128xf32>
    %c8_515 = arith.constant 8 : index
    %c1_516 = arith.constant 1 : index
    %c0_517 = arith.constant 0 : index
    %c0_518 = arith.constant 0 : index
    %c0_519 = arith.constant 0 : index
    %665 = vector.load %arg2[%c8_515, %c1_516, %c0_517, %c0_518, %c0_519] : memref<21x3x1x8x128xf32, #tpu.memory_space<vmem>>, vector<1x1x1x8x128xf32>
    %666 = vector.shape_cast %665 : vector<1x1x1x8x128xf32> to vector<8x128xf32>
    %c8_520 = arith.constant 8 : index
    %c2_521 = arith.constant 2 : index
    %c0_522 = arith.constant 0 : index
    %c0_523 = arith.constant 0 : index
    %c0_524 = arith.constant 0 : index
    %667 = vector.load %arg2[%c8_520, %c2_521, %c0_522, %c0_523, %c0_524] : memref<21x3x1x8x128xf32, #tpu.memory_space<vmem>>, vector<1x1x1x8x128xf32>
    %668 = vector.shape_cast %667 : vector<1x1x1x8x128xf32> to vector<8x128xf32>
    %c7_525 = arith.constant 7 : index
    %c0_526 = arith.constant 0 : index
    %c0_527 = arith.constant 0 : index
    %c0_528 = arith.constant 0 : index
    %c0_529 = arith.constant 0 : index
    %669 = vector.load %arg2[%c7_525, %c0_526, %c0_527, %c0_528, %c0_529] : memref<21x3x1x8x128xf32, #tpu.memory_space<vmem>>, vector<1x1x1x8x128xf32>
    %670 = vector.shape_cast %669 : vector<1x1x1x8x128xf32> to vector<8x128xf32>
    %c7_530 = arith.constant 7 : index
    %c1_531 = arith.constant 1 : index
    %c0_532 = arith.constant 0 : index
    %c0_533 = arith.constant 0 : index
    %c0_534 = arith.constant 0 : index
    %671 = vector.load %arg2[%c7_530, %c1_531, %c0_532, %c0_533, %c0_534] : memref<21x3x1x8x128xf32, #tpu.memory_space<vmem>>, vector<1x1x1x8x128xf32>
    %672 = vector.shape_cast %671 : vector<1x1x1x8x128xf32> to vector<8x128xf32>
    %c7_535 = arith.constant 7 : index
    %c2_536 = arith.constant 2 : index
    %c0_537 = arith.constant 0 : index
    %c0_538 = arith.constant 0 : index
    %c0_539 = arith.constant 0 : index
    %673 = vector.load %arg2[%c7_535, %c2_536, %c0_537, %c0_538, %c0_539] : memref<21x3x1x8x128xf32, #tpu.memory_space<vmem>>, vector<1x1x1x8x128xf32>
    %674 = vector.shape_cast %673 : vector<1x1x1x8x128xf32> to vector<8x128xf32>
    %675 = arith.subf %664, %670 : vector<8x128xf32>
    %676 = arith.subf %666, %672 : vector<8x128xf32>
    %677 = arith.subf %668, %674 : vector<8x128xf32>
    %678 = arith.mulf %675, %675 : vector<8x128xf32>
    %679 = arith.mulf %676, %676 : vector<8x128xf32>
    %680 = arith.addf %678, %679 : vector<8x128xf32>
    %681 = arith.mulf %677, %677 : vector<8x128xf32>
    %682 = arith.addf %680, %681 : vector<8x128xf32>
    %683 = math.sqrt %682 : vector<8x128xf32>
    %cst_540 = arith.constant 9.99999997E-7 : f32
    %684 = vector.broadcast %cst_540 : f32 to vector<8x128xf32>
    %685 = arith.addf %683, %684 : vector<8x128xf32>
    %cst_541 = arith.constant 1.000000e+00 : f32
    %686 = vector.broadcast %cst_541 : f32 to vector<8x128xf32>
    %687 = arith.divf %686, %685 : vector<8x128xf32>
    %688 = arith.mulf %675, %687 : vector<8x128xf32>
    %689 = arith.mulf %676, %687 : vector<8x128xf32>
    %690 = arith.mulf %677, %687 : vector<8x128xf32>
    %c9 = arith.constant 9 : index
    %c0_542 = arith.constant 0 : index
    %c0_543 = arith.constant 0 : index
    %c0_544 = arith.constant 0 : index
    %c0_545 = arith.constant 0 : index
    %691 = vector.load %arg2[%c9, %c0_542, %c0_543, %c0_544, %c0_545] : memref<21x3x1x8x128xf32, #tpu.memory_space<vmem>>, vector<1x1x1x8x128xf32>
    %692 = vector.shape_cast %691 : vector<1x1x1x8x128xf32> to vector<8x128xf32>
    %c9_546 = arith.constant 9 : index
    %c1_547 = arith.constant 1 : index
    %c0_548 = arith.constant 0 : index
    %c0_549 = arith.constant 0 : index
    %c0_550 = arith.constant 0 : index
    %693 = vector.load %arg2[%c9_546, %c1_547, %c0_548, %c0_549, %c0_550] : memref<21x3x1x8x128xf32, #tpu.memory_space<vmem>>, vector<1x1x1x8x128xf32>
    %694 = vector.shape_cast %693 : vector<1x1x1x8x128xf32> to vector<8x128xf32>
    %c9_551 = arith.constant 9 : index
    %c2_552 = arith.constant 2 : index
    %c0_553 = arith.constant 0 : index
    %c0_554 = arith.constant 0 : index
    %c0_555 = arith.constant 0 : index
    %695 = vector.load %arg2[%c9_551, %c2_552, %c0_553, %c0_554, %c0_555] : memref<21x3x1x8x128xf32, #tpu.memory_space<vmem>>, vector<1x1x1x8x128xf32>
    %696 = vector.shape_cast %695 : vector<1x1x1x8x128xf32> to vector<8x128xf32>
    %c8_556 = arith.constant 8 : index
    %c0_557 = arith.constant 0 : index
    %c0_558 = arith.constant 0 : index
    %c0_559 = arith.constant 0 : index
    %c0_560 = arith.constant 0 : index
    %697 = vector.load %arg2[%c8_556, %c0_557, %c0_558, %c0_559, %c0_560] : memref<21x3x1x8x128xf32, #tpu.memory_space<vmem>>, vector<1x1x1x8x128xf32>
    %698 = vector.shape_cast %697 : vector<1x1x1x8x128xf32> to vector<8x128xf32>
    %c8_561 = arith.constant 8 : index
    %c1_562 = arith.constant 1 : index
    %c0_563 = arith.constant 0 : index
    %c0_564 = arith.constant 0 : index
    %c0_565 = arith.constant 0 : index
    %699 = vector.load %arg2[%c8_561, %c1_562, %c0_563, %c0_564, %c0_565] : memref<21x3x1x8x128xf32, #tpu.memory_space<vmem>>, vector<1x1x1x8x128xf32>
    %700 = vector.shape_cast %699 : vector<1x1x1x8x128xf32> to vector<8x128xf32>
    %c8_566 = arith.constant 8 : index
    %c2_567 = arith.constant 2 : index
    %c0_568 = arith.constant 0 : index
    %c0_569 = arith.constant 0 : index
    %c0_570 = arith.constant 0 : index
    %701 = vector.load %arg2[%c8_566, %c2_567, %c0_568, %c0_569, %c0_570] : memref<21x3x1x8x128xf32, #tpu.memory_space<vmem>>, vector<1x1x1x8x128xf32>
    %702 = vector.shape_cast %701 : vector<1x1x1x8x128xf32> to vector<8x128xf32>
    %703 = arith.subf %692, %698 : vector<8x128xf32>
    %704 = arith.subf %694, %700 : vector<8x128xf32>
    %705 = arith.subf %696, %702 : vector<8x128xf32>
    %706 = arith.mulf %703, %703 : vector<8x128xf32>
    %707 = arith.mulf %704, %704 : vector<8x128xf32>
    %708 = arith.addf %706, %707 : vector<8x128xf32>
    %709 = arith.mulf %705, %705 : vector<8x128xf32>
    %710 = arith.addf %708, %709 : vector<8x128xf32>
    %711 = math.sqrt %710 : vector<8x128xf32>
    %cst_571 = arith.constant 9.99999997E-7 : f32
    %712 = vector.broadcast %cst_571 : f32 to vector<8x128xf32>
    %713 = arith.addf %711, %712 : vector<8x128xf32>
    %cst_572 = arith.constant 1.000000e+00 : f32
    %714 = vector.broadcast %cst_572 : f32 to vector<8x128xf32>
    %715 = arith.divf %714, %713 : vector<8x128xf32>
    %716 = arith.mulf %703, %715 : vector<8x128xf32>
    %717 = arith.mulf %704, %715 : vector<8x128xf32>
    %718 = arith.mulf %705, %715 : vector<8x128xf32>
    %c20 = arith.constant 20 : index
    %c0_573 = arith.constant 0 : index
    %c0_574 = arith.constant 0 : index
    %c0_575 = arith.constant 0 : index
    %c0_576 = arith.constant 0 : index
    %719 = vector.load %arg2[%c20, %c0_573, %c0_574, %c0_575, %c0_576] : memref<21x3x1x8x128xf32, #tpu.memory_space<vmem>>, vector<1x1x1x8x128xf32>
    %720 = vector.shape_cast %719 : vector<1x1x1x8x128xf32> to vector<8x128xf32>
    %c20_577 = arith.constant 20 : index
    %c1_578 = arith.constant 1 : index
    %c0_579 = arith.constant 0 : index
    %c0_580 = arith.constant 0 : index
    %c0_581 = arith.constant 0 : index
    %721 = vector.load %arg2[%c20_577, %c1_578, %c0_579, %c0_580, %c0_581] : memref<21x3x1x8x128xf32, #tpu.memory_space<vmem>>, vector<1x1x1x8x128xf32>
    %722 = vector.shape_cast %721 : vector<1x1x1x8x128xf32> to vector<8x128xf32>
    %c20_582 = arith.constant 20 : index
    %c2_583 = arith.constant 2 : index
    %c0_584 = arith.constant 0 : index
    %c0_585 = arith.constant 0 : index
    %c0_586 = arith.constant 0 : index
    %723 = vector.load %arg2[%c20_582, %c2_583, %c0_584, %c0_585, %c0_586] : memref<21x3x1x8x128xf32, #tpu.memory_space<vmem>>, vector<1x1x1x8x128xf32>
    %724 = vector.shape_cast %723 : vector<1x1x1x8x128xf32> to vector<8x128xf32>
    %c9_587 = arith.constant 9 : index
    %c0_588 = arith.constant 0 : index
    %c0_589 = arith.constant 0 : index
    %c0_590 = arith.constant 0 : index
    %c0_591 = arith.constant 0 : index
    %725 = vector.load %arg2[%c9_587, %c0_588, %c0_589, %c0_590, %c0_591] : memref<21x3x1x8x128xf32, #tpu.memory_space<vmem>>, vector<1x1x1x8x128xf32>
    %726 = vector.shape_cast %725 : vector<1x1x1x8x128xf32> to vector<8x128xf32>
    %c9_592 = arith.constant 9 : index
    %c1_593 = arith.constant 1 : index
    %c0_594 = arith.constant 0 : index
    %c0_595 = arith.constant 0 : index
    %c0_596 = arith.constant 0 : index
    %727 = vector.load %arg2[%c9_592, %c1_593, %c0_594, %c0_595, %c0_596] : memref<21x3x1x8x128xf32, #tpu.memory_space<vmem>>, vector<1x1x1x8x128xf32>
    %728 = vector.shape_cast %727 : vector<1x1x1x8x128xf32> to vector<8x128xf32>
    %c9_597 = arith.constant 9 : index
    %c2_598 = arith.constant 2 : index
    %c0_599 = arith.constant 0 : index
    %c0_600 = arith.constant 0 : index
    %c0_601 = arith.constant 0 : index
    %729 = vector.load %arg2[%c9_597, %c2_598, %c0_599, %c0_600, %c0_601] : memref<21x3x1x8x128xf32, #tpu.memory_space<vmem>>, vector<1x1x1x8x128xf32>
    %730 = vector.shape_cast %729 : vector<1x1x1x8x128xf32> to vector<8x128xf32>
    %731 = arith.subf %720, %726 : vector<8x128xf32>
    %732 = arith.subf %722, %728 : vector<8x128xf32>
    %733 = arith.subf %724, %730 : vector<8x128xf32>
    %734 = arith.mulf %731, %731 : vector<8x128xf32>
    %735 = arith.mulf %732, %732 : vector<8x128xf32>
    %736 = arith.addf %734, %735 : vector<8x128xf32>
    %737 = arith.mulf %733, %733 : vector<8x128xf32>
    %738 = arith.addf %736, %737 : vector<8x128xf32>
    %739 = math.sqrt %738 : vector<8x128xf32>
    %cst_602 = arith.constant 9.99999997E-7 : f32
    %740 = vector.broadcast %cst_602 : f32 to vector<8x128xf32>
    %741 = arith.addf %739, %740 : vector<8x128xf32>
    %cst_603 = arith.constant 1.000000e+00 : f32
    %742 = vector.broadcast %cst_603 : f32 to vector<8x128xf32>
    %743 = arith.divf %742, %741 : vector<8x128xf32>
    %744 = arith.mulf %731, %743 : vector<8x128xf32>
    %745 = arith.mulf %732, %743 : vector<8x128xf32>
    %746 = arith.mulf %733, %743 : vector<8x128xf32>
    %747 = arith.mulf %661, %690 : vector<8x128xf32>
    %748 = arith.mulf %662, %689 : vector<8x128xf32>
    %749 = arith.subf %747, %748 : vector<8x128xf32>
    %750 = arith.mulf %662, %688 : vector<8x128xf32>
    %751 = arith.mulf %660, %690 : vector<8x128xf32>
    %752 = arith.subf %750, %751 : vector<8x128xf32>
    %753 = arith.mulf %660, %689 : vector<8x128xf32>
    %754 = arith.mulf %661, %688 : vector<8x128xf32>
    %755 = arith.subf %753, %754 : vector<8x128xf32>
    %756 = arith.mulf %749, %749 : vector<8x128xf32>
    %757 = arith.mulf %752, %752 : vector<8x128xf32>
    %758 = arith.addf %756, %757 : vector<8x128xf32>
    %759 = arith.mulf %755, %755 : vector<8x128xf32>
    %760 = arith.addf %758, %759 : vector<8x128xf32>
    %761 = math.sqrt %760 : vector<8x128xf32>
    %cst_604 = arith.constant 9.99999997E-7 : f32
    %762 = vector.broadcast %cst_604 : f32 to vector<8x128xf32>
    %763 = arith.addf %761, %762 : vector<8x128xf32>
    %cst_605 = arith.constant 1.000000e+00 : f32
    %764 = vector.broadcast %cst_605 : f32 to vector<8x128xf32>
    %765 = arith.divf %764, %763 : vector<8x128xf32>
    %766 = arith.mulf %749, %765 : vector<8x128xf32>
    %767 = arith.mulf %752, %765 : vector<8x128xf32>
    %768 = arith.mulf %755, %765 : vector<8x128xf32>
    %769 = arith.mulf %766, %632 : vector<8x128xf32>
    %770 = arith.mulf %767, %633 : vector<8x128xf32>
    %771 = arith.addf %769, %770 : vector<8x128xf32>
    %772 = arith.mulf %768, %634 : vector<8x128xf32>
    %773 = arith.addf %771, %772 : vector<8x128xf32>
    %cst_606 = arith.constant 0.000000e+00 : f32
    %774 = vector.broadcast %cst_606 : f32 to vector<8x128xf32>
    %775 = arith.cmpf olt, %773, %774 : vector<8x128xf32>
    %cst_607 = arith.constant 1.000000e+00 : f32
    %cst_608 = arith.constant 0.000000e+00 : f32
    %776 = vector.broadcast %cst_607 : f32 to vector<8x128xf32>
    %777 = vector.broadcast %cst_608 : f32 to vector<8x128xf32>
    %778 = arith.select %775, %776, %777 : vector<8x128xi1>, vector<8x128xf32>
    %c0_609 = arith.constant 0 : index
    %c6_610 = arith.constant 6 : index
    %c0_611 = arith.constant 0 : index
    %c0_612 = arith.constant 0 : index
    %779 = vector.load %arg3[%c0_609, %c6_610, %c0_611, %c0_612] : memref<1x15x8x128xf32, #tpu.memory_space<vmem>>, vector<1x1x8x128xf32>
    %780 = vector.shape_cast %779 : vector<1x1x8x128xf32> to vector<8x128xf32>
    %781 = arith.maximumf %780, %778 : vector<8x128xf32>
    %c0_613 = arith.constant 0 : index
    %c6_614 = arith.constant 6 : index
    %c0_615 = arith.constant 0 : index
    %c0_616 = arith.constant 0 : index
    %782 = vector.load %arg3[%c0_613, %c6_614, %c0_615, %c0_616] : memref<1x15x8x128xf32, #tpu.memory_space<vmem>>, vector<1x1x8x128xf32>
    %783 = vector.shape_cast %782 : vector<1x1x8x128xf32> to vector<8x128xf32>
    %784 = vector.shape_cast %781 : vector<8x128xf32> to vector<1x1x8x128xf32>
    tpu.vector_store %arg3[%c0_613, %c6_614, %c0_615, %c0_616], %784 {strides = array<i32>} : memref<1x15x8x128xf32, #tpu.memory_space<vmem>>, vector<1x1x8x128xf32>,
    %785 = arith.mulf %689, %718 : vector<8x128xf32>
    %786 = arith.mulf %690, %717 : vector<8x128xf32>
    %787 = arith.subf %785, %786 : vector<8x128xf32>
    %788 = arith.mulf %690, %716 : vector<8x128xf32>
    %789 = arith.mulf %688, %718 : vector<8x128xf32>
    %790 = arith.subf %788, %789 : vector<8x128xf32>
    %791 = arith.mulf %688, %717 : vector<8x128xf32>
    %792 = arith.mulf %689, %716 : vector<8x128xf32>
    %793 = arith.subf %791, %792 : vector<8x128xf32>
    %794 = arith.mulf %787, %787 : vector<8x128xf32>
    %795 = arith.mulf %790, %790 : vector<8x128xf32>
    %796 = arith.addf %794, %795 : vector<8x128xf32>
    %797 = arith.mulf %793, %793 : vector<8x128xf32>
    %798 = arith.addf %796, %797 : vector<8x128xf32>
    %799 = math.sqrt %798 : vector<8x128xf32>
    %cst_617 = arith.constant 9.99999997E-7 : f32
    %800 = vector.broadcast %cst_617 : f32 to vector<8x128xf32>
    %801 = arith.addf %799, %800 : vector<8x128xf32>
    %cst_618 = arith.constant 1.000000e+00 : f32
    %802 = vector.broadcast %cst_618 : f32 to vector<8x128xf32>
    %803 = arith.divf %802, %801 : vector<8x128xf32>
    %804 = arith.mulf %787, %803 : vector<8x128xf32>
    %805 = arith.mulf %790, %803 : vector<8x128xf32>
    %806 = arith.mulf %793, %803 : vector<8x128xf32>
    %807 = arith.mulf %804, %632 : vector<8x128xf32>
    %808 = arith.mulf %805, %633 : vector<8x128xf32>
    %809 = arith.addf %807, %808 : vector<8x128xf32>
    %810 = arith.mulf %806, %634 : vector<8x128xf32>
    %811 = arith.addf %809, %810 : vector<8x128xf32>
    %cst_619 = arith.constant 0.000000e+00 : f32
    %812 = vector.broadcast %cst_619 : f32 to vector<8x128xf32>
    %813 = arith.cmpf olt, %811, %812 : vector<8x128xf32>
    %cst_620 = arith.constant 1.000000e+00 : f32
    %cst_621 = arith.constant 0.000000e+00 : f32
    %814 = vector.broadcast %cst_620 : f32 to vector<8x128xf32>
    %815 = vector.broadcast %cst_621 : f32 to vector<8x128xf32>
    %816 = arith.select %813, %814, %815 : vector<8x128xi1>, vector<8x128xf32>
    %c0_622 = arith.constant 0 : index
    %c7_623 = arith.constant 7 : index
    %c0_624 = arith.constant 0 : index
    %c0_625 = arith.constant 0 : index
    %817 = vector.load %arg3[%c0_622, %c7_623, %c0_624, %c0_625] : memref<1x15x8x128xf32, #tpu.memory_space<vmem>>, vector<1x1x8x128xf32>
    %818 = vector.shape_cast %817 : vector<1x1x8x128xf32> to vector<8x128xf32>
    %819 = arith.maximumf %818, %816 : vector<8x128xf32>
    %c0_626 = arith.constant 0 : index
    %c7_627 = arith.constant 7 : index
    %c0_628 = arith.constant 0 : index
    %c0_629 = arith.constant 0 : index
    %820 = vector.load %arg3[%c0_626, %c7_627, %c0_628, %c0_629] : memref<1x15x8x128xf32, #tpu.memory_space<vmem>>, vector<1x1x8x128xf32>
    %821 = vector.shape_cast %820 : vector<1x1x8x128xf32> to vector<8x128xf32>
    %822 = vector.shape_cast %819 : vector<8x128xf32> to vector<1x1x8x128xf32>
    tpu.vector_store %arg3[%c0_626, %c7_627, %c0_628, %c0_629], %822 {strides = array<i32>} : memref<1x15x8x128xf32, #tpu.memory_space<vmem>>, vector<1x1x8x128xf32>,
    %823 = arith.mulf %717, %746 : vector<8x128xf32>
    %824 = arith.mulf %718, %745 : vector<8x128xf32>
    %825 = arith.subf %823, %824 : vector<8x128xf32>
    %826 = arith.mulf %718, %744 : vector<8x128xf32>
    %827 = arith.mulf %716, %746 : vector<8x128xf32>
    %828 = arith.subf %826, %827 : vector<8x128xf32>
    %829 = arith.mulf %716, %745 : vector<8x128xf32>
    %830 = arith.mulf %717, %744 : vector<8x128xf32>
    %831 = arith.subf %829, %830 : vector<8x128xf32>
    %832 = arith.mulf %825, %825 : vector<8x128xf32>
    %833 = arith.mulf %828, %828 : vector<8x128xf32>
    %834 = arith.addf %832, %833 : vector<8x128xf32>
    %835 = arith.mulf %831, %831 : vector<8x128xf32>
    %836 = arith.addf %834, %835 : vector<8x128xf32>
    %837 = math.sqrt %836 : vector<8x128xf32>
    %cst_630 = arith.constant 9.99999997E-7 : f32
    %838 = vector.broadcast %cst_630 : f32 to vector<8x128xf32>
    %839 = arith.addf %837, %838 : vector<8x128xf32>
    %cst_631 = arith.constant 1.000000e+00 : f32
    %840 = vector.broadcast %cst_631 : f32 to vector<8x128xf32>
    %841 = arith.divf %840, %839 : vector<8x128xf32>
    %842 = arith.mulf %825, %841 : vector<8x128xf32>
    %843 = arith.mulf %828, %841 : vector<8x128xf32>
    %844 = arith.mulf %831, %841 : vector<8x128xf32>
    %845 = arith.mulf %842, %632 : vector<8x128xf32>
    %846 = arith.mulf %843, %633 : vector<8x128xf32>
    %847 = arith.addf %845, %846 : vector<8x128xf32>
    %848 = arith.mulf %844, %634 : vector<8x128xf32>
    %849 = arith.addf %847, %848 : vector<8x128xf32>
    %cst_632 = arith.constant 0.000000e+00 : f32
    %850 = vector.broadcast %cst_632 : f32 to vector<8x128xf32>
    %851 = arith.cmpf olt, %849, %850 : vector<8x128xf32>
    %cst_633 = arith.constant 1.000000e+00 : f32
    %cst_634 = arith.constant 0.000000e+00 : f32
    %852 = vector.broadcast %cst_633 : f32 to vector<8x128xf32>
    %853 = vector.broadcast %cst_634 : f32 to vector<8x128xf32>
    %854 = arith.select %851, %852, %853 : vector<8x128xi1>, vector<8x128xf32>
    %c0_635 = arith.constant 0 : index
    %c8_636 = arith.constant 8 : index
    %c0_637 = arith.constant 0 : index
    %c0_638 = arith.constant 0 : index
    %855 = vector.load %arg3[%c0_635, %c8_636, %c0_637, %c0_638] : memref<1x15x8x128xf32, #tpu.memory_space<vmem>>, vector<1x1x8x128xf32>
    %856 = vector.shape_cast %855 : vector<1x1x8x128xf32> to vector<8x128xf32>
    %857 = arith.maximumf %856, %854 : vector<8x128xf32>
    %c0_639 = arith.constant 0 : index
    %c8_640 = arith.constant 8 : index
    %c0_641 = arith.constant 0 : index
    %c0_642 = arith.constant 0 : index
    %858 = vector.load %arg3[%c0_639, %c8_640, %c0_641, %c0_642] : memref<1x15x8x128xf32, #tpu.memory_space<vmem>>, vector<1x1x8x128xf32>
    %859 = vector.shape_cast %858 : vector<1x1x8x128xf32> to vector<8x128xf32>
    %860 = vector.shape_cast %857 : vector<8x128xf32> to vector<1x1x8x128xf32>
    tpu.vector_store %arg3[%c0_639, %c8_640, %c0_641, %c0_642], %860 {strides = array<i32>} : memref<1x15x8x128xf32, #tpu.memory_space<vmem>>, vector<1x1x8x128xf32>,
    %c7_643 = arith.constant 7 : index
    %c0_644 = arith.constant 0 : index
    %c0_645 = arith.constant 0 : index
    %c0_646 = arith.constant 0 : index
    %c0_647 = arith.constant 0 : index
    %861 = vector.load %arg2[%c7_643, %c0_644, %c0_645, %c0_646, %c0_647] : memref<21x3x1x8x128xf32, #tpu.memory_space<vmem>>, vector<1x1x1x8x128xf32>
    %862 = vector.shape_cast %861 : vector<1x1x1x8x128xf32> to vector<8x128xf32>
    %c7_648 = arith.constant 7 : index
    %c1_649 = arith.constant 1 : index
    %c0_650 = arith.constant 0 : index
    %c0_651 = arith.constant 0 : index
    %c0_652 = arith.constant 0 : index
    %863 = vector.load %arg2[%c7_648, %c1_649, %c0_650, %c0_651, %c0_652] : memref<21x3x1x8x128xf32, #tpu.memory_space<vmem>>, vector<1x1x1x8x128xf32>
    %864 = vector.shape_cast %863 : vector<1x1x1x8x128xf32> to vector<8x128xf32>
    %c7_653 = arith.constant 7 : index
    %c2_654 = arith.constant 2 : index
    %c0_655 = arith.constant 0 : index
    %c0_656 = arith.constant 0 : index
    %c0_657 = arith.constant 0 : index
    %865 = vector.load %arg2[%c7_653, %c2_654, %c0_655, %c0_656, %c0_657] : memref<21x3x1x8x128xf32, #tpu.memory_space<vmem>>, vector<1x1x1x8x128xf32>
    %866 = vector.shape_cast %865 : vector<1x1x1x8x128xf32> to vector<8x128xf32>
    %867 = arith.subf %862, %4 : vector<8x128xf32>
    %868 = arith.subf %864, %6 : vector<8x128xf32>
    %869 = arith.subf %866, %8 : vector<8x128xf32>
    %c13 = arith.constant 13 : index
    %c0_658 = arith.constant 0 : index
    %c0_659 = arith.constant 0 : index
    %c0_660 = arith.constant 0 : index
    %c0_661 = arith.constant 0 : index
    %870 = vector.load %arg2[%c13, %c0_658, %c0_659, %c0_660, %c0_661] : memref<21x3x1x8x128xf32, #tpu.memory_space<vmem>>, vector<1x1x1x8x128xf32>
    %871 = vector.shape_cast %870 : vector<1x1x1x8x128xf32> to vector<8x128xf32>
    %c13_662 = arith.constant 13 : index
    %c1_663 = arith.constant 1 : index
    %c0_664 = arith.constant 0 : index
    %c0_665 = arith.constant 0 : index
    %c0_666 = arith.constant 0 : index
    %872 = vector.load %arg2[%c13_662, %c1_663, %c0_664, %c0_665, %c0_666] : memref<21x3x1x8x128xf32, #tpu.memory_space<vmem>>, vector<1x1x1x8x128xf32>
    %873 = vector.shape_cast %872 : vector<1x1x1x8x128xf32> to vector<8x128xf32>
    %c13_667 = arith.constant 13 : index
    %c2_668 = arith.constant 2 : index
    %c0_669 = arith.constant 0 : index
    %c0_670 = arith.constant 0 : index
    %c0_671 = arith.constant 0 : index
    %874 = vector.load %arg2[%c13_667, %c2_668, %c0_669, %c0_670, %c0_671] : memref<21x3x1x8x128xf32, #tpu.memory_space<vmem>>, vector<1x1x1x8x128xf32>
    %875 = vector.shape_cast %874 : vector<1x1x1x8x128xf32> to vector<8x128xf32>
    %876 = arith.subf %871, %4 : vector<8x128xf32>
    %877 = arith.subf %873, %6 : vector<8x128xf32>
    %878 = arith.subf %875, %8 : vector<8x128xf32>
    %879 = arith.mulf %868, %878 : vector<8x128xf32>
    %880 = arith.mulf %869, %877 : vector<8x128xf32>
    %881 = arith.subf %879, %880 : vector<8x128xf32>
    %882 = arith.mulf %869, %876 : vector<8x128xf32>
    %883 = arith.mulf %867, %878 : vector<8x128xf32>
    %884 = arith.subf %882, %883 : vector<8x128xf32>
    %885 = arith.mulf %867, %877 : vector<8x128xf32>
    %886 = arith.mulf %868, %876 : vector<8x128xf32>
    %887 = arith.subf %885, %886 : vector<8x128xf32>
    %c7_672 = arith.constant 7 : index
    %c0_673 = arith.constant 0 : index
    %c0_674 = arith.constant 0 : index
    %c0_675 = arith.constant 0 : index
    %c0_676 = arith.constant 0 : index
    %888 = vector.load %arg2[%c7_672, %c0_673, %c0_674, %c0_675, %c0_676] : memref<21x3x1x8x128xf32, #tpu.memory_space<vmem>>, vector<1x1x1x8x128xf32>
    %889 = vector.shape_cast %888 : vector<1x1x1x8x128xf32> to vector<8x128xf32>
    %c7_677 = arith.constant 7 : index
    %c1_678 = arith.constant 1 : index
    %c0_679 = arith.constant 0 : index
    %c0_680 = arith.constant 0 : index
    %c0_681 = arith.constant 0 : index
    %890 = vector.load %arg2[%c7_677, %c1_678, %c0_679, %c0_680, %c0_681] : memref<21x3x1x8x128xf32, #tpu.memory_space<vmem>>, vector<1x1x1x8x128xf32>
    %891 = vector.shape_cast %890 : vector<1x1x1x8x128xf32> to vector<8x128xf32>
    %c7_682 = arith.constant 7 : index
    %c2_683 = arith.constant 2 : index
    %c0_684 = arith.constant 0 : index
    %c0_685 = arith.constant 0 : index
    %c0_686 = arith.constant 0 : index
    %892 = vector.load %arg2[%c7_682, %c2_683, %c0_684, %c0_685, %c0_686] : memref<21x3x1x8x128xf32, #tpu.memory_space<vmem>>, vector<1x1x1x8x128xf32>
    %893 = vector.shape_cast %892 : vector<1x1x1x8x128xf32> to vector<8x128xf32>
    %894 = arith.subf %889, %4 : vector<8x128xf32>
    %895 = arith.subf %891, %6 : vector<8x128xf32>
    %896 = arith.subf %893, %8 : vector<8x128xf32>
    %897 = arith.mulf %884, %896 : vector<8x128xf32>
    %898 = arith.mulf %887, %895 : vector<8x128xf32>
    %899 = arith.subf %897, %898 : vector<8x128xf32>
    %900 = arith.mulf %887, %894 : vector<8x128xf32>
    %901 = arith.mulf %881, %896 : vector<8x128xf32>
    %902 = arith.subf %900, %901 : vector<8x128xf32>
    %903 = arith.mulf %881, %895 : vector<8x128xf32>
    %904 = arith.mulf %884, %894 : vector<8x128xf32>
    %905 = arith.subf %903, %904 : vector<8x128xf32>
    %906 = arith.mulf %899, %899 : vector<8x128xf32>
    %907 = arith.mulf %902, %902 : vector<8x128xf32>
    %908 = arith.addf %906, %907 : vector<8x128xf32>
    %909 = arith.mulf %905, %905 : vector<8x128xf32>
    %910 = arith.addf %908, %909 : vector<8x128xf32>
    %911 = math.sqrt %910 : vector<8x128xf32>
    %cst_687 = arith.constant 9.99999997E-7 : f32
    %912 = vector.broadcast %cst_687 : f32 to vector<8x128xf32>
    %913 = arith.addf %911, %912 : vector<8x128xf32>
    %cst_688 = arith.constant 1.000000e+00 : f32
    %914 = vector.broadcast %cst_688 : f32 to vector<8x128xf32>
    %915 = arith.divf %914, %913 : vector<8x128xf32>
    %916 = arith.mulf %899, %915 : vector<8x128xf32>
    %917 = arith.mulf %902, %915 : vector<8x128xf32>
    %918 = arith.mulf %905, %915 : vector<8x128xf32>
    %c10_689 = arith.constant 10 : index
    %c0_690 = arith.constant 0 : index
    %c0_691 = arith.constant 0 : index
    %c0_692 = arith.constant 0 : index
    %c0_693 = arith.constant 0 : index
    %919 = vector.load %arg2[%c10_689, %c0_690, %c0_691, %c0_692, %c0_693] : memref<21x3x1x8x128xf32, #tpu.memory_space<vmem>>, vector<1x1x1x8x128xf32>
    %920 = vector.shape_cast %919 : vector<1x1x1x8x128xf32> to vector<8x128xf32>
    %c10_694 = arith.constant 10 : index
    %c1_695 = arith.constant 1 : index
    %c0_696 = arith.constant 0 : index
    %c0_697 = arith.constant 0 : index
    %c0_698 = arith.constant 0 : index
    %921 = vector.load %arg2[%c10_694, %c1_695, %c0_696, %c0_697, %c0_698] : memref<21x3x1x8x128xf32, #tpu.memory_space<vmem>>, vector<1x1x1x8x128xf32>
    %922 = vector.shape_cast %921 : vector<1x1x1x8x128xf32> to vector<8x128xf32>
    %c10_699 = arith.constant 10 : index
    %c2_700 = arith.constant 2 : index
    %c0_701 = arith.constant 0 : index
    %c0_702 = arith.constant 0 : index
    %c0_703 = arith.constant 0 : index
    %923 = vector.load %arg2[%c10_699, %c2_700, %c0_701, %c0_702, %c0_703] : memref<21x3x1x8x128xf32, #tpu.memory_space<vmem>>, vector<1x1x1x8x128xf32>
    %924 = vector.shape_cast %923 : vector<1x1x1x8x128xf32> to vector<8x128xf32>
    %c0_704 = arith.constant 0 : index
    %c0_705 = arith.constant 0 : index
    %c0_706 = arith.constant 0 : index
    %c0_707 = arith.constant 0 : index
    %c0_708 = arith.constant 0 : index
    %925 = vector.load %arg2[%c0_704, %c0_705, %c0_706, %c0_707, %c0_708] : memref<21x3x1x8x128xf32, #tpu.memory_space<vmem>>, vector<1x1x1x8x128xf32>
    %926 = vector.shape_cast %925 : vector<1x1x1x8x128xf32> to vector<8x128xf32>
    %c0_709 = arith.constant 0 : index
    %c1_710 = arith.constant 1 : index
    %c0_711 = arith.constant 0 : index
    %c0_712 = arith.constant 0 : index
    %c0_713 = arith.constant 0 : index
    %927 = vector.load %arg2[%c0_709, %c1_710, %c0_711, %c0_712, %c0_713] : memref<21x3x1x8x128xf32, #tpu.memory_space<vmem>>, vector<1x1x1x8x128xf32>
    %928 = vector.shape_cast %927 : vector<1x1x1x8x128xf32> to vector<8x128xf32>
    %c0_714 = arith.constant 0 : index
    %c2_715 = arith.constant 2 : index
    %c0_716 = arith.constant 0 : index
    %c0_717 = arith.constant 0 : index
    %c0_718 = arith.constant 0 : index
    %929 = vector.load %arg2[%c0_714, %c2_715, %c0_716, %c0_717, %c0_718] : memref<21x3x1x8x128xf32, #tpu.memory_space<vmem>>, vector<1x1x1x8x128xf32>
    %930 = vector.shape_cast %929 : vector<1x1x1x8x128xf32> to vector<8x128xf32>
    %931 = arith.subf %920, %926 : vector<8x128xf32>
    %932 = arith.subf %922, %928 : vector<8x128xf32>
    %933 = arith.subf %924, %930 : vector<8x128xf32>
    %934 = arith.mulf %931, %931 : vector<8x128xf32>
    %935 = arith.mulf %932, %932 : vector<8x128xf32>
    %936 = arith.addf %934, %935 : vector<8x128xf32>
    %937 = arith.mulf %933, %933 : vector<8x128xf32>
    %938 = arith.addf %936, %937 : vector<8x128xf32>
    %939 = math.sqrt %938 : vector<8x128xf32>
    %cst_719 = arith.constant 9.99999997E-7 : f32
    %940 = vector.broadcast %cst_719 : f32 to vector<8x128xf32>
    %941 = arith.addf %939, %940 : vector<8x128xf32>
    %cst_720 = arith.constant 1.000000e+00 : f32
    %942 = vector.broadcast %cst_720 : f32 to vector<8x128xf32>
    %943 = arith.divf %942, %941 : vector<8x128xf32>
    %944 = arith.mulf %931, %943 : vector<8x128xf32>
    %945 = arith.mulf %932, %943 : vector<8x128xf32>
    %946 = arith.mulf %933, %943 : vector<8x128xf32>
    %c11 = arith.constant 11 : index
    %c0_721 = arith.constant 0 : index
    %c0_722 = arith.constant 0 : index
    %c0_723 = arith.constant 0 : index
    %c0_724 = arith.constant 0 : index
    %947 = vector.load %arg2[%c11, %c0_721, %c0_722, %c0_723, %c0_724] : memref<21x3x1x8x128xf32, #tpu.memory_space<vmem>>, vector<1x1x1x8x128xf32>
    %948 = vector.shape_cast %947 : vector<1x1x1x8x128xf32> to vector<8x128xf32>
    %c11_725 = arith.constant 11 : index
    %c1_726 = arith.constant 1 : index
    %c0_727 = arith.constant 0 : index
    %c0_728 = arith.constant 0 : index
    %c0_729 = arith.constant 0 : index
    %949 = vector.load %arg2[%c11_725, %c1_726, %c0_727, %c0_728, %c0_729] : memref<21x3x1x8x128xf32, #tpu.memory_space<vmem>>, vector<1x1x1x8x128xf32>
    %950 = vector.shape_cast %949 : vector<1x1x1x8x128xf32> to vector<8x128xf32>
    %c11_730 = arith.constant 11 : index
    %c2_731 = arith.constant 2 : index
    %c0_732 = arith.constant 0 : index
    %c0_733 = arith.constant 0 : index
    %c0_734 = arith.constant 0 : index
    %951 = vector.load %arg2[%c11_730, %c2_731, %c0_732, %c0_733, %c0_734] : memref<21x3x1x8x128xf32, #tpu.memory_space<vmem>>, vector<1x1x1x8x128xf32>
    %952 = vector.shape_cast %951 : vector<1x1x1x8x128xf32> to vector<8x128xf32>
    %c10_735 = arith.constant 10 : index
    %c0_736 = arith.constant 0 : index
    %c0_737 = arith.constant 0 : index
    %c0_738 = arith.constant 0 : index
    %c0_739 = arith.constant 0 : index
    %953 = vector.load %arg2[%c10_735, %c0_736, %c0_737, %c0_738, %c0_739] : memref<21x3x1x8x128xf32, #tpu.memory_space<vmem>>, vector<1x1x1x8x128xf32>
    %954 = vector.shape_cast %953 : vector<1x1x1x8x128xf32> to vector<8x128xf32>
    %c10_740 = arith.constant 10 : index
    %c1_741 = arith.constant 1 : index
    %c0_742 = arith.constant 0 : index
    %c0_743 = arith.constant 0 : index
    %c0_744 = arith.constant 0 : index
    %955 = vector.load %arg2[%c10_740, %c1_741, %c0_742, %c0_743, %c0_744] : memref<21x3x1x8x128xf32, #tpu.memory_space<vmem>>, vector<1x1x1x8x128xf32>
    %956 = vector.shape_cast %955 : vector<1x1x1x8x128xf32> to vector<8x128xf32>
    %c10_745 = arith.constant 10 : index
    %c2_746 = arith.constant 2 : index
    %c0_747 = arith.constant 0 : index
    %c0_748 = arith.constant 0 : index
    %c0_749 = arith.constant 0 : index
    %957 = vector.load %arg2[%c10_745, %c2_746, %c0_747, %c0_748, %c0_749] : memref<21x3x1x8x128xf32, #tpu.memory_space<vmem>>, vector<1x1x1x8x128xf32>
    %958 = vector.shape_cast %957 : vector<1x1x1x8x128xf32> to vector<8x128xf32>
    %959 = arith.subf %948, %954 : vector<8x128xf32>
    %960 = arith.subf %950, %956 : vector<8x128xf32>
    %961 = arith.subf %952, %958 : vector<8x128xf32>
    %962 = arith.mulf %959, %959 : vector<8x128xf32>
    %963 = arith.mulf %960, %960 : vector<8x128xf32>
    %964 = arith.addf %962, %963 : vector<8x128xf32>
    %965 = arith.mulf %961, %961 : vector<8x128xf32>
    %966 = arith.addf %964, %965 : vector<8x128xf32>
    %967 = math.sqrt %966 : vector<8x128xf32>
    %cst_750 = arith.constant 9.99999997E-7 : f32
    %968 = vector.broadcast %cst_750 : f32 to vector<8x128xf32>
    %969 = arith.addf %967, %968 : vector<8x128xf32>
    %cst_751 = arith.constant 1.000000e+00 : f32
    %970 = vector.broadcast %cst_751 : f32 to vector<8x128xf32>
    %971 = arith.divf %970, %969 : vector<8x128xf32>
    %972 = arith.mulf %959, %971 : vector<8x128xf32>
    %973 = arith.mulf %960, %971 : vector<8x128xf32>
    %974 = arith.mulf %961, %971 : vector<8x128xf32>
    %c12 = arith.constant 12 : index
    %c0_752 = arith.constant 0 : index
    %c0_753 = arith.constant 0 : index
    %c0_754 = arith.constant 0 : index
    %c0_755 = arith.constant 0 : index
    %975 = vector.load %arg2[%c12, %c0_752, %c0_753, %c0_754, %c0_755] : memref<21x3x1x8x128xf32, #tpu.memory_space<vmem>>, vector<1x1x1x8x128xf32>
    %976 = vector.shape_cast %975 : vector<1x1x1x8x128xf32> to vector<8x128xf32>
    %c12_756 = arith.constant 12 : index
    %c1_757 = arith.constant 1 : index
    %c0_758 = arith.constant 0 : index
    %c0_759 = arith.constant 0 : index
    %c0_760 = arith.constant 0 : index
    %977 = vector.load %arg2[%c12_756, %c1_757, %c0_758, %c0_759, %c0_760] : memref<21x3x1x8x128xf32, #tpu.memory_space<vmem>>, vector<1x1x1x8x128xf32>
    %978 = vector.shape_cast %977 : vector<1x1x1x8x128xf32> to vector<8x128xf32>
    %c12_761 = arith.constant 12 : index
    %c2_762 = arith.constant 2 : index
    %c0_763 = arith.constant 0 : index
    %c0_764 = arith.constant 0 : index
    %c0_765 = arith.constant 0 : index
    %979 = vector.load %arg2[%c12_761, %c2_762, %c0_763, %c0_764, %c0_765] : memref<21x3x1x8x128xf32, #tpu.memory_space<vmem>>, vector<1x1x1x8x128xf32>
    %980 = vector.shape_cast %979 : vector<1x1x1x8x128xf32> to vector<8x128xf32>
    %c11_766 = arith.constant 11 : index
    %c0_767 = arith.constant 0 : index
    %c0_768 = arith.constant 0 : index
    %c0_769 = arith.constant 0 : index
    %c0_770 = arith.constant 0 : index
    %981 = vector.load %arg2[%c11_766, %c0_767, %c0_768, %c0_769, %c0_770] : memref<21x3x1x8x128xf32, #tpu.memory_space<vmem>>, vector<1x1x1x8x128xf32>
    %982 = vector.shape_cast %981 : vector<1x1x1x8x128xf32> to vector<8x128xf32>
    %c11_771 = arith.constant 11 : index
    %c1_772 = arith.constant 1 : index
    %c0_773 = arith.constant 0 : index
    %c0_774 = arith.constant 0 : index
    %c0_775 = arith.constant 0 : index
    %983 = vector.load %arg2[%c11_771, %c1_772, %c0_773, %c0_774, %c0_775] : memref<21x3x1x8x128xf32, #tpu.memory_space<vmem>>, vector<1x1x1x8x128xf32>
    %984 = vector.shape_cast %983 : vector<1x1x1x8x128xf32> to vector<8x128xf32>
    %c11_776 = arith.constant 11 : index
    %c2_777 = arith.constant 2 : index
    %c0_778 = arith.constant 0 : index
    %c0_779 = arith.constant 0 : index
    %c0_780 = arith.constant 0 : index
    %985 = vector.load %arg2[%c11_776, %c2_777, %c0_778, %c0_779, %c0_780] : memref<21x3x1x8x128xf32, #tpu.memory_space<vmem>>, vector<1x1x1x8x128xf32>
    %986 = vector.shape_cast %985 : vector<1x1x1x8x128xf32> to vector<8x128xf32>
    %987 = arith.subf %976, %982 : vector<8x128xf32>
    %988 = arith.subf %978, %984 : vector<8x128xf32>
    %989 = arith.subf %980, %986 : vector<8x128xf32>
    %990 = arith.mulf %987, %987 : vector<8x128xf32>
    %991 = arith.mulf %988, %988 : vector<8x128xf32>
    %992 = arith.addf %990, %991 : vector<8x128xf32>
    %993 = arith.mulf %989, %989 : vector<8x128xf32>
    %994 = arith.addf %992, %993 : vector<8x128xf32>
    %995 = math.sqrt %994 : vector<8x128xf32>
    %cst_781 = arith.constant 9.99999997E-7 : f32
    %996 = vector.broadcast %cst_781 : f32 to vector<8x128xf32>
    %997 = arith.addf %995, %996 : vector<8x128xf32>
    %cst_782 = arith.constant 1.000000e+00 : f32
    %998 = vector.broadcast %cst_782 : f32 to vector<8x128xf32>
    %999 = arith.divf %998, %997 : vector<8x128xf32>
    %1000 = arith.mulf %987, %999 : vector<8x128xf32>
    %1001 = arith.mulf %988, %999 : vector<8x128xf32>
    %1002 = arith.mulf %989, %999 : vector<8x128xf32>
    %c19 = arith.constant 19 : index
    %c0_783 = arith.constant 0 : index
    %c0_784 = arith.constant 0 : index
    %c0_785 = arith.constant 0 : index
    %c0_786 = arith.constant 0 : index
    %1003 = vector.load %arg2[%c19, %c0_783, %c0_784, %c0_785, %c0_786] : memref<21x3x1x8x128xf32, #tpu.memory_space<vmem>>, vector<1x1x1x8x128xf32>
    %1004 = vector.shape_cast %1003 : vector<1x1x1x8x128xf32> to vector<8x128xf32>
    %c19_787 = arith.constant 19 : index
    %c1_788 = arith.constant 1 : index
    %c0_789 = arith.constant 0 : index
    %c0_790 = arith.constant 0 : index
    %c0_791 = arith.constant 0 : index
    %1005 = vector.load %arg2[%c19_787, %c1_788, %c0_789, %c0_790, %c0_791] : memref<21x3x1x8x128xf32, #tpu.memory_space<vmem>>, vector<1x1x1x8x128xf32>
    %1006 = vector.shape_cast %1005 : vector<1x1x1x8x128xf32> to vector<8x128xf32>
    %c19_792 = arith.constant 19 : index
    %c2_793 = arith.constant 2 : index
    %c0_794 = arith.constant 0 : index
    %c0_795 = arith.constant 0 : index
    %c0_796 = arith.constant 0 : index
    %1007 = vector.load %arg2[%c19_792, %c2_793, %c0_794, %c0_795, %c0_796] : memref<21x3x1x8x128xf32, #tpu.memory_space<vmem>>, vector<1x1x1x8x128xf32>
    %1008 = vector.shape_cast %1007 : vector<1x1x1x8x128xf32> to vector<8x128xf32>
    %c12_797 = arith.constant 12 : index
    %c0_798 = arith.constant 0 : index
    %c0_799 = arith.constant 0 : index
    %c0_800 = arith.constant 0 : index
    %c0_801 = arith.constant 0 : index
    %1009 = vector.load %arg2[%c12_797, %c0_798, %c0_799, %c0_800, %c0_801] : memref<21x3x1x8x128xf32, #tpu.memory_space<vmem>>, vector<1x1x1x8x128xf32>
    %1010 = vector.shape_cast %1009 : vector<1x1x1x8x128xf32> to vector<8x128xf32>
    %c12_802 = arith.constant 12 : index
    %c1_803 = arith.constant 1 : index
    %c0_804 = arith.constant 0 : index
    %c0_805 = arith.constant 0 : index
    %c0_806 = arith.constant 0 : index
    %1011 = vector.load %arg2[%c12_802, %c1_803, %c0_804, %c0_805, %c0_806] : memref<21x3x1x8x128xf32, #tpu.memory_space<vmem>>, vector<1x1x1x8x128xf32>
    %1012 = vector.shape_cast %1011 : vector<1x1x1x8x128xf32> to vector<8x128xf32>
    %c12_807 = arith.constant 12 : index
    %c2_808 = arith.constant 2 : index
    %c0_809 = arith.constant 0 : index
    %c0_810 = arith.constant 0 : index
    %c0_811 = arith.constant 0 : index
    %1013 = vector.load %arg2[%c12_807, %c2_808, %c0_809, %c0_810, %c0_811] : memref<21x3x1x8x128xf32, #tpu.memory_space<vmem>>, vector<1x1x1x8x128xf32>
    %1014 = vector.shape_cast %1013 : vector<1x1x1x8x128xf32> to vector<8x128xf32>
    %1015 = arith.subf %1004, %1010 : vector<8x128xf32>
    %1016 = arith.subf %1006, %1012 : vector<8x128xf32>
    %1017 = arith.subf %1008, %1014 : vector<8x128xf32>
    %1018 = arith.mulf %1015, %1015 : vector<8x128xf32>
    %1019 = arith.mulf %1016, %1016 : vector<8x128xf32>
    %1020 = arith.addf %1018, %1019 : vector<8x128xf32>
    %1021 = arith.mulf %1017, %1017 : vector<8x128xf32>
    %1022 = arith.addf %1020, %1021 : vector<8x128xf32>
    %1023 = math.sqrt %1022 : vector<8x128xf32>
    %cst_812 = arith.constant 9.99999997E-7 : f32
    %1024 = vector.broadcast %cst_812 : f32 to vector<8x128xf32>
    %1025 = arith.addf %1023, %1024 : vector<8x128xf32>
    %cst_813 = arith.constant 1.000000e+00 : f32
    %1026 = vector.broadcast %cst_813 : f32 to vector<8x128xf32>
    %1027 = arith.divf %1026, %1025 : vector<8x128xf32>
    %1028 = arith.mulf %1015, %1027 : vector<8x128xf32>
    %1029 = arith.mulf %1016, %1027 : vector<8x128xf32>
    %1030 = arith.mulf %1017, %1027 : vector<8x128xf32>
    %1031 = arith.mulf %945, %974 : vector<8x128xf32>
    %1032 = arith.mulf %946, %973 : vector<8x128xf32>
    %1033 = arith.subf %1031, %1032 : vector<8x128xf32>
    %1034 = arith.mulf %946, %972 : vector<8x128xf32>
    %1035 = arith.mulf %944, %974 : vector<8x128xf32>
    %1036 = arith.subf %1034, %1035 : vector<8x128xf32>
    %1037 = arith.mulf %944, %973 : vector<8x128xf32>
    %1038 = arith.mulf %945, %972 : vector<8x128xf32>
    %1039 = arith.subf %1037, %1038 : vector<8x128xf32>
    %1040 = arith.mulf %1033, %1033 : vector<8x128xf32>
    %1041 = arith.mulf %1036, %1036 : vector<8x128xf32>
    %1042 = arith.addf %1040, %1041 : vector<8x128xf32>
    %1043 = arith.mulf %1039, %1039 : vector<8x128xf32>
    %1044 = arith.addf %1042, %1043 : vector<8x128xf32>
    %1045 = math.sqrt %1044 : vector<8x128xf32>
    %cst_814 = arith.constant 9.99999997E-7 : f32
    %1046 = vector.broadcast %cst_814 : f32 to vector<8x128xf32>
    %1047 = arith.addf %1045, %1046 : vector<8x128xf32>
    %cst_815 = arith.constant 1.000000e+00 : f32
    %1048 = vector.broadcast %cst_815 : f32 to vector<8x128xf32>
    %1049 = arith.divf %1048, %1047 : vector<8x128xf32>
    %1050 = arith.mulf %1033, %1049 : vector<8x128xf32>
    %1051 = arith.mulf %1036, %1049 : vector<8x128xf32>
    %1052 = arith.mulf %1039, %1049 : vector<8x128xf32>
    %1053 = arith.mulf %1050, %916 : vector<8x128xf32>
    %1054 = arith.mulf %1051, %917 : vector<8x128xf32>
    %1055 = arith.addf %1053, %1054 : vector<8x128xf32>
    %1056 = arith.mulf %1052, %918 : vector<8x128xf32>
    %1057 = arith.addf %1055, %1056 : vector<8x128xf32>
    %cst_816 = arith.constant 0.000000e+00 : f32
    %1058 = vector.broadcast %cst_816 : f32 to vector<8x128xf32>
    %1059 = arith.cmpf olt, %1057, %1058 : vector<8x128xf32>
    %cst_817 = arith.constant 1.000000e+00 : f32
    %cst_818 = arith.constant 0.000000e+00 : f32
    %1060 = vector.broadcast %cst_817 : f32 to vector<8x128xf32>
    %1061 = vector.broadcast %cst_818 : f32 to vector<8x128xf32>
    %1062 = arith.select %1059, %1060, %1061 : vector<8x128xi1>, vector<8x128xf32>
    %c0_819 = arith.constant 0 : index
    %c9_820 = arith.constant 9 : index
    %c0_821 = arith.constant 0 : index
    %c0_822 = arith.constant 0 : index
    %1063 = vector.load %arg3[%c0_819, %c9_820, %c0_821, %c0_822] : memref<1x15x8x128xf32, #tpu.memory_space<vmem>>, vector<1x1x8x128xf32>
    %1064 = vector.shape_cast %1063 : vector<1x1x8x128xf32> to vector<8x128xf32>
    %1065 = arith.maximumf %1064, %1062 : vector<8x128xf32>
    %c0_823 = arith.constant 0 : index
    %c9_824 = arith.constant 9 : index
    %c0_825 = arith.constant 0 : index
    %c0_826 = arith.constant 0 : index
    %1066 = vector.load %arg3[%c0_823, %c9_824, %c0_825, %c0_826] : memref<1x15x8x128xf32, #tpu.memory_space<vmem>>, vector<1x1x8x128xf32>
    %1067 = vector.shape_cast %1066 : vector<1x1x8x128xf32> to vector<8x128xf32>
    %1068 = vector.shape_cast %1065 : vector<8x128xf32> to vector<1x1x8x128xf32>
    tpu.vector_store %arg3[%c0_823, %c9_824, %c0_825, %c0_826], %1068 {strides = array<i32>} : memref<1x15x8x128xf32, #tpu.memory_space<vmem>>, vector<1x1x8x128xf32>,
    %1069 = arith.mulf %973, %1002 : vector<8x128xf32>
    %1070 = arith.mulf %974, %1001 : vector<8x128xf32>
    %1071 = arith.subf %1069, %1070 : vector<8x128xf32>
    %1072 = arith.mulf %974, %1000 : vector<8x128xf32>
    %1073 = arith.mulf %972, %1002 : vector<8x128xf32>
    %1074 = arith.subf %1072, %1073 : vector<8x128xf32>
    %1075 = arith.mulf %972, %1001 : vector<8x128xf32>
    %1076 = arith.mulf %973, %1000 : vector<8x128xf32>
    %1077 = arith.subf %1075, %1076 : vector<8x128xf32>
    %1078 = arith.mulf %1071, %1071 : vector<8x128xf32>
    %1079 = arith.mulf %1074, %1074 : vector<8x128xf32>
    %1080 = arith.addf %1078, %1079 : vector<8x128xf32>
    %1081 = arith.mulf %1077, %1077 : vector<8x128xf32>
    %1082 = arith.addf %1080, %1081 : vector<8x128xf32>
    %1083 = math.sqrt %1082 : vector<8x128xf32>
    %cst_827 = arith.constant 9.99999997E-7 : f32
    %1084 = vector.broadcast %cst_827 : f32 to vector<8x128xf32>
    %1085 = arith.addf %1083, %1084 : vector<8x128xf32>
    %cst_828 = arith.constant 1.000000e+00 : f32
    %1086 = vector.broadcast %cst_828 : f32 to vector<8x128xf32>
    %1087 = arith.divf %1086, %1085 : vector<8x128xf32>
    %1088 = arith.mulf %1071, %1087 : vector<8x128xf32>
    %1089 = arith.mulf %1074, %1087 : vector<8x128xf32>
    %1090 = arith.mulf %1077, %1087 : vector<8x128xf32>
    %1091 = arith.mulf %1088, %916 : vector<8x128xf32>
    %1092 = arith.mulf %1089, %917 : vector<8x128xf32>
    %1093 = arith.addf %1091, %1092 : vector<8x128xf32>
    %1094 = arith.mulf %1090, %918 : vector<8x128xf32>
    %1095 = arith.addf %1093, %1094 : vector<8x128xf32>
    %cst_829 = arith.constant 0.000000e+00 : f32
    %1096 = vector.broadcast %cst_829 : f32 to vector<8x128xf32>
    %1097 = arith.cmpf olt, %1095, %1096 : vector<8x128xf32>
    %cst_830 = arith.constant 1.000000e+00 : f32
    %cst_831 = arith.constant 0.000000e+00 : f32
    %1098 = vector.broadcast %cst_830 : f32 to vector<8x128xf32>
    %1099 = vector.broadcast %cst_831 : f32 to vector<8x128xf32>
    %1100 = arith.select %1097, %1098, %1099 : vector<8x128xi1>, vector<8x128xf32>
    %c0_832 = arith.constant 0 : index
    %c10_833 = arith.constant 10 : index
    %c0_834 = arith.constant 0 : index
    %c0_835 = arith.constant 0 : index
    %1101 = vector.load %arg3[%c0_832, %c10_833, %c0_834, %c0_835] : memref<1x15x8x128xf32, #tpu.memory_space<vmem>>, vector<1x1x8x128xf32>
    %1102 = vector.shape_cast %1101 : vector<1x1x8x128xf32> to vector<8x128xf32>
    %1103 = arith.maximumf %1102, %1100 : vector<8x128xf32>
    %c0_836 = arith.constant 0 : index
    %c10_837 = arith.constant 10 : index
    %c0_838 = arith.constant 0 : index
    %c0_839 = arith.constant 0 : index
    %1104 = vector.load %arg3[%c0_836, %c10_837, %c0_838, %c0_839] : memref<1x15x8x128xf32, #tpu.memory_space<vmem>>, vector<1x1x8x128xf32>
    %1105 = vector.shape_cast %1104 : vector<1x1x8x128xf32> to vector<8x128xf32>
    %1106 = vector.shape_cast %1103 : vector<8x128xf32> to vector<1x1x8x128xf32>
    tpu.vector_store %arg3[%c0_836, %c10_837, %c0_838, %c0_839], %1106 {strides = array<i32>} : memref<1x15x8x128xf32, #tpu.memory_space<vmem>>, vector<1x1x8x128xf32>,
    %1107 = arith.mulf %1001, %1030 : vector<8x128xf32>
    %1108 = arith.mulf %1002, %1029 : vector<8x128xf32>
    %1109 = arith.subf %1107, %1108 : vector<8x128xf32>
    %1110 = arith.mulf %1002, %1028 : vector<8x128xf32>
    %1111 = arith.mulf %1000, %1030 : vector<8x128xf32>
    %1112 = arith.subf %1110, %1111 : vector<8x128xf32>
    %1113 = arith.mulf %1000, %1029 : vector<8x128xf32>
    %1114 = arith.mulf %1001, %1028 : vector<8x128xf32>
    %1115 = arith.subf %1113, %1114 : vector<8x128xf32>
    %1116 = arith.mulf %1109, %1109 : vector<8x128xf32>
    %1117 = arith.mulf %1112, %1112 : vector<8x128xf32>
    %1118 = arith.addf %1116, %1117 : vector<8x128xf32>
    %1119 = arith.mulf %1115, %1115 : vector<8x128xf32>
    %1120 = arith.addf %1118, %1119 : vector<8x128xf32>
    %1121 = math.sqrt %1120 : vector<8x128xf32>
    %cst_840 = arith.constant 9.99999997E-7 : f32
    %1122 = vector.broadcast %cst_840 : f32 to vector<8x128xf32>
    %1123 = arith.addf %1121, %1122 : vector<8x128xf32>
    %cst_841 = arith.constant 1.000000e+00 : f32
    %1124 = vector.broadcast %cst_841 : f32 to vector<8x128xf32>
    %1125 = arith.divf %1124, %1123 : vector<8x128xf32>
    %1126 = arith.mulf %1109, %1125 : vector<8x128xf32>
    %1127 = arith.mulf %1112, %1125 : vector<8x128xf32>
    %1128 = arith.mulf %1115, %1125 : vector<8x128xf32>
    %1129 = arith.mulf %1126, %916 : vector<8x128xf32>
    %1130 = arith.mulf %1127, %917 : vector<8x128xf32>
    %1131 = arith.addf %1129, %1130 : vector<8x128xf32>
    %1132 = arith.mulf %1128, %918 : vector<8x128xf32>
    %1133 = arith.addf %1131, %1132 : vector<8x128xf32>
    %cst_842 = arith.constant 0.000000e+00 : f32
    %1134 = vector.broadcast %cst_842 : f32 to vector<8x128xf32>
    %1135 = arith.cmpf olt, %1133, %1134 : vector<8x128xf32>
    %cst_843 = arith.constant 1.000000e+00 : f32
    %cst_844 = arith.constant 0.000000e+00 : f32
    %1136 = vector.broadcast %cst_843 : f32 to vector<8x128xf32>
    %1137 = vector.broadcast %cst_844 : f32 to vector<8x128xf32>
    %1138 = arith.select %1135, %1136, %1137 : vector<8x128xi1>, vector<8x128xf32>
    %c0_845 = arith.constant 0 : index
    %c11_846 = arith.constant 11 : index
    %c0_847 = arith.constant 0 : index
    %c0_848 = arith.constant 0 : index
    %1139 = vector.load %arg3[%c0_845, %c11_846, %c0_847, %c0_848] : memref<1x15x8x128xf32, #tpu.memory_space<vmem>>, vector<1x1x8x128xf32>
    %1140 = vector.shape_cast %1139 : vector<1x1x8x128xf32> to vector<8x128xf32>
    %1141 = arith.maximumf %1140, %1138 : vector<8x128xf32>
    %c0_849 = arith.constant 0 : index
    %c11_850 = arith.constant 11 : index
    %c0_851 = arith.constant 0 : index
    %c0_852 = arith.constant 0 : index
    %1142 = vector.load %arg3[%c0_849, %c11_850, %c0_851, %c0_852] : memref<1x15x8x128xf32, #tpu.memory_space<vmem>>, vector<1x1x8x128xf32>
    %1143 = vector.shape_cast %1142 : vector<1x1x8x128xf32> to vector<8x128xf32>
    %1144 = vector.shape_cast %1141 : vector<8x128xf32> to vector<1x1x8x128xf32>
    tpu.vector_store %arg3[%c0_849, %c11_850, %c0_851, %c0_852], %1144 {strides = array<i32>} : memref<1x15x8x128xf32, #tpu.memory_space<vmem>>, vector<1x1x8x128xf32>,
    %c13_853 = arith.constant 13 : index
    %c0_854 = arith.constant 0 : index
    %c0_855 = arith.constant 0 : index
    %c0_856 = arith.constant 0 : index
    %c0_857 = arith.constant 0 : index
    %1145 = vector.load %arg2[%c13_853, %c0_854, %c0_855, %c0_856, %c0_857] : memref<21x3x1x8x128xf32, #tpu.memory_space<vmem>>, vector<1x1x1x8x128xf32>
    %1146 = vector.shape_cast %1145 : vector<1x1x1x8x128xf32> to vector<8x128xf32>
    %c13_858 = arith.constant 13 : index
    %c1_859 = arith.constant 1 : index
    %c0_860 = arith.constant 0 : index
    %c0_861 = arith.constant 0 : index
    %c0_862 = arith.constant 0 : index
    %1147 = vector.load %arg2[%c13_858, %c1_859, %c0_860, %c0_861, %c0_862] : memref<21x3x1x8x128xf32, #tpu.memory_space<vmem>>, vector<1x1x1x8x128xf32>
    %1148 = vector.shape_cast %1147 : vector<1x1x1x8x128xf32> to vector<8x128xf32>
    %c13_863 = arith.constant 13 : index
    %c2_864 = arith.constant 2 : index
    %c0_865 = arith.constant 0 : index
    %c0_866 = arith.constant 0 : index
    %c0_867 = arith.constant 0 : index
    %1149 = vector.load %arg2[%c13_863, %c2_864, %c0_865, %c0_866, %c0_867] : memref<21x3x1x8x128xf32, #tpu.memory_space<vmem>>, vector<1x1x1x8x128xf32>
    %1150 = vector.shape_cast %1149 : vector<1x1x1x8x128xf32> to vector<8x128xf32>
    %1151 = arith.subf %1146, %4 : vector<8x128xf32>
    %1152 = arith.subf %1148, %6 : vector<8x128xf32>
    %1153 = arith.subf %1150, %8 : vector<8x128xf32>
    %c1_868 = arith.constant 1 : index
    %c0_869 = arith.constant 0 : index
    %c0_870 = arith.constant 0 : index
    %c0_871 = arith.constant 0 : index
    %c0_872 = arith.constant 0 : index
    %1154 = vector.load %arg2[%c1_868, %c0_869, %c0_870, %c0_871, %c0_872] : memref<21x3x1x8x128xf32, #tpu.memory_space<vmem>>, vector<1x1x1x8x128xf32>
    %1155 = vector.shape_cast %1154 : vector<1x1x1x8x128xf32> to vector<8x128xf32>
    %c1_873 = arith.constant 1 : index
    %c1_874 = arith.constant 1 : index
    %c0_875 = arith.constant 0 : index
    %c0_876 = arith.constant 0 : index
    %c0_877 = arith.constant 0 : index
    %1156 = vector.load %arg2[%c1_873, %c1_874, %c0_875, %c0_876, %c0_877] : memref<21x3x1x8x128xf32, #tpu.memory_space<vmem>>, vector<1x1x1x8x128xf32>
    %1157 = vector.shape_cast %1156 : vector<1x1x1x8x128xf32> to vector<8x128xf32>
    %c1_878 = arith.constant 1 : index
    %c2_879 = arith.constant 2 : index
    %c0_880 = arith.constant 0 : index
    %c0_881 = arith.constant 0 : index
    %c0_882 = arith.constant 0 : index
    %1158 = vector.load %arg2[%c1_878, %c2_879, %c0_880, %c0_881, %c0_882] : memref<21x3x1x8x128xf32, #tpu.memory_space<vmem>>, vector<1x1x1x8x128xf32>
    %1159 = vector.shape_cast %1158 : vector<1x1x1x8x128xf32> to vector<8x128xf32>
    %1160 = arith.subf %1155, %4 : vector<8x128xf32>
    %1161 = arith.subf %1157, %6 : vector<8x128xf32>
    %1162 = arith.subf %1159, %8 : vector<8x128xf32>
    %1163 = arith.mulf %1152, %1162 : vector<8x128xf32>
    %1164 = arith.mulf %1153, %1161 : vector<8x128xf32>
    %1165 = arith.subf %1163, %1164 : vector<8x128xf32>
    %1166 = arith.mulf %1153, %1160 : vector<8x128xf32>
    %1167 = arith.mulf %1151, %1162 : vector<8x128xf32>
    %1168 = arith.subf %1166, %1167 : vector<8x128xf32>
    %1169 = arith.mulf %1151, %1161 : vector<8x128xf32>
    %1170 = arith.mulf %1152, %1160 : vector<8x128xf32>
    %1171 = arith.subf %1169, %1170 : vector<8x128xf32>
    %c13_883 = arith.constant 13 : index
    %c0_884 = arith.constant 0 : index
    %c0_885 = arith.constant 0 : index
    %c0_886 = arith.constant 0 : index
    %c0_887 = arith.constant 0 : index
    %1172 = vector.load %arg2[%c13_883, %c0_884, %c0_885, %c0_886, %c0_887] : memref<21x3x1x8x128xf32, #tpu.memory_space<vmem>>, vector<1x1x1x8x128xf32>
    %1173 = vector.shape_cast %1172 : vector<1x1x1x8x128xf32> to vector<8x128xf32>
    %c13_888 = arith.constant 13 : index
    %c1_889 = arith.constant 1 : index
    %c0_890 = arith.constant 0 : index
    %c0_891 = arith.constant 0 : index
    %c0_892 = arith.constant 0 : index
    %1174 = vector.load %arg2[%c13_888, %c1_889, %c0_890, %c0_891, %c0_892] : memref<21x3x1x8x128xf32, #tpu.memory_space<vmem>>, vector<1x1x1x8x128xf32>
    %1175 = vector.shape_cast %1174 : vector<1x1x1x8x128xf32> to vector<8x128xf32>
    %c13_893 = arith.constant 13 : index
    %c2_894 = arith.constant 2 : index
    %c0_895 = arith.constant 0 : index
    %c0_896 = arith.constant 0 : index
    %c0_897 = arith.constant 0 : index
    %1176 = vector.load %arg2[%c13_893, %c2_894, %c0_895, %c0_896, %c0_897] : memref<21x3x1x8x128xf32, #tpu.memory_space<vmem>>, vector<1x1x1x8x128xf32>
    %1177 = vector.shape_cast %1176 : vector<1x1x1x8x128xf32> to vector<8x128xf32>
    %1178 = arith.subf %1173, %4 : vector<8x128xf32>
    %1179 = arith.subf %1175, %6 : vector<8x128xf32>
    %1180 = arith.subf %1177, %8 : vector<8x128xf32>
    %1181 = arith.mulf %1168, %1180 : vector<8x128xf32>
    %1182 = arith.mulf %1171, %1179 : vector<8x128xf32>
    %1183 = arith.subf %1181, %1182 : vector<8x128xf32>
    %1184 = arith.mulf %1171, %1178 : vector<8x128xf32>
    %1185 = arith.mulf %1165, %1180 : vector<8x128xf32>
    %1186 = arith.subf %1184, %1185 : vector<8x128xf32>
    %1187 = arith.mulf %1165, %1179 : vector<8x128xf32>
    %1188 = arith.mulf %1168, %1178 : vector<8x128xf32>
    %1189 = arith.subf %1187, %1188 : vector<8x128xf32>
    %1190 = arith.mulf %1183, %1183 : vector<8x128xf32>
    %1191 = arith.mulf %1186, %1186 : vector<8x128xf32>
    %1192 = arith.addf %1190, %1191 : vector<8x128xf32>
    %1193 = arith.mulf %1189, %1189 : vector<8x128xf32>
    %1194 = arith.addf %1192, %1193 : vector<8x128xf32>
    %1195 = math.sqrt %1194 : vector<8x128xf32>
    %cst_898 = arith.constant 9.99999997E-7 : f32
    %1196 = vector.broadcast %cst_898 : f32 to vector<8x128xf32>
    %1197 = arith.addf %1195, %1196 : vector<8x128xf32>
    %cst_899 = arith.constant 1.000000e+00 : f32
    %1198 = vector.broadcast %cst_899 : f32 to vector<8x128xf32>
    %1199 = arith.divf %1198, %1197 : vector<8x128xf32>
    %1200 = arith.mulf %1183, %1199 : vector<8x128xf32>
    %1201 = arith.mulf %1186, %1199 : vector<8x128xf32>
    %1202 = arith.mulf %1189, %1199 : vector<8x128xf32>
    %c13_900 = arith.constant 13 : index
    %c0_901 = arith.constant 0 : index
    %c0_902 = arith.constant 0 : index
    %c0_903 = arith.constant 0 : index
    %c0_904 = arith.constant 0 : index
    %1203 = vector.load %arg2[%c13_900, %c0_901, %c0_902, %c0_903, %c0_904] : memref<21x3x1x8x128xf32, #tpu.memory_space<vmem>>, vector<1x1x1x8x128xf32>
    %1204 = vector.shape_cast %1203 : vector<1x1x1x8x128xf32> to vector<8x128xf32>
    %c13_905 = arith.constant 13 : index
    %c1_906 = arith.constant 1 : index
    %c0_907 = arith.constant 0 : index
    %c0_908 = arith.constant 0 : index
    %c0_909 = arith.constant 0 : index
    %1205 = vector.load %arg2[%c13_905, %c1_906, %c0_907, %c0_908, %c0_909] : memref<21x3x1x8x128xf32, #tpu.memory_space<vmem>>, vector<1x1x1x8x128xf32>
    %1206 = vector.shape_cast %1205 : vector<1x1x1x8x128xf32> to vector<8x128xf32>
    %c13_910 = arith.constant 13 : index
    %c2_911 = arith.constant 2 : index
    %c0_912 = arith.constant 0 : index
    %c0_913 = arith.constant 0 : index
    %c0_914 = arith.constant 0 : index
    %1207 = vector.load %arg2[%c13_910, %c2_911, %c0_912, %c0_913, %c0_914] : memref<21x3x1x8x128xf32, #tpu.memory_space<vmem>>, vector<1x1x1x8x128xf32>
    %1208 = vector.shape_cast %1207 : vector<1x1x1x8x128xf32> to vector<8x128xf32>
    %c0_915 = arith.constant 0 : index
    %c0_916 = arith.constant 0 : index
    %c0_917 = arith.constant 0 : index
    %c0_918 = arith.constant 0 : index
    %c0_919 = arith.constant 0 : index
    %1209 = vector.load %arg2[%c0_915, %c0_916, %c0_917, %c0_918, %c0_919] : memref<21x3x1x8x128xf32, #tpu.memory_space<vmem>>, vector<1x1x1x8x128xf32>
    %1210 = vector.shape_cast %1209 : vector<1x1x1x8x128xf32> to vector<8x128xf32>
    %c0_920 = arith.constant 0 : index
    %c1_921 = arith.constant 1 : index
    %c0_922 = arith.constant 0 : index
    %c0_923 = arith.constant 0 : index
    %c0_924 = arith.constant 0 : index
    %1211 = vector.load %arg2[%c0_920, %c1_921, %c0_922, %c0_923, %c0_924] : memref<21x3x1x8x128xf32, #tpu.memory_space<vmem>>, vector<1x1x1x8x128xf32>
    %1212 = vector.shape_cast %1211 : vector<1x1x1x8x128xf32> to vector<8x128xf32>
    %c0_925 = arith.constant 0 : index
    %c2_926 = arith.constant 2 : index
    %c0_927 = arith.constant 0 : index
    %c0_928 = arith.constant 0 : index
    %c0_929 = arith.constant 0 : index
    %1213 = vector.load %arg2[%c0_925, %c2_926, %c0_927, %c0_928, %c0_929] : memref<21x3x1x8x128xf32, #tpu.memory_space<vmem>>, vector<1x1x1x8x128xf32>
    %1214 = vector.shape_cast %1213 : vector<1x1x1x8x128xf32> to vector<8x128xf32>
    %1215 = arith.subf %1204, %1210 : vector<8x128xf32>
    %1216 = arith.subf %1206, %1212 : vector<8x128xf32>
    %1217 = arith.subf %1208, %1214 : vector<8x128xf32>
    %1218 = arith.mulf %1215, %1215 : vector<8x128xf32>
    %1219 = arith.mulf %1216, %1216 : vector<8x128xf32>
    %1220 = arith.addf %1218, %1219 : vector<8x128xf32>
    %1221 = arith.mulf %1217, %1217 : vector<8x128xf32>
    %1222 = arith.addf %1220, %1221 : vector<8x128xf32>
    %1223 = math.sqrt %1222 : vector<8x128xf32>
    %cst_930 = arith.constant 9.99999997E-7 : f32
    %1224 = vector.broadcast %cst_930 : f32 to vector<8x128xf32>
    %1225 = arith.addf %1223, %1224 : vector<8x128xf32>
    %cst_931 = arith.constant 1.000000e+00 : f32
    %1226 = vector.broadcast %cst_931 : f32 to vector<8x128xf32>
    %1227 = arith.divf %1226, %1225 : vector<8x128xf32>
    %1228 = arith.mulf %1215, %1227 : vector<8x128xf32>
    %1229 = arith.mulf %1216, %1227 : vector<8x128xf32>
    %1230 = arith.mulf %1217, %1227 : vector<8x128xf32>
    %c14 = arith.constant 14 : index
    %c0_932 = arith.constant 0 : index
    %c0_933 = arith.constant 0 : index
    %c0_934 = arith.constant 0 : index
    %c0_935 = arith.constant 0 : index
    %1231 = vector.load %arg2[%c14, %c0_932, %c0_933, %c0_934, %c0_935] : memref<21x3x1x8x128xf32, #tpu.memory_space<vmem>>, vector<1x1x1x8x128xf32>
    %1232 = vector.shape_cast %1231 : vector<1x1x1x8x128xf32> to vector<8x128xf32>
    %c14_936 = arith.constant 14 : index
    %c1_937 = arith.constant 1 : index
    %c0_938 = arith.constant 0 : index
    %c0_939 = arith.constant 0 : index
    %c0_940 = arith.constant 0 : index
    %1233 = vector.load %arg2[%c14_936, %c1_937, %c0_938, %c0_939, %c0_940] : memref<21x3x1x8x128xf32, #tpu.memory_space<vmem>>, vector<1x1x1x8x128xf32>
    %1234 = vector.shape_cast %1233 : vector<1x1x1x8x128xf32> to vector<8x128xf32>
    %c14_941 = arith.constant 14 : index
    %c2_942 = arith.constant 2 : index
    %c0_943 = arith.constant 0 : index
    %c0_944 = arith.constant 0 : index
    %c0_945 = arith.constant 0 : index
    %1235 = vector.load %arg2[%c14_941, %c2_942, %c0_943, %c0_944, %c0_945] : memref<21x3x1x8x128xf32, #tpu.memory_space<vmem>>, vector<1x1x1x8x128xf32>
    %1236 = vector.shape_cast %1235 : vector<1x1x1x8x128xf32> to vector<8x128xf32>
    %c13_946 = arith.constant 13 : index
    %c0_947 = arith.constant 0 : index
    %c0_948 = arith.constant 0 : index
    %c0_949 = arith.constant 0 : index
    %c0_950 = arith.constant 0 : index
    %1237 = vector.load %arg2[%c13_946, %c0_947, %c0_948, %c0_949, %c0_950] : memref<21x3x1x8x128xf32, #tpu.memory_space<vmem>>, vector<1x1x1x8x128xf32>
    %1238 = vector.shape_cast %1237 : vector<1x1x1x8x128xf32> to vector<8x128xf32>
    %c13_951 = arith.constant 13 : index
    %c1_952 = arith.constant 1 : index
    %c0_953 = arith.constant 0 : index
    %c0_954 = arith.constant 0 : index
    %c0_955 = arith.constant 0 : index
    %1239 = vector.load %arg2[%c13_951, %c1_952, %c0_953, %c0_954, %c0_955] : memref<21x3x1x8x128xf32, #tpu.memory_space<vmem>>, vector<1x1x1x8x128xf32>
    %1240 = vector.shape_cast %1239 : vector<1x1x1x8x128xf32> to vector<8x128xf32>
    %c13_956 = arith.constant 13 : index
    %c2_957 = arith.constant 2 : index
    %c0_958 = arith.constant 0 : index
    %c0_959 = arith.constant 0 : index
    %c0_960 = arith.constant 0 : index
    %1241 = vector.load %arg2[%c13_956, %c2_957, %c0_958, %c0_959, %c0_960] : memref<21x3x1x8x128xf32, #tpu.memory_space<vmem>>, vector<1x1x1x8x128xf32>
    %1242 = vector.shape_cast %1241 : vector<1x1x1x8x128xf32> to vector<8x128xf32>
    %1243 = arith.subf %1232, %1238 : vector<8x128xf32>
    %1244 = arith.subf %1234, %1240 : vector<8x128xf32>
    %1245 = arith.subf %1236, %1242 : vector<8x128xf32>
    %1246 = arith.mulf %1243, %1243 : vector<8x128xf32>
    %1247 = arith.mulf %1244, %1244 : vector<8x128xf32>
    %1248 = arith.addf %1246, %1247 : vector<8x128xf32>
    %1249 = arith.mulf %1245, %1245 : vector<8x128xf32>
    %1250 = arith.addf %1248, %1249 : vector<8x128xf32>
    %1251 = math.sqrt %1250 : vector<8x128xf32>
    %cst_961 = arith.constant 9.99999997E-7 : f32
    %1252 = vector.broadcast %cst_961 : f32 to vector<8x128xf32>
    %1253 = arith.addf %1251, %1252 : vector<8x128xf32>
    %cst_962 = arith.constant 1.000000e+00 : f32
    %1254 = vector.broadcast %cst_962 : f32 to vector<8x128xf32>
    %1255 = arith.divf %1254, %1253 : vector<8x128xf32>
    %1256 = arith.mulf %1243, %1255 : vector<8x128xf32>
    %1257 = arith.mulf %1244, %1255 : vector<8x128xf32>
    %1258 = arith.mulf %1245, %1255 : vector<8x128xf32>
    %c15 = arith.constant 15 : index
    %c0_963 = arith.constant 0 : index
    %c0_964 = arith.constant 0 : index
    %c0_965 = arith.constant 0 : index
    %c0_966 = arith.constant 0 : index
    %1259 = vector.load %arg2[%c15, %c0_963, %c0_964, %c0_965, %c0_966] : memref<21x3x1x8x128xf32, #tpu.memory_space<vmem>>, vector<1x1x1x8x128xf32>
    %1260 = vector.shape_cast %1259 : vector<1x1x1x8x128xf32> to vector<8x128xf32>
    %c15_967 = arith.constant 15 : index
    %c1_968 = arith.constant 1 : index
    %c0_969 = arith.constant 0 : index
    %c0_970 = arith.constant 0 : index
    %c0_971 = arith.constant 0 : index
    %1261 = vector.load %arg2[%c15_967, %c1_968, %c0_969, %c0_970, %c0_971] : memref<21x3x1x8x128xf32, #tpu.memory_space<vmem>>, vector<1x1x1x8x128xf32>
    %1262 = vector.shape_cast %1261 : vector<1x1x1x8x128xf32> to vector<8x128xf32>
    %c15_972 = arith.constant 15 : index
    %c2_973 = arith.constant 2 : index
    %c0_974 = arith.constant 0 : index
    %c0_975 = arith.constant 0 : index
    %c0_976 = arith.constant 0 : index
    %1263 = vector.load %arg2[%c15_972, %c2_973, %c0_974, %c0_975, %c0_976] : memref<21x3x1x8x128xf32, #tpu.memory_space<vmem>>, vector<1x1x1x8x128xf32>
    %1264 = vector.shape_cast %1263 : vector<1x1x1x8x128xf32> to vector<8x128xf32>
    %c14_977 = arith.constant 14 : index
    %c0_978 = arith.constant 0 : index
    %c0_979 = arith.constant 0 : index
    %c0_980 = arith.constant 0 : index
    %c0_981 = arith.constant 0 : index
    %1265 = vector.load %arg2[%c14_977, %c0_978, %c0_979, %c0_980, %c0_981] : memref<21x3x1x8x128xf32, #tpu.memory_space<vmem>>, vector<1x1x1x8x128xf32>
    %1266 = vector.shape_cast %1265 : vector<1x1x1x8x128xf32> to vector<8x128xf32>
    %c14_982 = arith.constant 14 : index
    %c1_983 = arith.constant 1 : index
    %c0_984 = arith.constant 0 : index
    %c0_985 = arith.constant 0 : index
    %c0_986 = arith.constant 0 : index
    %1267 = vector.load %arg2[%c14_982, %c1_983, %c0_984, %c0_985, %c0_986] : memref<21x3x1x8x128xf32, #tpu.memory_space<vmem>>, vector<1x1x1x8x128xf32>
    %1268 = vector.shape_cast %1267 : vector<1x1x1x8x128xf32> to vector<8x128xf32>
    %c14_987 = arith.constant 14 : index
    %c2_988 = arith.constant 2 : index
    %c0_989 = arith.constant 0 : index
    %c0_990 = arith.constant 0 : index
    %c0_991 = arith.constant 0 : index
    %1269 = vector.load %arg2[%c14_987, %c2_988, %c0_989, %c0_990, %c0_991] : memref<21x3x1x8x128xf32, #tpu.memory_space<vmem>>, vector<1x1x1x8x128xf32>
    %1270 = vector.shape_cast %1269 : vector<1x1x1x8x128xf32> to vector<8x128xf32>
    %1271 = arith.subf %1260, %1266 : vector<8x128xf32>
    %1272 = arith.subf %1262, %1268 : vector<8x128xf32>
    %1273 = arith.subf %1264, %1270 : vector<8x128xf32>
    %1274 = arith.mulf %1271, %1271 : vector<8x128xf32>
    %1275 = arith.mulf %1272, %1272 : vector<8x128xf32>
    %1276 = arith.addf %1274, %1275 : vector<8x128xf32>
    %1277 = arith.mulf %1273, %1273 : vector<8x128xf32>
    %1278 = arith.addf %1276, %1277 : vector<8x128xf32>
    %1279 = math.sqrt %1278 : vector<8x128xf32>
    %cst_992 = arith.constant 9.99999997E-7 : f32
    %1280 = vector.broadcast %cst_992 : f32 to vector<8x128xf32>
    %1281 = arith.addf %1279, %1280 : vector<8x128xf32>
    %cst_993 = arith.constant 1.000000e+00 : f32
    %1282 = vector.broadcast %cst_993 : f32 to vector<8x128xf32>
    %1283 = arith.divf %1282, %1281 : vector<8x128xf32>
    %1284 = arith.mulf %1271, %1283 : vector<8x128xf32>
    %1285 = arith.mulf %1272, %1283 : vector<8x128xf32>
    %1286 = arith.mulf %1273, %1283 : vector<8x128xf32>
    %c16 = arith.constant 16 : index
    %c0_994 = arith.constant 0 : index
    %c0_995 = arith.constant 0 : index
    %c0_996 = arith.constant 0 : index
    %c0_997 = arith.constant 0 : index
    %1287 = vector.load %arg2[%c16, %c0_994, %c0_995, %c0_996, %c0_997] : memref<21x3x1x8x128xf32, #tpu.memory_space<vmem>>, vector<1x1x1x8x128xf32>
    %1288 = vector.shape_cast %1287 : vector<1x1x1x8x128xf32> to vector<8x128xf32>
    %c16_998 = arith.constant 16 : index
    %c1_999 = arith.constant 1 : index
    %c0_1000 = arith.constant 0 : index
    %c0_1001 = arith.constant 0 : index
    %c0_1002 = arith.constant 0 : index
    %1289 = vector.load %arg2[%c16_998, %c1_999, %c0_1000, %c0_1001, %c0_1002] : memref<21x3x1x8x128xf32, #tpu.memory_space<vmem>>, vector<1x1x1x8x128xf32>
    %1290 = vector.shape_cast %1289 : vector<1x1x1x8x128xf32> to vector<8x128xf32>
    %c16_1003 = arith.constant 16 : index
    %c2_1004 = arith.constant 2 : index
    %c0_1005 = arith.constant 0 : index
    %c0_1006 = arith.constant 0 : index
    %c0_1007 = arith.constant 0 : index
    %1291 = vector.load %arg2[%c16_1003, %c2_1004, %c0_1005, %c0_1006, %c0_1007] : memref<21x3x1x8x128xf32, #tpu.memory_space<vmem>>, vector<1x1x1x8x128xf32>
    %1292 = vector.shape_cast %1291 : vector<1x1x1x8x128xf32> to vector<8x128xf32>
    %c15_1008 = arith.constant 15 : index
    %c0_1009 = arith.constant 0 : index
    %c0_1010 = arith.constant 0 : index
    %c0_1011 = arith.constant 0 : index
    %c0_1012 = arith.constant 0 : index
    %1293 = vector.load %arg2[%c15_1008, %c0_1009, %c0_1010, %c0_1011, %c0_1012] : memref<21x3x1x8x128xf32, #tpu.memory_space<vmem>>, vector<1x1x1x8x128xf32>
    %1294 = vector.shape_cast %1293 : vector<1x1x1x8x128xf32> to vector<8x128xf32>
    %c15_1013 = arith.constant 15 : index
    %c1_1014 = arith.constant 1 : index
    %c0_1015 = arith.constant 0 : index
    %c0_1016 = arith.constant 0 : index
    %c0_1017 = arith.constant 0 : index
    %1295 = vector.load %arg2[%c15_1013, %c1_1014, %c0_1015, %c0_1016, %c0_1017] : memref<21x3x1x8x128xf32, #tpu.memory_space<vmem>>, vector<1x1x1x8x128xf32>
    %1296 = vector.shape_cast %1295 : vector<1x1x1x8x128xf32> to vector<8x128xf32>
    %c15_1018 = arith.constant 15 : index
    %c2_1019 = arith.constant 2 : index
    %c0_1020 = arith.constant 0 : index
    %c0_1021 = arith.constant 0 : index
    %c0_1022 = arith.constant 0 : index
    %1297 = vector.load %arg2[%c15_1018, %c2_1019, %c0_1020, %c0_1021, %c0_1022] : memref<21x3x1x8x128xf32, #tpu.memory_space<vmem>>, vector<1x1x1x8x128xf32>
    %1298 = vector.shape_cast %1297 : vector<1x1x1x8x128xf32> to vector<8x128xf32>
    %1299 = arith.subf %1288, %1294 : vector<8x128xf32>
    %1300 = arith.subf %1290, %1296 : vector<8x128xf32>
    %1301 = arith.subf %1292, %1298 : vector<8x128xf32>
    %1302 = arith.mulf %1299, %1299 : vector<8x128xf32>
    %1303 = arith.mulf %1300, %1300 : vector<8x128xf32>
    %1304 = arith.addf %1302, %1303 : vector<8x128xf32>
    %1305 = arith.mulf %1301, %1301 : vector<8x128xf32>
    %1306 = arith.addf %1304, %1305 : vector<8x128xf32>
    %1307 = math.sqrt %1306 : vector<8x128xf32>
    %cst_1023 = arith.constant 9.99999997E-7 : f32
    %1308 = vector.broadcast %cst_1023 : f32 to vector<8x128xf32>
    %1309 = arith.addf %1307, %1308 : vector<8x128xf32>
    %cst_1024 = arith.constant 1.000000e+00 : f32
    %1310 = vector.broadcast %cst_1024 : f32 to vector<8x128xf32>
    %1311 = arith.divf %1310, %1309 : vector<8x128xf32>
    %1312 = arith.mulf %1299, %1311 : vector<8x128xf32>
    %1313 = arith.mulf %1300, %1311 : vector<8x128xf32>
    %1314 = arith.mulf %1301, %1311 : vector<8x128xf32>
    %1315 = arith.mulf %1229, %1258 : vector<8x128xf32>
    %1316 = arith.mulf %1230, %1257 : vector<8x128xf32>
    %1317 = arith.subf %1315, %1316 : vector<8x128xf32>
    %1318 = arith.mulf %1230, %1256 : vector<8x128xf32>
    %1319 = arith.mulf %1228, %1258 : vector<8x128xf32>
    %1320 = arith.subf %1318, %1319 : vector<8x128xf32>
    %1321 = arith.mulf %1228, %1257 : vector<8x128xf32>
    %1322 = arith.mulf %1229, %1256 : vector<8x128xf32>
    %1323 = arith.subf %1321, %1322 : vector<8x128xf32>
    %1324 = arith.mulf %1317, %1317 : vector<8x128xf32>
    %1325 = arith.mulf %1320, %1320 : vector<8x128xf32>
    %1326 = arith.addf %1324, %1325 : vector<8x128xf32>
    %1327 = arith.mulf %1323, %1323 : vector<8x128xf32>
    %1328 = arith.addf %1326, %1327 : vector<8x128xf32>
    %1329 = math.sqrt %1328 : vector<8x128xf32>
    %cst_1025 = arith.constant 9.99999997E-7 : f32
    %1330 = vector.broadcast %cst_1025 : f32 to vector<8x128xf32>
    %1331 = arith.addf %1329, %1330 : vector<8x128xf32>
    %cst_1026 = arith.constant 1.000000e+00 : f32
    %1332 = vector.broadcast %cst_1026 : f32 to vector<8x128xf32>
    %1333 = arith.divf %1332, %1331 : vector<8x128xf32>
    %1334 = arith.mulf %1317, %1333 : vector<8x128xf32>
    %1335 = arith.mulf %1320, %1333 : vector<8x128xf32>
    %1336 = arith.mulf %1323, %1333 : vector<8x128xf32>
    %1337 = arith.mulf %1334, %1200 : vector<8x128xf32>
    %1338 = arith.mulf %1335, %1201 : vector<8x128xf32>
    %1339 = arith.addf %1337, %1338 : vector<8x128xf32>
    %1340 = arith.mulf %1336, %1202 : vector<8x128xf32>
    %1341 = arith.addf %1339, %1340 : vector<8x128xf32>
    %cst_1027 = arith.constant 0.000000e+00 : f32
    %1342 = vector.broadcast %cst_1027 : f32 to vector<8x128xf32>
    %1343 = arith.cmpf olt, %1341, %1342 : vector<8x128xf32>
    %cst_1028 = arith.constant 1.000000e+00 : f32
    %cst_1029 = arith.constant 0.000000e+00 : f32
    %1344 = vector.broadcast %cst_1028 : f32 to vector<8x128xf32>
    %1345 = vector.broadcast %cst_1029 : f32 to vector<8x128xf32>
    %1346 = arith.select %1343, %1344, %1345 : vector<8x128xi1>, vector<8x128xf32>
    %c0_1030 = arith.constant 0 : index
    %c12_1031 = arith.constant 12 : index
    %c0_1032 = arith.constant 0 : index
    %c0_1033 = arith.constant 0 : index
    %1347 = vector.load %arg3[%c0_1030, %c12_1031, %c0_1032, %c0_1033] : memref<1x15x8x128xf32, #tpu.memory_space<vmem>>, vector<1x1x8x128xf32>
    %1348 = vector.shape_cast %1347 : vector<1x1x8x128xf32> to vector<8x128xf32>
    %1349 = arith.maximumf %1348, %1346 : vector<8x128xf32>
    %c0_1034 = arith.constant 0 : index
    %c12_1035 = arith.constant 12 : index
    %c0_1036 = arith.constant 0 : index
    %c0_1037 = arith.constant 0 : index
    %1350 = vector.load %arg3[%c0_1034, %c12_1035, %c0_1036, %c0_1037] : memref<1x15x8x128xf32, #tpu.memory_space<vmem>>, vector<1x1x8x128xf32>
    %1351 = vector.shape_cast %1350 : vector<1x1x8x128xf32> to vector<8x128xf32>
    %1352 = vector.shape_cast %1349 : vector<8x128xf32> to vector<1x1x8x128xf32>
    tpu.vector_store %arg3[%c0_1034, %c12_1035, %c0_1036, %c0_1037], %1352 {strides = array<i32>} : memref<1x15x8x128xf32, #tpu.memory_space<vmem>>, vector<1x1x8x128xf32>,
    %1353 = arith.mulf %1257, %1286 : vector<8x128xf32>
    %1354 = arith.mulf %1258, %1285 : vector<8x128xf32>
    %1355 = arith.subf %1353, %1354 : vector<8x128xf32>
    %1356 = arith.mulf %1258, %1284 : vector<8x128xf32>
    %1357 = arith.mulf %1256, %1286 : vector<8x128xf32>
    %1358 = arith.subf %1356, %1357 : vector<8x128xf32>
    %1359 = arith.mulf %1256, %1285 : vector<8x128xf32>
    %1360 = arith.mulf %1257, %1284 : vector<8x128xf32>
    %1361 = arith.subf %1359, %1360 : vector<8x128xf32>
    %1362 = arith.mulf %1355, %1355 : vector<8x128xf32>
    %1363 = arith.mulf %1358, %1358 : vector<8x128xf32>
    %1364 = arith.addf %1362, %1363 : vector<8x128xf32>
    %1365 = arith.mulf %1361, %1361 : vector<8x128xf32>
    %1366 = arith.addf %1364, %1365 : vector<8x128xf32>
    %1367 = math.sqrt %1366 : vector<8x128xf32>
    %cst_1038 = arith.constant 9.99999997E-7 : f32
    %1368 = vector.broadcast %cst_1038 : f32 to vector<8x128xf32>
    %1369 = arith.addf %1367, %1368 : vector<8x128xf32>
    %cst_1039 = arith.constant 1.000000e+00 : f32
    %1370 = vector.broadcast %cst_1039 : f32 to vector<8x128xf32>
    %1371 = arith.divf %1370, %1369 : vector<8x128xf32>
    %1372 = arith.mulf %1355, %1371 : vector<8x128xf32>
    %1373 = arith.mulf %1358, %1371 : vector<8x128xf32>
    %1374 = arith.mulf %1361, %1371 : vector<8x128xf32>
    %1375 = arith.mulf %1372, %1200 : vector<8x128xf32>
    %1376 = arith.mulf %1373, %1201 : vector<8x128xf32>
    %1377 = arith.addf %1375, %1376 : vector<8x128xf32>
    %1378 = arith.mulf %1374, %1202 : vector<8x128xf32>
    %1379 = arith.addf %1377, %1378 : vector<8x128xf32>
    %cst_1040 = arith.constant 0.000000e+00 : f32
    %1380 = vector.broadcast %cst_1040 : f32 to vector<8x128xf32>
    %1381 = arith.cmpf olt, %1379, %1380 : vector<8x128xf32>
    %cst_1041 = arith.constant 1.000000e+00 : f32
    %cst_1042 = arith.constant 0.000000e+00 : f32
    %1382 = vector.broadcast %cst_1041 : f32 to vector<8x128xf32>
    %1383 = vector.broadcast %cst_1042 : f32 to vector<8x128xf32>
    %1384 = arith.select %1381, %1382, %1383 : vector<8x128xi1>, vector<8x128xf32>
    %c0_1043 = arith.constant 0 : index
    %c13_1044 = arith.constant 13 : index
    %c0_1045 = arith.constant 0 : index
    %c0_1046 = arith.constant 0 : index
    %1385 = vector.load %arg3[%c0_1043, %c13_1044, %c0_1045, %c0_1046] : memref<1x15x8x128xf32, #tpu.memory_space<vmem>>, vector<1x1x8x128xf32>
    %1386 = vector.shape_cast %1385 : vector<1x1x8x128xf32> to vector<8x128xf32>
    %1387 = arith.maximumf %1386, %1384 : vector<8x128xf32>
    %c0_1047 = arith.constant 0 : index
    %c13_1048 = arith.constant 13 : index
    %c0_1049 = arith.constant 0 : index
    %c0_1050 = arith.constant 0 : index
    %1388 = vector.load %arg3[%c0_1047, %c13_1048, %c0_1049, %c0_1050] : memref<1x15x8x128xf32, #tpu.memory_space<vmem>>, vector<1x1x8x128xf32>
    %1389 = vector.shape_cast %1388 : vector<1x1x8x128xf32> to vector<8x128xf32>
    %1390 = vector.shape_cast %1387 : vector<8x128xf32> to vector<1x1x8x128xf32>
    tpu.vector_store %arg3[%c0_1047, %c13_1048, %c0_1049, %c0_1050], %1390 {strides = array<i32>} : memref<1x15x8x128xf32, #tpu.memory_space<vmem>>, vector<1x1x8x128xf32>,
    %1391 = arith.mulf %1285, %1314 : vector<8x128xf32>
    %1392 = arith.mulf %1286, %1313 : vector<8x128xf32>
    %1393 = arith.subf %1391, %1392 : vector<8x128xf32>
    %1394 = arith.mulf %1286, %1312 : vector<8x128xf32>
    %1395 = arith.mulf %1284, %1314 : vector<8x128xf32>
    %1396 = arith.subf %1394, %1395 : vector<8x128xf32>
    %1397 = arith.mulf %1284, %1313 : vector<8x128xf32>
    %1398 = arith.mulf %1285, %1312 : vector<8x128xf32>
    %1399 = arith.subf %1397, %1398 : vector<8x128xf32>
    %1400 = arith.mulf %1393, %1393 : vector<8x128xf32>
    %1401 = arith.mulf %1396, %1396 : vector<8x128xf32>
    %1402 = arith.addf %1400, %1401 : vector<8x128xf32>
    %1403 = arith.mulf %1399, %1399 : vector<8x128xf32>
    %1404 = arith.addf %1402, %1403 : vector<8x128xf32>
    %1405 = math.sqrt %1404 : vector<8x128xf32>
    %cst_1051 = arith.constant 9.99999997E-7 : f32
    %1406 = vector.broadcast %cst_1051 : f32 to vector<8x128xf32>
    %1407 = arith.addf %1405, %1406 : vector<8x128xf32>
    %cst_1052 = arith.constant 1.000000e+00 : f32
    %1408 = vector.broadcast %cst_1052 : f32 to vector<8x128xf32>
    %1409 = arith.divf %1408, %1407 : vector<8x128xf32>
    %1410 = arith.mulf %1393, %1409 : vector<8x128xf32>
    %1411 = arith.mulf %1396, %1409 : vector<8x128xf32>
    %1412 = arith.mulf %1399, %1409 : vector<8x128xf32>
    %1413 = arith.mulf %1410, %1200 : vector<8x128xf32>
    %1414 = arith.mulf %1411, %1201 : vector<8x128xf32>
    %1415 = arith.addf %1413, %1414 : vector<8x128xf32>
    %1416 = arith.mulf %1412, %1202 : vector<8x128xf32>
    %1417 = arith.addf %1415, %1416 : vector<8x128xf32>
    %cst_1053 = arith.constant 0.000000e+00 : f32
    %1418 = vector.broadcast %cst_1053 : f32 to vector<8x128xf32>
    %1419 = arith.cmpf olt, %1417, %1418 : vector<8x128xf32>
    %cst_1054 = arith.constant 1.000000e+00 : f32
    %cst_1055 = arith.constant 0.000000e+00 : f32
    %1420 = vector.broadcast %cst_1054 : f32 to vector<8x128xf32>
    %1421 = vector.broadcast %cst_1055 : f32 to vector<8x128xf32>
    %1422 = arith.select %1419, %1420, %1421 : vector<8x128xi1>, vector<8x128xf32>
    %c0_1056 = arith.constant 0 : index
    %c14_1057 = arith.constant 14 : index
    %c0_1058 = arith.constant 0 : index
    %c0_1059 = arith.constant 0 : index
    %1423 = vector.load %arg3[%c0_1056, %c14_1057, %c0_1058, %c0_1059] : memref<1x15x8x128xf32, #tpu.memory_space<vmem>>, vector<1x1x8x128xf32>
    %1424 = vector.shape_cast %1423 : vector<1x1x8x128xf32> to vector<8x128xf32>
    %1425 = arith.maximumf %1424, %1422 : vector<8x128xf32>
    %c0_1060 = arith.constant 0 : index
    %c14_1061 = arith.constant 14 : index
    %c0_1062 = arith.constant 0 : index
    %c0_1063 = arith.constant 0 : index
    %1426 = vector.load %arg3[%c0_1060, %c14_1061, %c0_1062, %c0_1063] : memref<1x15x8x128xf32, #tpu.memory_space<vmem>>, vector<1x1x8x128xf32>
    %1427 = vector.shape_cast %1426 : vector<1x1x8x128xf32> to vector<8x128xf32>
    %1428 = vector.shape_cast %1425 : vector<8x128xf32> to vector<1x1x8x128xf32>
    tpu.vector_store %arg3[%c0_1060, %c14_1061, %c0_1062, %c0_1063], %1428 {strides = array<i32>} : memref<1x15x8x128xf32, #tpu.memory_space<vmem>>, vector<1x1x8x128xf32>,
    return
  }
  func.func @transform_0(%arg0: i32, %arg1: i32) -> (i32, i32, i32, i32, i32) {
    %c1_i32 = arith.constant 1 : i32
    %0 = arith.muli %arg0, %c1_i32 : i32
    %1 = arith.addi %0, %arg1 : i32
    %c0_i32 = arith.constant 0 : i32
    %c0_i32_0 = arith.constant 0 : i32
    %c0_i32_1 = arith.constant 0 : i32
    %c0_i32_2 = arith.constant 0 : i32
    %c0_i32_3 = arith.constant 0 : i32
    return %c0_i32, %c0_i32_0, %1, %c0_i32_1, %c0_i32_2 : i32, i32, i32, i32, i32
  }
  func.func @transform_1(%arg0: i32, %arg1: i32) -> (i32, i32, i32, i32) {
    %c0_i32 = arith.constant 0 : i32
    %c0_i32_0 = arith.constant 0 : i32
    %c0_i32_1 = arith.constant 0 : i32
    %c0_i32_2 = arith.constant 0 : i32
    return %arg0, %c0_i32, %c0_i32_0, %c0_i32_1 : i32, i32, i32, i32
  }
}

</mosaic_0001>

<llo_original>
// kernel: tpu_custom_call.1
$region0: #{tpu_custom_call.1}
  #allocation0 [shape = 'u32[]', space=smem, size = 0x4, offset = 0x4, fixed_abs, tag = 'smem constant byte address 0x4 - core index']
  #allocation1 [shape = 'u32[144,128]{1,0:T(1,128)}', space=vmem, size = 0x12000, scoped, tag = 'internal scratch']
  %s0 = inlined_call_operand.hbm [shape: f32[21,3,2,8,128], index: 0, kind: input, shape index: {}]
  %s1 = inlined_call_operand.hbm [shape: f32[2,15,8,128], index: 1, kind: output, shape index: {}]
  %s2 = sld [smem:[#allocation0]]
  $region45: #{tpu_custom_call.1} parent=0
    _
  %s4 = ssub.s32 1, %s2
  %s5 = scalar_select 0, %s4, %s2
  $region1: #{tpu_custom_call.1} parent=0
    #allocation2 [shape = 'u8[516096]{0}', space=vmem, size = 0x7e000, scoped, tag = 'input window, operand 0']
    #allocation3 [shape = 's32[2]{0}', space=sflag, size = 0x8, scoped, tag = 'scoped memory for tpu_custom_call.1']
    #allocation4 [shape = 's32[2]{0}', space=sflag, size = 0x8, scoped, tag = 'scoped memory for tpu_custom_call.1']
    #allocation5 [shape = 'u8[122880]{0}', space=vmem, size = 0x1e000, scoped, tag = 'output window, operand 0']
    %6 = vsyncpa [#allocation3], 0
    %s7 = scalar_lea.sflag [#allocation3], 1
    %8 = vsyncpa %s7, 0
    %9 = vsyncpa [#allocation4], 0
    %s10 = scalar_lea.sflag [#allocation4], 1
    %11 = vsyncpa %s10, 0
    loop: start=0, step=1, limit=4
    $region2: #{tpu_custom_call.1} parent=1 // loop_pre_header
      _
    $region3: #{tpu_custom_call.1} parent=1 // loop_header
      %s13 = sphi 0, %s17
      %p14 = scmp.ge.s32.totalorder %s13, 4
      %s20 = sphi 0, %s32
      %s21 = sphi 0, %s28
      %s22 = sphi 0, %s20
      %s23 = sphi 0, %s21
      %s24 = sphi 0, %s22
      %s25 = sphi 0, %s23
      %s37 = sphi 0, %s39
      %s40 = sphi 0, %s37
      %s41 = sphi 0, %s40
      %s57 = sphi 0, %s41
      %s63 = sphi 0, %s65
      %s66 = sphi 0, %s63
      %s67 = sphi 0, %s66
      %s83 = sphi 0, %s67
    $region4: #{tpu_custom_call.1} parent=1 // loop_header_branch
      %16 = sbr.rel (%p14) target = $region8
    $region5: #{tpu_custom_call.1} parent=1 // loop_body
      %s18 = ssub.s32 %s13, 1
      %s19 = ssub.s32 %s13, 2
      %s26 = sadd.s32 1, %s21
      %p27 = scmp.ge.s32.totalorder %s26, 1
      %s28 = scalar_select %p27, 0, %s26
      %s29 = sadd.s32 1, %s20
      %s30 = scalar_select %p27, %s29, %s20
      %p31 = scmp.ge.s32.totalorder %s30, 2
      %s32 = scalar_select %p31, 0, %s30
      %s33 = sadd.s32 %s20, %s21
      %s34 = sadd.s32 %s32, %s28
      %s35 = ssub.s32 %s33, %s34
      %p36 = scmp.eq.s32.totalorder %s35, 0
      %s38 = sadd.s32 %s37, 1
      %s39 = scalar_select %p36, %s37, %s38
      %p42 = pneg %p36
      %p43 = scmp.eq.s32.totalorder %s13, 1
      %p44 = por %p42, %p43
      %p45 = scmp.ne.s32.totalorder %s37, %s40
      %p46 = scmp.eq.s32.totalorder %s13, 0
      %p47 = por %p45, %p46
      %p48 = scmp.ne.s32.totalorder %s37, %s40
      %p49 = scmp.eq.s32.totalorder %s18, 1
      %p50 = por %p48, %p49
      %p51 = scmp.ne.s32.totalorder %s40, %s41
      %p52 = scmp.eq.s32.totalorder %s18, 0
      %p53 = por %p51, %p52
      %p54 = scmp.ne.s32.totalorder %s40, %s41
      %p55 = scmp.eq.s32.totalorder %s19, 1
      %p56 = por %p54, %p55
      %p58 = scmp.ne.s32.totalorder %s41, %s57
      %p59 = scmp.eq.s32.totalorder %s19, 0
      %p60 = por %p58, %p59
      %s61 = ssub.s32 %s20, %s32
      %p62 = scmp.eq.s32.totalorder %s61, 0
      %s64 = sadd.s32 %s63, 1
      %s65 = scalar_select %p62, %s63, %s64
      %p68 = pneg %p62
      %p69 = scmp.eq.s32.totalorder %s13, 1
      %p70 = por %p68, %p69
      %p71 = scmp.ne.s32.totalorder %s63, %s66
      %p72 = scmp.eq.s32.totalorder %s13, 0
      %p73 = por %p71, %p72
      %p74 = scmp.ne.s32.totalorder %s63, %s66
      %p75 = scmp.eq.s32.totalorder %s18, 1
      %p76 = por %p74, %p75
      %p77 = scmp.ne.s32.totalorder %s66, %s67
      %p78 = scmp.eq.s32.totalorder %s18, 0
      %p79 = por %p77, %p78
      %p80 = scmp.ne.s32.totalorder %s66, %s67
      %p81 = scmp.eq.s32.totalorder %s19, 1
      %p82 = por %p80, %p81
      %p84 = scmp.ne.s32.totalorder %s67, %s83
      %p85 = scmp.eq.s32.totalorder %s19, 0
      %p86 = por %p84, %p85
      %p87 = scmp.le.s32.totalorder 1, %s13
      %p88 = scmp.lt.s32.totalorder %s13, 3
      %p89 = pnand %p87, %p88
      %p90 = pneg %p89
      // Predicated region
      $region9: #{tpu_custom_call.1} parent=5 // pred_check
        _
      $region10: #{tpu_custom_call.1} parent=5 // pred_check_branch
        %92 = sbr.rel (%p89) target = $region12
      $region11: #{tpu_custom_call.1} parent=5 // pred_region
        %s93 = ssub.s32 %s13, 1
      $region12: #{tpu_custom_call.1} parent=5 // pred_fallthru
        _
      %p94 = scmp.lt.s32.totalorder %s13, 2
      // Predicated region
      $region13: #{tpu_custom_call.1} parent=5 // pred_check
        %p95 = pneg %p94
      $region14: #{tpu_custom_call.1} parent=5 // pred_check_branch
        %97 = sbr.rel (%p95) target = $region16
      $region15: #{tpu_custom_call.1} parent=5 // pred_region
        // Predicated region
        $region17: #{tpu_custom_call.1} parent=15 // pred_check
          %p98 = pneg %p47
        $region18: #{tpu_custom_call.1} parent=15 // pred_check_branch
          %100 = sbr.rel (%p98) target = $region20
        $region19: #{tpu_custom_call.1} parent=15 // pred_region
          %s101 = sand.u32 %s37, 1
          %s102 = scalar_lea.sflag [#allocation3], %s101
          %s103 = sand.u32 %s37, 1
          %s104 = smul.addr %s103, 504
          %s105 = scalar_lea.vmem [#allocation2], %s104
          %s106 = sadd.s32 %s20, %s21
          %s108 = ssub.s32 8064, 8064
          %109 = vsyncadd %s102, %s108
          %s110 = smul.addr %s106, 128
          %s111 = scalar_lea.hbm %s0, %s110
          %s112 = sshll.u32 %s105, 4
          %s113 = int_to_ptr.vmem [resolvable:$true] %s112
          %118 = dma.hbm_to_vmem [thread:$0]  %s111, 8064, %s113, %s102, 256, 128, 8
        $region20: #{tpu_custom_call.1} parent=15 // pred_fallthru
          _
      $region16: #{tpu_custom_call.1} parent=5 // pred_fallthru
        _
      %p119 = scmp.le.s32.totalorder 1, %s13
      %p120 = scmp.lt.s32.totalorder %s13, 3
      %p121 = pnand %p119, %p120
      %p122 = pneg %p121
      // Predicated region
      $region21: #{tpu_custom_call.1} parent=5 // pred_check
        _
      $region22: #{tpu_custom_call.1} parent=5 // pred_check_branch
        %124 = sbr.rel (%p121) target = $region24
      $region23: #{tpu_custom_call.1} parent=5 // pred_region
        %s125 = ssub.s32 %s13, 1
        %s126 = sand.u32 %s40, 1
        %s127 = scalar_lea.sflag [#allocation3], %s126
        %s128 = sand.u32 %s40, 1
        %s129 = smul.addr %s128, 504
        %s130 = scalar_lea.vmem [#allocation2], %s129
        // Predicated region
        $region25: #{tpu_custom_call.1} parent=23 // pred_check
          %p131 = pneg %p53
        $region26: #{tpu_custom_call.1} parent=23 // pred_check_branch
          %133 = sbr.rel (%p131) target = $region28
        $region27: #{tpu_custom_call.1} parent=23 // pred_region
          %134 = dma.done %s127, 8064
        $region28: #{tpu_custom_call.1} parent=23 // pred_fallthru
          _
        %s135 = sand.u32 %s40, 1
        %s136 = scalar_lea.sflag [#allocation3], %s135
        %s137 = sand.u32 %s40, 1
        %s138 = smul.addr %s137, 504
        %s139 = scalar_lea.vmem [#allocation2], %s138
        %p140 = pneg %p53
        %p141 = pneg %p50
        %p142 = pneg %p79
        %p143 = pneg %p76
        %s144 = sand.u32 %s66, 1
        %s145 = scalar_lea.sflag [#allocation4], %s144
        %s146 = sand.u32 %s66, 1
        %s147 = smul.addr %s146, 120
        %s148 = scalar_lea.vmem [#allocation5], %s147
        %s149 = sadd.s32 %s22, %s23
        %p150 = scmp.eq.s32.totalorder %s23, 0
        // Predicated region
        $region29: #{tpu_custom_call.1} parent=23 // pred_check
          %p151 = pneg %p150
        $region30: #{tpu_custom_call.1} parent=23 // pred_check_branch
          %153 = sbr.rel (%p151) target = $region32
        $region31: #{tpu_custom_call.1} parent=23 // pred_region
          %154 = vst [vmem:[%s148] sm:$0xff] 0.0
          %155 = vst [vmem:[%s148 + $0x8] sm:$0xff] 0.0
          %156 = vst [vmem:[%s148 + $0x10] sm:$0xff] 0.0
          %157 = vst [vmem:[%s148 + $0x18] sm:$0xff] 0.0
          %158 = vst [vmem:[%s148 + $0x20] sm:$0xff] 0.0
          %159 = vst [vmem:[%s148 + $0x28] sm:$0xff] 0.0
          %160 = vst [vmem:[%s148 + $0x30] sm:$0xff] 0.0
          %161 = vst [vmem:[%s148 + $0x38] sm:$0xff] 0.0
          %162 = vst [vmem:[%s148 + $0x40] sm:$0xff] 0.0
          %163 = vst [vmem:[%s148 + $0x48] sm:$0xff] 0.0
          %164 = vst [vmem:[%s148 + $0x50] sm:$0xff] 0.0
          %165 = vst [vmem:[%s148 + $0x58] sm:$0xff] 0.0
          %166 = vst [vmem:[%s148 + $0x60] sm:$0xff] 0.0
          %167 = vst [vmem:[%s148 + $0x68] sm:$0xff] 0.0
          %168 = vst [vmem:[%s148 + $0x70] sm:$0xff] 0.0
        $region32: #{tpu_custom_call.1} parent=23 // pred_fallthru
          _
        %v169 = vld [vmem:[%s130] sm:$0xff]
        %s170 = scalar_lea.vmem %s130, 8 [#allocation2]
        %v171 = vld [vmem:[%s170] sm:$0xff]
        %s172 = scalar_lea.vmem %s130, 16 [#allocation2]
        %v173 = vld [vmem:[%s172] sm:$0xff]
        %s174 = scalar_lea.vmem %s130, 24 [#allocation2]
        %v175 = vld [vmem:[%s174] sm:$0xff]
        %s176 = scalar_lea.vmem %s130, 32 [#allocation2]
        %v177 = vld [vmem:[%s176] sm:$0xff]
        %s178 = scalar_lea.vmem %s130, 40 [#allocation2]
        %v179 = vld [vmem:[%s178] sm:$0xff]
        %v180 = vsub.f32 %v175, %v169
        %v181 = vsub.f32 %v177, %v171
        %v182 = vsub.f32 %v179, %v173
        %s183 = scalar_lea.vmem %s130, 96 [#allocation2]
        %v184 = vld [vmem:[%s183] sm:$0xff]
        %s185 = scalar_lea.vmem %s130, 104 [#allocation2]
        %v186 = vld [vmem:[%s185] sm:$0xff]
        %s187 = scalar_lea.vmem %s130, 112 [#allocation2]
        %v188 = vld [vmem:[%s187] sm:$0xff]
        %v189 = vsub.f32 %v184, %v169
        %v190 = vsub.f32 %v186, %v171
        %v191 = vsub.f32 %v188, %v173
        %v192 = vmul.f32 %v181, %v191
        %v193 = vmul.f32 %v182, %v190
        %v194 = vsub.f32 %v192, %v193
        %v195 = vmul.f32 %v182, %v189
        %v196 = vmul.f32 %v180, %v191
        %v197 = vsub.f32 %v195, %v196
        %v198 = vmul.f32 %v180, %v190
        %v199 = vmul.f32 %v181, %v189
        %v200 = vsub.f32 %v198, %v199
        %v201 = vmul.f32 %v197, %v182
        %v202 = vmul.f32 %v200, %v181
        %v203 = vsub.f32 %v201, %v202
        %v204 = vmul.f32 %v200, %v180
        %v205 = vmul.f32 %v194, %v182
        %v206 = vsub.f32 %v204, %v205
        %v207 = vmul.f32 %v194, %v181
        %v208 = vmul.f32 %v197, %v180
        %v209 = vsub.f32 %v207, %v208
        %v210 = vmul.f32 %v203, %v203
        %v211 = vmul.f32 %v206, %v206
        %v212 = vadd.f32 %v210, %v211
        %v213 = vmul.f32 %v209, %v209
        %v214 = vadd.f32 %v212, %v213
        %v215 = vrsqrt.pop %v214
        %v216 = vmul.f32 %v214, %v215
        %vm217 = vcmp.eq.f32.partialorder %v214, inf
        %v218 = vsel %vm217, %v214, %v216
        %vm219 = vcmp.eq.f32.partialorder %v214, 0.0
        %v220 = vand.u32 %v214, 2147483648
        %v221 = vsel %vm219, %v220, %v218
        %v222 = vadd.f32 %v221, 1e-06
        %v223 = vrcp.pop %v222
        %v224 = vmul.f32 1.0, %v223
        %v225 = vmul.f32 %v203, %v224
        %v226 = vmul.f32 %v206, %v224
        %v227 = vmul.f32 %v209, %v224
        %v228 = vmul.f32 %v180, %v180
        %v229 = vmul.f32 %v181, %v181
        %v230 = vadd.f32 %v228, %v229
        %v231 = vmul.f32 %v182, %v182
        %v232 = vadd.f32 %v230, %v231
        %v233 = vrsqrt.pop %v232
        %v234 = vmul.f32 %v232, %v233
        %vm235 = vcmp.eq.f32.partialorder %v232, inf
        %v236 = vsel %vm235, %v232, %v234
        %vm237 = vcmp.eq.f32.partialorder %v232, 0.0
        %v238 = vand.u32 %v232, 2147483648
        %v239 = vsel %vm237, %v238, %v236
        %v240 = vadd.f32 %v239, 1e-06
        %v241 = vrcp.pop %v240
        %v242 = vmul.f32 1.0, %v241
        %v243 = vmul.f32 %v180, %v242
        %v244 = vmul.f32 %v181, %v242
        %v245 = vmul.f32 %v182, %v242
        %s246 = scalar_lea.vmem %s130, 48 [#allocation2]
        %v247 = vld [vmem:[%s246] sm:$0xff]
        %s248 = scalar_lea.vmem %s130, 56 [#allocation2]
        %v249 = vld [vmem:[%s248] sm:$0xff]
        %s250 = scalar_lea.vmem %s130, 64 [#allocation2]
        %v251 = vld [vmem:[%s250] sm:$0xff]
        %v252 = vsub.f32 %v247, %v175
        %v253 = vsub.f32 %v249, %v177
        %v254 = vsub.f32 %v251, %v179
        %v255 = vmul.f32 %v252, %v252
        %v256 = vmul.f32 %v253, %v253
        %v257 = vadd.f32 %v255, %v256
        %v258 = vmul.f32 %v254, %v254
        %v259 = vadd.f32 %v257, %v258
        %v260 = vrsqrt.pop %v259
        %v261 = vmul.f32 %v259, %v260
        %vm262 = vcmp.eq.f32.partialorder %v259, inf
        %v263 = vsel %vm262, %v259, %v261
        %vm264 = vcmp.eq.f32.partialorder %v259, 0.0
        %v265 = vand.u32 %v259, 2147483648
        %v266 = vsel %vm264, %v265, %v263
        %v267 = vadd.f32 %v266, 1e-06
        %v268 = vrcp.pop %v267
        %v269 = vmul.f32 1.0, %v268
        %v270 = vmul.f32 %v252, %v269
        %v271 = vmul.f32 %v253, %v269
        %v272 = vmul.f32 %v254, %v269
        %s273 = scalar_lea.vmem %s130, 72 [#allocation2]
        %v274 = vld [vmem:[%s273] sm:$0xff]
        %s275 = scalar_lea.vmem %s130, 80 [#allocation2]
        %v276 = vld [vmem:[%s275] sm:$0xff]
        %s277 = scalar_lea.vmem %s130, 88 [#allocation2]
        %v278 = vld [vmem:[%s277] sm:$0xff]
        %v279 = vsub.f32 %v274, %v247
        %v280 = vsub.f32 %v276, %v249
        %v281 = vsub.f32 %v278, %v251
        %v282 = vmul.f32 %v279, %v279
        %v283 = vmul.f32 %v280, %v280
        %v284 = vadd.f32 %v282, %v283
        %v285 = vmul.f32 %v281, %v281
        %v286 = vadd.f32 %v284, %v285
        %v287 = vrsqrt.pop %v286
        %v288 = vmul.f32 %v286, %v287
        %vm289 = vcmp.eq.f32.partialorder %v286, inf
        %v290 = vsel %vm289, %v286, %v288
        %vm291 = vcmp.eq.f32.partialorder %v286, 0.0
        %v292 = vand.u32 %v286, 2147483648
        %v293 = vsel %vm291, %v292, %v290
        %v294 = vadd.f32 %v293, 1e-06
        %v295 = vrcp.pop %v294
        %v296 = vmul.f32 1.0, %v295
        %v297 = vmul.f32 %v279, %v296
        %v298 = vmul.f32 %v280, %v296
        %v299 = vmul.f32 %v281, %v296
        %s300 = scalar_lea.vmem %s130, 408 [#allocation2]
        %v301 = vld [vmem:[%s300] sm:$0xff]
        %s302 = scalar_lea.vmem %s130, 416 [#allocation2]
        %v303 = vld [vmem:[%s302] sm:$0xff]
        %s304 = scalar_lea.vmem %s130, 424 [#allocation2]
        %v305 = vld [vmem:[%s304] sm:$0xff]
        %v306 = vsub.f32 %v301, %v274
        %v307 = vsub.f32 %v303, %v276
        %v308 = vsub.f32 %v305, %v278
        %v309 = vmul.f32 %v306, %v306
        %v310 = vmul.f32 %v307, %v307
        %v311 = vadd.f32 %v309, %v310
        %v312 = vmul.f32 %v308, %v308
        %v313 = vadd.f32 %v311, %v312
        %v314 = vrsqrt.pop %v313
        %v315 = vmul.f32 %v313, %v314
        %vm316 = vcmp.eq.f32.partialorder %v313, inf
        %v317 = vsel %vm316, %v313, %v315
        %vm318 = vcmp.eq.f32.partialorder %v313, 0.0
        %v319 = vand.u32 %v313, 2147483648
        %v320 = vsel %vm318, %v319, %v317
        %v321 = vadd.f32 %v320, 1e-06
        %v322 = vrcp.pop %v321
        %v323 = vmul.f32 1.0, %v322
        %v324 = vmul.f32 %v306, %v323
        %v325 = vmul.f32 %v307, %v323
        %v326 = vmul.f32 %v308, %v323
        %v327 = vmul.f32 %v244, %v272
        %v328 = vmul.f32 %v245, %v271
        %v329 = vsub.f32 %v327, %v328
        %v330 = vmul.f32 %v245, %v270
        %v331 = vmul.f32 %v243, %v272
        %v332 = vsub.f32 %v330, %v331
        %v333 = vmul.f32 %v243, %v271
        %v334 = vmul.f32 %v244, %v270
        %v335 = vsub.f32 %v333, %v334
        %v336 = vmul.f32 %v329, %v329
        %v337 = vmul.f32 %v332, %v332
        %v338 = vadd.f32 %v336, %v337
        %v339 = vmul.f32 %v335, %v335
        %v340 = vadd.f32 %v338, %v339
        %v341 = vrsqrt.pop %v340
        %v342 = vmul.f32 %v340, %v341
        %vm343 = vcmp.eq.f32.partialorder %v340, inf
        %v344 = vsel %vm343, %v340, %v342
        %vm345 = vcmp.eq.f32.partialorder %v340, 0.0
        %v346 = vand.u32 %v340, 2147483648
        %v347 = vsel %vm345, %v346, %v344
        %v348 = vadd.f32 %v347, 1e-06
        %v349 = vrcp.pop %v348
        %v350 = vmul.f32 1.0, %v349
        %v351 = vmul.f32 %v329, %v350
        %v352 = vmul.f32 %v332, %v350
        %v353 = vmul.f32 %v335, %v350
        %v354 = vmul.f32 %v351, %v225
        %v355 = vmul.f32 %v352, %v226
        %v356 = vadd.f32 %v354, %v355
        %v357 = vmul.f32 %v353, %v227
        %v358 = vadd.f32 %v356, %v357
        %vm359 = vcmp.lt.f32.partialorder %v358, 0.0
        %v360 = vsel %vm359, 1.0, 0.0
        %v361 = vld [vmem:[%s148] sm:$0xff]
        %v362 = vmax.f32 %v361, %v360
        %363 = vst [vmem:[%s148] sm:$0xff] %v362
        %v364 = vmul.f32 %v271, %v299
        %v365 = vmul.f32 %v272, %v298
        %v366 = vsub.f32 %v364, %v365
        %v367 = vmul.f32 %v272, %v297
        %v368 = vmul.f32 %v270, %v299
        %v369 = vsub.f32 %v367, %v368
        %v370 = vmul.f32 %v270, %v298
        %v371 = vmul.f32 %v271, %v297
        %v372 = vsub.f32 %v370, %v371
        %v373 = vmul.f32 %v366, %v366
        %v374 = vmul.f32 %v369, %v369
        %v375 = vadd.f32 %v373, %v374
        %v376 = vmul.f32 %v372, %v372
        %v377 = vadd.f32 %v375, %v376
        %v378 = vrsqrt.pop %v377
        %v379 = vmul.f32 %v377, %v378
        %vm380 = vcmp.eq.f32.partialorder %v377, inf
        %v381 = vsel %vm380, %v377, %v379
        %vm382 = vcmp.eq.f32.partialorder %v377, 0.0
        %v383 = vand.u32 %v377, 2147483648
        %v384 = vsel %vm382, %v383, %v381
        %v385 = vadd.f32 %v384, 1e-06
        %v386 = vrcp.pop %v385
        %v387 = vmul.f32 1.0, %v386
        %v388 = vmul.f32 %v366, %v387
        %v389 = vmul.f32 %v369, %v387
        %v390 = vmul.f32 %v372, %v387
        %v391 = vmul.f32 %v388, %v225
        %v392 = vmul.f32 %v389, %v226
        %v393 = vadd.f32 %v391, %v392
        %v394 = vmul.f32 %v390, %v227
        %v395 = vadd.f32 %v393, %v394
        %vm396 = vcmp.lt.f32.partialorder %v395, 0.0
        %v397 = vsel %vm396, 1.0, 0.0
        %s398 = scalar_lea.vmem %s148, 8 [#allocation5]
        %v399 = vld [vmem:[%s398] sm:$0xff]
        %v400 = vmax.f32 %v399, %v397
        %401 = vst [vmem:[%s398] sm:$0xff] %v400
        %v402 = vmul.f32 %v298, %v326
        %v403 = vmul.f32 %v299, %v325
        %v404 = vsub.f32 %v402, %v403
        %v405 = vmul.f32 %v299, %v324
        %v406 = vmul.f32 %v297, %v326
        %v407 = vsub.f32 %v405, %v406
        %v408 = vmul.f32 %v297, %v325
        %v409 = vmul.f32 %v298, %v324
        %v410 = vsub.f32 %v408, %v409
        %v411 = vmul.f32 %v404, %v404
        %v412 = vmul.f32 %v407, %v407
        %v413 = vadd.f32 %v411, %v412
        %v414 = vmul.f32 %v410, %v410
        %v415 = vadd.f32 %v413, %v414
        %v416 = vrsqrt.pop %v415
        %v417 = vmul.f32 %v415, %v416
        %vm418 = vcmp.eq.f32.partialorder %v415, inf
        %v419 = vsel %vm418, %v415, %v417
        %vm420 = vcmp.eq.f32.partialorder %v415, 0.0
        %v421 = vand.u32 %v415, 2147483648
        %v422 = vsel %vm420, %v421, %v419
        %v423 = vadd.f32 %v422, 1e-06
        %v424 = vrcp.pop %v423
        %v425 = vmul.f32 1.0, %v424
        %v426 = vmul.f32 %v404, %v425
        %v427 = vmul.f32 %v407, %v425
        %v428 = vmul.f32 %v410, %v425
        %v429 = vmul.f32 %v426, %v225
        %v430 = vmul.f32 %v427, %v226
        %v431 = vadd.f32 %v429, %v430
        %v432 = vmul.f32 %v428, %v227
        %v433 = vadd.f32 %v431, %v432
        %vm434 = vcmp.lt.f32.partialorder %v433, 0.0
        %v435 = vsel %vm434, 1.0, 0.0
        %s436 = scalar_lea.vmem %s148, 16 [#allocation5]
        %v437 = vld [vmem:[%s436] sm:$0xff]
        %v438 = vmax.f32 %v437, %v435
        %439 = vst [vmem:[%s436] sm:$0xff] %v438
        %v440 = vld [vmem:[%s183] sm:$0xff]
        %v441 = vld [vmem:[%s185] sm:$0xff]
        %v442 = vld [vmem:[%s187] sm:$0xff]
        %v443 = vsub.f32 %v440, %v169
        %v444 = vsub.f32 %v441, %v171
        %v445 = vsub.f32 %v442, %v173
        %s446 = scalar_lea.vmem %s130, 240 [#allocation2]
        %v447 = vld [vmem:[%s446] sm:$0xff]
        %s448 = scalar_lea.vmem %s130, 248 [#allocation2]
        %v449 = vld [vmem:[%s448] sm:$0xff]
        %s450 = scalar_lea.vmem %s130, 256 [#allocation2]
        %v451 = vld [vmem:[%s450] sm:$0xff]
        %v452 = vsub.f32 %v447, %v169
        %v453 = vsub.f32 %v449, %v171
        %v454 = vsub.f32 %v451, %v173
        %v455 = vmul.f32 %v444, %v454
        %v456 = vmul.f32 %v445, %v453
        %v457 = vsub.f32 %v455, %v456
        %v458 = vmul.f32 %v445, %v452
        %v459 = vmul.f32 %v443, %v454
        %v460 = vsub.f32 %v458, %v459
        %v461 = vmul.f32 %v443, %v453
        %v462 = vmul.f32 %v444, %v452
        %v463 = vsub.f32 %v461, %v462
        %v464 = vmul.f32 %v460, %v445
        %v465 = vmul.f32 %v463, %v444
        %v466 = vsub.f32 %v464, %v465
        %v467 = vmul.f32 %v463, %v443
        %v468 = vmul.f32 %v457, %v445
        %v469 = vsub.f32 %v467, %v468
        %v470 = vmul.f32 %v457, %v444
        %v471 = vmul.f32 %v460, %v443
        %v472 = vsub.f32 %v470, %v471
        %v473 = vmul.f32 %v466, %v466
        %v474 = vmul.f32 %v469, %v469
        %v475 = vadd.f32 %v473, %v474
        %v476 = vmul.f32 %v472, %v472
        %v477 = vadd.f32 %v475, %v476
        %v478 = vrsqrt.pop %v477
        %v479 = vmul.f32 %v477, %v478
        %vm480 = vcmp.eq.f32.partialorder %v477, inf
        %v481 = vsel %vm480, %v477, %v479
        %vm482 = vcmp.eq.f32.partialorder %v477, 0.0
        %v483 = vand.u32 %v477, 2147483648
        %v484 = vsel %vm482, %v483, %v481
        %v485 = vadd.f32 %v484, 1e-06
        %v486 = vrcp.pop %v485
        %v487 = vmul.f32 1.0, %v486
        %v488 = vmul.f32 %v466, %v487
        %v489 = vmul.f32 %v469, %v487
        %v490 = vmul.f32 %v472, %v487
        %v491 = vld [vmem:[%s130] sm:$0xff]
        %v492 = vld [vmem:[%s170] sm:$0xff]
        %v493 = vld [vmem:[%s172] sm:$0xff]
        %v494 = vsub.f32 %v440, %v491
        %v495 = vsub.f32 %v441, %v492
        %v496 = vsub.f32 %v442, %v493
        %v497 = vmul.f32 %v494, %v494
        %v498 = vmul.f32 %v495, %v495
        %v499 = vadd.f32 %v497, %v498
        %v500 = vmul.f32 %v496, %v496
        %v501 = vadd.f32 %v499, %v500
        %v502 = vrsqrt.pop %v501
        %v503 = vmul.f32 %v501, %v502
        %vm504 = vcmp.eq.f32.partialorder %v501, inf
        %v505 = vsel %vm504, %v501, %v503
        %vm506 = vcmp.eq.f32.partialorder %v501, 0.0
        %v507 = vand.u32 %v501, 2147483648
        %v508 = vsel %vm506, %v507, %v505
        %v509 = vadd.f32 %v508, 1e-06
        %v510 = vrcp.pop %v509
        %v511 = vmul.f32 1.0, %v510
        %v512 = vmul.f32 %v494, %v511
        %v513 = vmul.f32 %v495, %v511
        %v514 = vmul.f32 %v496, %v511
        %s515 = scalar_lea.vmem %s130, 120 [#allocation2]
        %v516 = vld [vmem:[%s515] sm:$0xff]
        %s517 = scalar_lea.vmem %s130, 128 [#allocation2]
        %v518 = vld [vmem:[%s517] sm:$0xff]
        %s519 = scalar_lea.vmem %s130, 136 [#allocation2]
        %v520 = vld [vmem:[%s519] sm:$0xff]
        %v521 = vsub.f32 %v516, %v440
        %v522 = vsub.f32 %v518, %v441
        %v523 = vsub.f32 %v520, %v442
        %v524 = vmul.f32 %v521, %v521
        %v525 = vmul.f32 %v522, %v522
        %v526 = vadd.f32 %v524, %v525
        %v527 = vmul.f32 %v523, %v523
        %v528 = vadd.f32 %v526, %v527
        %v529 = vrsqrt.pop %v528
        %v530 = vmul.f32 %v528, %v529
        %vm531 = vcmp.eq.f32.partialorder %v528, inf
        %v532 = vsel %vm531, %v528, %v530
        %vm533 = vcmp.eq.f32.partialorder %v528, 0.0
        %v534 = vand.u32 %v528, 2147483648
        %v535 = vsel %vm533, %v534, %v532
        %v536 = vadd.f32 %v535, 1e-06
        %v537 = vrcp.pop %v536
        %v538 = vmul.f32 1.0, %v537
        %v539 = vmul.f32 %v521, %v538
        %v540 = vmul.f32 %v522, %v538
        %v541 = vmul.f32 %v523, %v538
        %s542 = scalar_lea.vmem %s130, 144 [#allocation2]
        %v543 = vld [vmem:[%s542] sm:$0xff]
        %s544 = scalar_lea.vmem %s130, 152 [#allocation2]
        %v545 = vld [vmem:[%s544] sm:$0xff]
        %s546 = scalar_lea.vmem %s130, 160 [#allocation2]
        %v547 = vld [vmem:[%s546] sm:$0xff]
        %v548 = vsub.f32 %v543, %v516
        %v549 = vsub.f32 %v545, %v518
        %v550 = vsub.f32 %v547, %v520
        %v551 = vmul.f32 %v548, %v548
        %v552 = vmul.f32 %v549, %v549
        %v553 = vadd.f32 %v551, %v552
        %v554 = vmul.f32 %v550, %v550
        %v555 = vadd.f32 %v553, %v554
        %v556 = vrsqrt.pop %v555
        %v557 = vmul.f32 %v555, %v556
        %vm558 = vcmp.eq.f32.partialorder %v555, inf
        %v559 = vsel %vm558, %v555, %v557
        %vm560 = vcmp.eq.f32.partialorder %v555, 0.0
        %v561 = vand.u32 %v555, 2147483648
        %v562 = vsel %vm560, %v561, %v559
        %v563 = vadd.f32 %v562, 1e-06
        %v564 = vrcp.pop %v563
        %v565 = vmul.f32 1.0, %v564
        %v566 = vmul.f32 %v548, %v565
        %v567 = vmul.f32 %v549, %v565
        %v568 = vmul.f32 %v550, %v565
        %s569 = scalar_lea.vmem %s130, 432 [#allocation2]
        %v570 = vld [vmem:[%s569] sm:$0xff]
        %s571 = scalar_lea.vmem %s130, 440 [#allocation2]
        %v572 = vld [vmem:[%s571] sm:$0xff]
        %s573 = scalar_lea.vmem %s130, 448 [#allocation2]
        %v574 = vld [vmem:[%s573] sm:$0xff]
        %v575 = vsub.f32 %v570, %v543
        %v576 = vsub.f32 %v572, %v545
        %v577 = vsub.f32 %v574, %v547
        %v578 = vmul.f32 %v575, %v575
        %v579 = vmul.f32 %v576, %v576
        %v580 = vadd.f32 %v578, %v579
        %v581 = vmul.f32 %v577, %v577
        %v582 = vadd.f32 %v580, %v581
        %v583 = vrsqrt.pop %v582
        %v584 = vmul.f32 %v582, %v583
        %vm585 = vcmp.eq.f32.partialorder %v582, inf
        %v586 = vsel %vm585, %v582, %v584
        %vm587 = vcmp.eq.f32.partialorder %v582, 0.0
        %v588 = vand.u32 %v582, 2147483648
        %v589 = vsel %vm587, %v588, %v586
        %v590 = vadd.f32 %v589, 1e-06
        %v591 = vrcp.pop %v590
        %v592 = vmul.f32 1.0, %v591
        %v593 = vmul.f32 %v575, %v592
        %v594 = vmul.f32 %v576, %v592
        %v595 = vmul.f32 %v577, %v592
        %v596 = vmul.f32 %v513, %v541
        %v597 = vmul.f32 %v514, %v540
        %v598 = vsub.f32 %v596, %v597
        %v599 = vmul.f32 %v514, %v539
        %v600 = vmul.f32 %v512, %v541
        %v601 = vsub.f32 %v599, %v600
        %v602 = vmul.f32 %v512, %v540
        %v603 = vmul.f32 %v513, %v539
        %v604 = vsub.f32 %v602, %v603
        %v605 = vmul.f32 %v598, %v598
        %v606 = vmul.f32 %v601, %v601
        %v607 = vadd.f32 %v605, %v606
        %v608 = vmul.f32 %v604, %v604
        %v609 = vadd.f32 %v607, %v608
        %v610 = vrsqrt.pop %v609
        %v611 = vmul.f32 %v609, %v610
        %vm612 = vcmp.eq.f32.partialorder %v609, inf
        %v613 = vsel %vm612, %v609, %v611
        %vm614 = vcmp.eq.f32.partialorder %v609, 0.0
        %v615 = vand.u32 %v609, 2147483648
        %v616 = vsel %vm614, %v615, %v613
        %v617 = vadd.f32 %v616, 1e-06
        %v618 = vrcp.pop %v617
        %v619 = vmul.f32 1.0, %v618
        %v620 = vmul.f32 %v598, %v619
        %v621 = vmul.f32 %v601, %v619
        %v622 = vmul.f32 %v604, %v619
        %v623 = vmul.f32 %v620, %v488
        %v624 = vmul.f32 %v621, %v489
        %v625 = vadd.f32 %v623, %v624
        %v626 = vmul.f32 %v622, %v490
        %v627 = vadd.f32 %v625, %v626
        %vm628 = vcmp.lt.f32.partialorder %v627, 0.0
        %v629 = vsel %vm628, 1.0, 0.0
        %s630 = scalar_lea.vmem %s148, 24 [#allocation5]
        %v631 = vld [vmem:[%s630] sm:$0xff]
        %v632 = vmax.f32 %v631, %v629
        %633 = vst [vmem:[%s630] sm:$0xff] %v632
        %v634 = vmul.f32 %v540, %v568
        %v635 = vmul.f32 %v541, %v567
        %v636 = vsub.f32 %v634, %v635
        %v637 = vmul.f32 %v541, %v566
        %v638 = vmul.f32 %v539, %v568
        %v639 = vsub.f32 %v637, %v638
        %v640 = vmul.f32 %v539, %v567
        %v641 = vmul.f32 %v540, %v566
        %v642 = vsub.f32 %v640, %v641
        %v643 = vmul.f32 %v636, %v636
        %v644 = vmul.f32 %v639, %v639
        %v645 = vadd.f32 %v643, %v644
        %v646 = vmul.f32 %v642, %v642
        %v647 = vadd.f32 %v645, %v646
        %v648 = vrsqrt.pop %v647
        %v649 = vmul.f32 %v647, %v648
        %vm650 = vcmp.eq.f32.partialorder %v647, inf
        %v651 = vsel %vm650, %v647, %v649
        %vm652 = vcmp.eq.f32.partialorder %v647, 0.0
        %v653 = vand.u32 %v647, 2147483648
        %v654 = vsel %vm652, %v653, %v651
        %v655 = vadd.f32 %v654, 1e-06
        %v656 = vrcp.pop %v655
        %v657 = vmul.f32 1.0, %v656
        %v658 = vmul.f32 %v636, %v657
        %v659 = vmul.f32 %v639, %v657
        %v660 = vmul.f32 %v642, %v657
        %v661 = vmul.f32 %v658, %v488
        %v662 = vmul.f32 %v659, %v489
        %v663 = vadd.f32 %v661, %v662
        %v664 = vmul.f32 %v660, %v490
        %v665 = vadd.f32 %v663, %v664
        %vm666 = vcmp.lt.f32.partialorder %v665, 0.0
        %v667 = vsel %vm666, 1.0, 0.0
        %s668 = scalar_lea.vmem %s148, 32 [#allocation5]
        %v669 = vld [vmem:[%s668] sm:$0xff]
        %v670 = vmax.f32 %v669, %v667
        %671 = vst [vmem:[%s668] sm:$0xff] %v670
        %v672 = vmul.f32 %v567, %v595
        %v673 = vmul.f32 %v568, %v594
        %v674 = vsub.f32 %v672, %v673
        %v675 = vmul.f32 %v568, %v593
        %v676 = vmul.f32 %v566, %v595
        %v677 = vsub.f32 %v675, %v676
        %v678 = vmul.f32 %v566, %v594
        %v679 = vmul.f32 %v567, %v593
        %v680 = vsub.f32 %v678, %v679
        %v681 = vmul.f32 %v674, %v674
        %v682 = vmul.f32 %v677, %v677
        %v683 = vadd.f32 %v681, %v682
        %v684 = vmul.f32 %v680, %v680
        %v685 = vadd.f32 %v683, %v684
        %v686 = vrsqrt.pop %v685
        %v687 = vmul.f32 %v685, %v686
        %vm688 = vcmp.eq.f32.partialorder %v685, inf
        %v689 = vsel %vm688, %v685, %v687
        %vm690 = vcmp.eq.f32.partialorder %v685, 0.0
        %v691 = vand.u32 %v685, 2147483648
        %v692 = vsel %vm690, %v691, %v689
        %v693 = vadd.f32 %v692, 1e-06
        %v694 = vrcp.pop %v693
        %v695 = vmul.f32 1.0, %v694
        %v696 = vmul.f32 %v674, %v695
        %v697 = vmul.f32 %v677, %v695
        %v698 = vmul.f32 %v680, %v695
        %v699 = vmul.f32 %v696, %v488
        %v700 = vmul.f32 %v697, %v489
        %v701 = vadd.f32 %v699, %v700
        %v702 = vmul.f32 %v698, %v490
        %v703 = vadd.f32 %v701, %v702
        %vm704 = vcmp.lt.f32.partialorder %v703, 0.0
        %v705 = vsel %vm704, 1.0, 0.0
        %s706 = scalar_lea.vmem %s148, 40 [#allocation5]
        %v707 = vld [vmem:[%s706] sm:$0xff]
        %v708 = vmax.f32 %v707, %v705
        %709 = vst [vmem:[%s706] sm:$0xff] %v708
        %v710 = vld [vmem:[%s446] sm:$0xff]
        %v711 = vld [vmem:[%s448] sm:$0xff]
        %v712 = vld [vmem:[%s450] sm:$0xff]
        %v713 = vsub.f32 %v710, %v169
        %v714 = vsub.f32 %v711, %v171
        %v715 = vsub.f32 %v712, %v173
        %s716 = scalar_lea.vmem %s130, 168 [#allocation2]
        %v717 = vld [vmem:[%s716] sm:$0xff]
        %s718 = scalar_lea.vmem %s130, 176 [#allocation2]
        %v719 = vld [vmem:[%s718] sm:$0xff]
        %s720 = scalar_lea.vmem %s130, 184 [#allocation2]
        %v721 = vld [vmem:[%s720] sm:$0xff]
        %v722 = vsub.f32 %v717, %v169
        %v723 = vsub.f32 %v719, %v171
        %v724 = vsub.f32 %v721, %v173
        %v725 = vmul.f32 %v714, %v724
        %v726 = vmul.f32 %v715, %v723
        %v727 = vsub.f32 %v725, %v726
        %v728 = vmul.f32 %v715, %v722
        %v729 = vmul.f32 %v713, %v724
        %v730 = vsub.f32 %v728, %v729
        %v731 = vmul.f32 %v713, %v723
        %v732 = vmul.f32 %v714, %v722
        %v733 = vsub.f32 %v731, %v732
        %v734 = vmul.f32 %v730, %v715
        %v735 = vmul.f32 %v733, %v714
        %v736 = vsub.f32 %v734, %v735
        %v737 = vmul.f32 %v733, %v713
        %v738 = vmul.f32 %v727, %v715
        %v739 = vsub.f32 %v737, %v738
        %v740 = vmul.f32 %v727, %v714
        %v741 = vmul.f32 %v730, %v713
        %v742 = vsub.f32 %v740, %v741
        %v743 = vmul.f32 %v736, %v736
        %v744 = vmul.f32 %v739, %v739
        %v745 = vadd.f32 %v743, %v744
        %v746 = vmul.f32 %v742, %v742
        %v747 = vadd.f32 %v745, %v746
        %v748 = vrsqrt.pop %v747
        %v749 = vmul.f32 %v747, %v748
        %vm750 = vcmp.eq.f32.partialorder %v747, inf
        %v751 = vsel %vm750, %v747, %v749
        %vm752 = vcmp.eq.f32.partialorder %v747, 0.0
        %v753 = vand.u32 %v747, 2147483648
        %v754 = vsel %vm752, %v753, %v751
        %v755 = vadd.f32 %v754, 1e-06
        %v756 = vrcp.pop %v755
        %v757 = vmul.f32 1.0, %v756
        %v758 = vmul.f32 %v736, %v757
        %v759 = vmul.f32 %v739, %v757
        %v760 = vmul.f32 %v742, %v757
        %v761 = vld [vmem:[%s130] sm:$0xff]
        %v762 = vld [vmem:[%s170] sm:$0xff]
        %v763 = vld [vmem:[%s172] sm:$0xff]
        %v764 = vsub.f32 %v717, %v761
        %v765 = vsub.f32 %v719, %v762
        %v766 = vsub.f32 %v721, %v763
        %v767 = vmul.f32 %v764, %v764
        %v768 = vmul.f32 %v765, %v765
        %v769 = vadd.f32 %v767, %v768
        %v770 = vmul.f32 %v766, %v766
        %v771 = vadd.f32 %v769, %v770
        %v772 = vrsqrt.pop %v771
        %v773 = vmul.f32 %v771, %v772
        %vm774 = vcmp.eq.f32.partialorder %v771, inf
        %v775 = vsel %vm774, %v771, %v773
        %vm776 = vcmp.eq.f32.partialorder %v771, 0.0
        %v777 = vand.u32 %v771, 2147483648
        %v778 = vsel %vm776, %v777, %v775
        %v779 = vadd.f32 %v778, 1e-06
        %v780 = vrcp.pop %v779
        %v781 = vmul.f32 1.0, %v780
        %v782 = vmul.f32 %v764, %v781
        %v783 = vmul.f32 %v765, %v781
        %v784 = vmul.f32 %v766, %v781
        %s785 = scalar_lea.vmem %s130, 192 [#allocation2]
        %v786 = vld [vmem:[%s785] sm:$0xff]
        %s787 = scalar_lea.vmem %s130, 200 [#allocation2]
        %v788 = vld [vmem:[%s787] sm:$0xff]
        %s789 = scalar_lea.vmem %s130, 208 [#allocation2]
        %v790 = vld [vmem:[%s789] sm:$0xff]
        %v791 = vsub.f32 %v786, %v717
        %v792 = vsub.f32 %v788, %v719
        %v793 = vsub.f32 %v790, %v721
        %v794 = vmul.f32 %v791, %v791
        %v795 = vmul.f32 %v792, %v792
        %v796 = vadd.f32 %v794, %v795
        %v797 = vmul.f32 %v793, %v793
        %v798 = vadd.f32 %v796, %v797
        %v799 = vrsqrt.pop %v798
        %v800 = vmul.f32 %v798, %v799
        %vm801 = vcmp.eq.f32.partialorder %v798, inf
        %v802 = vsel %vm801, %v798, %v800
        %vm803 = vcmp.eq.f32.partialorder %v798, 0.0
        %v804 = vand.u32 %v798, 2147483648
        %v805 = vsel %vm803, %v804, %v802
        %v806 = vadd.f32 %v805, 1e-06
        %v807 = vrcp.pop %v806
        %v808 = vmul.f32 1.0, %v807
        %v809 = vmul.f32 %v791, %v808
        %v810 = vmul.f32 %v792, %v808
        %v811 = vmul.f32 %v793, %v808
        %s812 = scalar_lea.vmem %s130, 216 [#allocation2]
        %v813 = vld [vmem:[%s812] sm:$0xff]
        %s814 = scalar_lea.vmem %s130, 224 [#allocation2]
        %v815 = vld [vmem:[%s814] sm:$0xff]
        %s816 = scalar_lea.vmem %s130, 232 [#allocation2]
        %v817 = vld [vmem:[%s816] sm:$0xff]
        %v818 = vsub.f32 %v813, %v786
        %v819 = vsub.f32 %v815, %v788
        %v820 = vsub.f32 %v817, %v790
        %v821 = vmul.f32 %v818, %v818
        %v822 = vmul.f32 %v819, %v819
        %v823 = vadd.f32 %v821, %v822
        %v824 = vmul.f32 %v820, %v820
        %v825 = vadd.f32 %v823, %v824
        %v826 = vrsqrt.pop %v825
        %v827 = vmul.f32 %v825, %v826
        %vm828 = vcmp.eq.f32.partialorder %v825, inf
        %v829 = vsel %vm828, %v825, %v827
        %vm830 = vcmp.eq.f32.partialorder %v825, 0.0
        %v831 = vand.u32 %v825, 2147483648
        %v832 = vsel %vm830, %v831, %v829
        %v833 = vadd.f32 %v832, 1e-06
        %v834 = vrcp.pop %v833
        %v835 = vmul.f32 1.0, %v834
        %v836 = vmul.f32 %v818, %v835
        %v837 = vmul.f32 %v819, %v835
        %v838 = vmul.f32 %v820, %v835
        %s839 = scalar_lea.vmem %s130, 480 [#allocation2]
        %v840 = vld [vmem:[%s839] sm:$0xff]
        %s841 = scalar_lea.vmem %s130, 488 [#allocation2]
        %v842 = vld [vmem:[%s841] sm:$0xff]
        %s843 = scalar_lea.vmem %s130, 496 [#allocation2]
        %v844 = vld [vmem:[%s843] sm:$0xff]
        %v845 = vsub.f32 %v840, %v813
        %v846 = vsub.f32 %v842, %v815
        %v847 = vsub.f32 %v844, %v817
        %v848 = vmul.f32 %v845, %v845
        %v849 = vmul.f32 %v846, %v846
        %v850 = vadd.f32 %v848, %v849
        %v851 = vmul.f32 %v847, %v847
        %v852 = vadd.f32 %v850, %v851
        %v853 = vrsqrt.pop %v852
        %v854 = vmul.f32 %v852, %v853
        %vm855 = vcmp.eq.f32.partialorder %v852, inf
        %v856 = vsel %vm855, %v852, %v854
        %vm857 = vcmp.eq.f32.partialorder %v852, 0.0
        %v858 = vand.u32 %v852, 2147483648
        %v859 = vsel %vm857, %v858, %v856
        %v860 = vadd.f32 %v859, 1e-06
        %v861 = vrcp.pop %v860
        %v862 = vmul.f32 1.0, %v861
        %v863 = vmul.f32 %v845, %v862
        %v864 = vmul.f32 %v846, %v862
        %v865 = vmul.f32 %v847, %v862
        %v866 = vmul.f32 %v783, %v811
        %v867 = vmul.f32 %v784, %v810
        %v868 = vsub.f32 %v866, %v867
        %v869 = vmul.f32 %v784, %v809
        %v870 = vmul.f32 %v782, %v811
        %v871 = vsub.f32 %v869, %v870
        %v872 = vmul.f32 %v782, %v810
        %v873 = vmul.f32 %v783, %v809
        %v874 = vsub.f32 %v872, %v873
        %v875 = vmul.f32 %v868, %v868
        %v876 = vmul.f32 %v871, %v871
        %v877 = vadd.f32 %v875, %v876
        %v878 = vmul.f32 %v874, %v874
        %v879 = vadd.f32 %v877, %v878
        %v880 = vrsqrt.pop %v879
        %v881 = vmul.f32 %v879, %v880
        %vm882 = vcmp.eq.f32.partialorder %v879, inf
        %v883 = vsel %vm882, %v879, %v881
        %vm884 = vcmp.eq.f32.partialorder %v879, 0.0
        %v885 = vand.u32 %v879, 2147483648
        %v886 = vsel %vm884, %v885, %v883
        %v887 = vadd.f32 %v886, 1e-06
        %v888 = vrcp.pop %v887
        %v889 = vmul.f32 1.0, %v888
        %v890 = vmul.f32 %v868, %v889
        %v891 = vmul.f32 %v871, %v889
        %v892 = vmul.f32 %v874, %v889
        %v893 = vmul.f32 %v890, %v758
        %v894 = vmul.f32 %v891, %v759
        %v895 = vadd.f32 %v893, %v894
        %v896 = vmul.f32 %v892, %v760
        %v897 = vadd.f32 %v895, %v896
        %vm898 = vcmp.lt.f32.partialorder %v897, 0.0
        %v899 = vsel %vm898, 1.0, 0.0
        %s900 = scalar_lea.vmem %s148, 48 [#allocation5]
        %v901 = vld [vmem:[%s900] sm:$0xff]
        %v902 = vmax.f32 %v901, %v899
        %903 = vst [vmem:[%s900] sm:$0xff] %v902
        %v904 = vmul.f32 %v810, %v838
        %v905 = vmul.f32 %v811, %v837
        %v906 = vsub.f32 %v904, %v905
        %v907 = vmul.f32 %v811, %v836
        %v908 = vmul.f32 %v809, %v838
        %v909 = vsub.f32 %v907, %v908
        %v910 = vmul.f32 %v809, %v837
        %v911 = vmul.f32 %v810, %v836
        %v912 = vsub.f32 %v910, %v911
        %v913 = vmul.f32 %v906, %v906
        %v914 = vmul.f32 %v909, %v909
        %v915 = vadd.f32 %v913, %v914
        %v916 = vmul.f32 %v912, %v912
        %v917 = vadd.f32 %v915, %v916
        %v918 = vrsqrt.pop %v917
        %v919 = vmul.f32 %v917, %v918
        %vm920 = vcmp.eq.f32.partialorder %v917, inf
        %v921 = vsel %vm920, %v917, %v919
        %vm922 = vcmp.eq.f32.partialorder %v917, 0.0
        %v923 = vand.u32 %v917, 2147483648
        %v924 = vsel %vm922, %v923, %v921
        %v925 = vadd.f32 %v924, 1e-06
        %v926 = vrcp.pop %v925
        %v927 = vmul.f32 1.0, %v926
        %v928 = vmul.f32 %v906, %v927
        %v929 = vmul.f32 %v909, %v927
        %v930 = vmul.f32 %v912, %v927
        %v931 = vmul.f32 %v928, %v758
        %v932 = vmul.f32 %v929, %v759
        %v933 = vadd.f32 %v931, %v932
        %v934 = vmul.f32 %v930, %v760
        %v935 = vadd.f32 %v933, %v934
        %vm936 = vcmp.lt.f32.partialorder %v935, 0.0
        %v937 = vsel %vm936, 1.0, 0.0
        %s938 = scalar_lea.vmem %s148, 56 [#allocation5]
        %v939 = vld [vmem:[%s938] sm:$0xff]
        %v940 = vmax.f32 %v939, %v937
        %941 = vst [vmem:[%s938] sm:$0xff] %v940
        %v942 = vmul.f32 %v837, %v865
        %v943 = vmul.f32 %v838, %v864
        %v944 = vsub.f32 %v942, %v943
        %v945 = vmul.f32 %v838, %v863
        %v946 = vmul.f32 %v836, %v865
        %v947 = vsub.f32 %v945, %v946
        %v948 = vmul.f32 %v836, %v864
        %v949 = vmul.f32 %v837, %v863
        %v950 = vsub.f32 %v948, %v949
        %v951 = vmul.f32 %v944, %v944
        %v952 = vmul.f32 %v947, %v947
        %v953 = vadd.f32 %v951, %v952
        %v954 = vmul.f32 %v950, %v950
        %v955 = vadd.f32 %v953, %v954
        %v956 = vrsqrt.pop %v955
        %v957 = vmul.f32 %v955, %v956
        %vm958 = vcmp.eq.f32.partialorder %v955, inf
        %v959 = vsel %vm958, %v955, %v957
        %vm960 = vcmp.eq.f32.partialorder %v955, 0.0
        %v961 = vand.u32 %v955, 2147483648
        %v962 = vsel %vm960, %v961, %v959
        %v963 = vadd.f32 %v962, 1e-06
        %v964 = vrcp.pop %v963
        %v965 = vmul.f32 1.0, %v964
        %v966 = vmul.f32 %v944, %v965
        %v967 = vmul.f32 %v947, %v965
        %v968 = vmul.f32 %v950, %v965
        %v969 = vmul.f32 %v966, %v758
        %v970 = vmul.f32 %v967, %v759
        %v971 = vadd.f32 %v969, %v970
        %v972 = vmul.f32 %v968, %v760
        %v973 = vadd.f32 %v971, %v972
        %vm974 = vcmp.lt.f32.partialorder %v973, 0.0
        %v975 = vsel %vm974, 1.0, 0.0
        %s976 = scalar_lea.vmem %s148, 64 [#allocation5]
        %v977 = vld [vmem:[%s976] sm:$0xff]
        %v978 = vmax.f32 %v977, %v975
        %979 = vst [vmem:[%s976] sm:$0xff] %v978
        %v980 = vld [vmem:[%s716] sm:$0xff]
        %v981 = vld [vmem:[%s718] sm:$0xff]
        %v982 = vld [vmem:[%s720] sm:$0xff]
        %v983 = vsub.f32 %v980, %v169
        %v984 = vsub.f32 %v981, %v171
        %v985 = vsub.f32 %v982, %v173
        %s986 = scalar_lea.vmem %s130, 312 [#allocation2]
        %v987 = vld [vmem:[%s986] sm:$0xff]
        %s988 = scalar_lea.vmem %s130, 320 [#allocation2]
        %v989 = vld [vmem:[%s988] sm:$0xff]
        %s990 = scalar_lea.vmem %s130, 328 [#allocation2]
        %v991 = vld [vmem:[%s990] sm:$0xff]
        %v992 = vsub.f32 %v987, %v169
        %v993 = vsub.f32 %v989, %v171
        %v994 = vsub.f32 %v991, %v173
        %v995 = vmul.f32 %v984, %v994
        %v996 = vmul.f32 %v985, %v993
        %v997 = vsub.f32 %v995, %v996
        %v998 = vmul.f32 %v985, %v992
        %v999 = vmul.f32 %v983, %v994
        %v1000 = vsub.f32 %v998, %v999
        %v1001 = vmul.f32 %v983, %v993
        %v1002 = vmul.f32 %v984, %v992
        %v1003 = vsub.f32 %v1001, %v1002
        %v1004 = vmul.f32 %v1000, %v985
        %v1005 = vmul.f32 %v1003, %v984
        %v1006 = vsub.f32 %v1004, %v1005
        %v1007 = vmul.f32 %v1003, %v983
        %v1008 = vmul.f32 %v997, %v985
        %v1009 = vsub.f32 %v1007, %v1008
        %v1010 = vmul.f32 %v997, %v984
        %v1011 = vmul.f32 %v1000, %v983
        %v1012 = vsub.f32 %v1010, %v1011
        %v1013 = vmul.f32 %v1006, %v1006
        %v1014 = vmul.f32 %v1009, %v1009
        %v1015 = vadd.f32 %v1013, %v1014
        %v1016 = vmul.f32 %v1012, %v1012
        %v1017 = vadd.f32 %v1015, %v1016
        %v1018 = vrsqrt.pop %v1017
        %v1019 = vmul.f32 %v1017, %v1018
        %vm1020 = vcmp.eq.f32.partialorder %v1017, inf
        %v1021 = vsel %vm1020, %v1017, %v1019
        %vm1022 = vcmp.eq.f32.partialorder %v1017, 0.0
        %v1023 = vand.u32 %v1017, 2147483648
        %v1024 = vsel %vm1022, %v1023, %v1021
        %v1025 = vadd.f32 %v1024, 1e-06
        %v1026 = vrcp.pop %v1025
        %v1027 = vmul.f32 1.0, %v1026
        %v1028 = vmul.f32 %v1006, %v1027
        %v1029 = vmul.f32 %v1009, %v1027
        %v1030 = vmul.f32 %v1012, %v1027
        %v1031 = vld [vmem:[%s446] sm:$0xff]
        %v1032 = vld [vmem:[%s448] sm:$0xff]
        %v1033 = vld [vmem:[%s450] sm:$0xff]
        %v1034 = vld [vmem:[%s130] sm:$0xff]
        %v1035 = vld [vmem:[%s170] sm:$0xff]
        %v1036 = vld [vmem:[%s172] sm:$0xff]
        %v1037 = vsub.f32 %v1031, %v1034
        %v1038 = vsub.f32 %v1032, %v1035
        %v1039 = vsub.f32 %v1033, %v1036
        %v1040 = vmul.f32 %v1037, %v1037
        %v1041 = vmul.f32 %v1038, %v1038
        %v1042 = vadd.f32 %v1040, %v1041
        %v1043 = vmul.f32 %v1039, %v1039
        %v1044 = vadd.f32 %v1042, %v1043
        %v1045 = vrsqrt.pop %v1044
        %v1046 = vmul.f32 %v1044, %v1045
        %vm1047 = vcmp.eq.f32.partialorder %v1044, inf
        %v1048 = vsel %vm1047, %v1044, %v1046
        %vm1049 = vcmp.eq.f32.partialorder %v1044, 0.0
        %v1050 = vand.u32 %v1044, 2147483648
        %v1051 = vsel %vm1049, %v1050, %v1048
        %v1052 = vadd.f32 %v1051, 1e-06
        %v1053 = vrcp.pop %v1052
        %v1054 = vmul.f32 1.0, %v1053
        %v1055 = vmul.f32 %v1037, %v1054
        %v1056 = vmul.f32 %v1038, %v1054
        %v1057 = vmul.f32 %v1039, %v1054
        %s1058 = scalar_lea.vmem %s130, 264 [#allocation2]
        %v1059 = vld [vmem:[%s1058] sm:$0xff]
        %s1060 = scalar_lea.vmem %s130, 272 [#allocation2]
        %v1061 = vld [vmem:[%s1060] sm:$0xff]
        %s1062 = scalar_lea.vmem %s130, 280 [#allocation2]
        %v1063 = vld [vmem:[%s1062] sm:$0xff]
        %v1064 = vsub.f32 %v1059, %v1031
        %v1065 = vsub.f32 %v1061, %v1032
        %v1066 = vsub.f32 %v1063, %v1033
        %v1067 = vmul.f32 %v1064, %v1064
        %v1068 = vmul.f32 %v1065, %v1065
        %v1069 = vadd.f32 %v1067, %v1068
        %v1070 = vmul.f32 %v1066, %v1066
        %v1071 = vadd.f32 %v1069, %v1070
        %v1072 = vrsqrt.pop %v1071
        %v1073 = vmul.f32 %v1071, %v1072
        %vm1074 = vcmp.eq.f32.partialorder %v1071, inf
        %v1075 = vsel %vm1074, %v1071, %v1073
        %vm1076 = vcmp.eq.f32.partialorder %v1071, 0.0
        %v1077 = vand.u32 %v1071, 2147483648
        %v1078 = vsel %vm1076, %v1077, %v1075
        %v1079 = vadd.f32 %v1078, 1e-06
        %v1080 = vrcp.pop %v1079
        %v1081 = vmul.f32 1.0, %v1080
        %v1082 = vmul.f32 %v1064, %v1081
        %v1083 = vmul.f32 %v1065, %v1081
        %v1084 = vmul.f32 %v1066, %v1081
        %s1085 = scalar_lea.vmem %s130, 288 [#allocation2]
        %v1086 = vld [vmem:[%s1085] sm:$0xff]
        %s1087 = scalar_lea.vmem %s130, 296 [#allocation2]
        %v1088 = vld [vmem:[%s1087] sm:$0xff]
        %s1089 = scalar_lea.vmem %s130, 304 [#allocation2]
        %v1090 = vld [vmem:[%s1089] sm:$0xff]
        %v1091 = vsub.f32 %v1086, %v1059
        %v1092 = vsub.f32 %v1088, %v1061
        %v1093 = vsub.f32 %v1090, %v1063
        %v1094 = vmul.f32 %v1091, %v1091
        %v1095 = vmul.f32 %v1092, %v1092
        %v1096 = vadd.f32 %v1094, %v1095
        %v1097 = vmul.f32 %v1093, %v1093
        %v1098 = vadd.f32 %v1096, %v1097
        %v1099 = vrsqrt.pop %v1098
        %v1100 = vmul.f32 %v1098, %v1099
        %vm1101 = vcmp.eq.f32.partialorder %v1098, inf
        %v1102 = vsel %vm1101, %v1098, %v1100
        %vm1103 = vcmp.eq.f32.partialorder %v1098, 0.0
        %v1104 = vand.u32 %v1098, 2147483648
        %v1105 = vsel %vm1103, %v1104, %v1102
        %v1106 = vadd.f32 %v1105, 1e-06
        %v1107 = vrcp.pop %v1106
        %v1108 = vmul.f32 1.0, %v1107
        %v1109 = vmul.f32 %v1091, %v1108
        %v1110 = vmul.f32 %v1092, %v1108
        %v1111 = vmul.f32 %v1093, %v1108
        %s1112 = scalar_lea.vmem %s130, 456 [#allocation2]
        %v1113 = vld [vmem:[%s1112] sm:$0xff]
        %s1114 = scalar_lea.vmem %s130, 464 [#allocation2]
        %v1115 = vld [vmem:[%s1114] sm:$0xff]
        %s1116 = scalar_lea.vmem %s130, 472 [#allocation2]
        %v1117 = vld [vmem:[%s1116] sm:$0xff]
        %v1118 = vsub.f32 %v1113, %v1086
        %v1119 = vsub.f32 %v1115, %v1088
        %v1120 = vsub.f32 %v1117, %v1090
        %v1121 = vmul.f32 %v1118, %v1118
        %v1122 = vmul.f32 %v1119, %v1119
        %v1123 = vadd.f32 %v1121, %v1122
        %v1124 = vmul.f32 %v1120, %v1120
        %v1125 = vadd.f32 %v1123, %v1124
        %v1126 = vrsqrt.pop %v1125
        %v1127 = vmul.f32 %v1125, %v1126
        %vm1128 = vcmp.eq.f32.partialorder %v1125, inf
        %v1129 = vsel %vm1128, %v1125, %v1127
        %vm1130 = vcmp.eq.f32.partialorder %v1125, 0.0
        %v1131 = vand.u32 %v1125, 2147483648
        %v1132 = vsel %vm1130, %v1131, %v1129
        %v1133 = vadd.f32 %v1132, 1e-06
        %v1134 = vrcp.pop %v1133
        %v1135 = vmul.f32 1.0, %v1134
        %v1136 = vmul.f32 %v1118, %v1135
        %v1137 = vmul.f32 %v1119, %v1135
        %v1138 = vmul.f32 %v1120, %v1135
        %v1139 = vmul.f32 %v1056, %v1084
        %v1140 = vmul.f32 %v1057, %v1083
        %v1141 = vsub.f32 %v1139, %v1140
        %v1142 = vmul.f32 %v1057, %v1082
        %v1143 = vmul.f32 %v1055, %v1084
        %v1144 = vsub.f32 %v1142, %v1143
        %v1145 = vmul.f32 %v1055, %v1083
        %v1146 = vmul.f32 %v1056, %v1082
        %v1147 = vsub.f32 %v1145, %v1146
        %v1148 = vmul.f32 %v1141, %v1141
        %v1149 = vmul.f32 %v1144, %v1144
        %v1150 = vadd.f32 %v1148, %v1149
        %v1151 = vmul.f32 %v1147, %v1147
        %v1152 = vadd.f32 %v1150, %v1151
        %v1153 = vrsqrt.pop %v1152
        %v1154 = vmul.f32 %v1152, %v1153
        %vm1155 = vcmp.eq.f32.partialorder %v1152, inf
        %v1156 = vsel %vm1155, %v1152, %v1154
        %vm1157 = vcmp.eq.f32.partialorder %v1152, 0.0
        %v1158 = vand.u32 %v1152, 2147483648
        %v1159 = vsel %vm1157, %v1158, %v1156
        %v1160 = vadd.f32 %v1159, 1e-06
        %v1161 = vrcp.pop %v1160
        %v1162 = vmul.f32 1.0, %v1161
        %v1163 = vmul.f32 %v1141, %v1162
        %v1164 = vmul.f32 %v1144, %v1162
        %v1165 = vmul.f32 %v1147, %v1162
        %v1166 = vmul.f32 %v1163, %v1028
        %v1167 = vmul.f32 %v1164, %v1029
        %v1168 = vadd.f32 %v1166, %v1167
        %v1169 = vmul.f32 %v1165, %v1030
        %v1170 = vadd.f32 %v1168, %v1169
        %vm1171 = vcmp.lt.f32.partialorder %v1170, 0.0
        %v1172 = vsel %vm1171, 1.0, 0.0
        %s1173 = scalar_lea.vmem %s148, 72 [#allocation5]
        %v1174 = vld [vmem:[%s1173] sm:$0xff]
        %v1175 = vmax.f32 %v1174, %v1172
        %1176 = vst [vmem:[%s1173] sm:$0xff] %v1175
        %v1177 = vmul.f32 %v1083, %v1111
        %v1178 = vmul.f32 %v1084, %v1110
        %v1179 = vsub.f32 %v1177, %v1178
        %v1180 = vmul.f32 %v1084, %v1109
        %v1181 = vmul.f32 %v1082, %v1111
        %v1182 = vsub.f32 %v1180, %v1181
        %v1183 = vmul.f32 %v1082, %v1110
        %v1184 = vmul.f32 %v1083, %v1109
        %v1185 = vsub.f32 %v1183, %v1184
        %v1186 = vmul.f32 %v1179, %v1179
        %v1187 = vmul.f32 %v1182, %v1182
        %v1188 = vadd.f32 %v1186, %v1187
        %v1189 = vmul.f32 %v1185, %v1185
        %v1190 = vadd.f32 %v1188, %v1189
        %v1191 = vrsqrt.pop %v1190
        %v1192 = vmul.f32 %v1190, %v1191
        %vm1193 = vcmp.eq.f32.partialorder %v1190, inf
        %v1194 = vsel %vm1193, %v1190, %v1192
        %vm1195 = vcmp.eq.f32.partialorder %v1190, 0.0
        %v1196 = vand.u32 %v1190, 2147483648
        %v1197 = vsel %vm1195, %v1196, %v1194
        %v1198 = vadd.f32 %v1197, 1e-06
        %v1199 = vrcp.pop %v1198
        %v1200 = vmul.f32 1.0, %v1199
        %v1201 = vmul.f32 %v1179, %v1200
        %v1202 = vmul.f32 %v1182, %v1200
        %v1203 = vmul.f32 %v1185, %v1200
        %v1204 = vmul.f32 %v1201, %v1028
        %v1205 = vmul.f32 %v1202, %v1029
        %v1206 = vadd.f32 %v1204, %v1205
        %v1207 = vmul.f32 %v1203, %v1030
        %v1208 = vadd.f32 %v1206, %v1207
        %vm1209 = vcmp.lt.f32.partialorder %v1208, 0.0
        %v1210 = vsel %vm1209, 1.0, 0.0
        %s1211 = scalar_lea.vmem %s148, 80 [#allocation5]
        %v1212 = vld [vmem:[%s1211] sm:$0xff]
        %v1213 = vmax.f32 %v1212, %v1210
        %1214 = vst [vmem:[%s1211] sm:$0xff] %v1213
        %v1215 = vmul.f32 %v1110, %v1138
        %v1216 = vmul.f32 %v1111, %v1137
        %v1217 = vsub.f32 %v1215, %v1216
        %v1218 = vmul.f32 %v1111, %v1136
        %v1219 = vmul.f32 %v1109, %v1138
        %v1220 = vsub.f32 %v1218, %v1219
        %v1221 = vmul.f32 %v1109, %v1137
        %v1222 = vmul.f32 %v1110, %v1136
        %v1223 = vsub.f32 %v1221, %v1222
        %v1224 = vmul.f32 %v1217, %v1217
        %v1225 = vmul.f32 %v1220, %v1220
        %v1226 = vadd.f32 %v1224, %v1225
        %v1227 = vmul.f32 %v1223, %v1223
        %v1228 = vadd.f32 %v1226, %v1227
        %v1229 = vrsqrt.pop %v1228
        %v1230 = vmul.f32 %v1228, %v1229
        %vm1231 = vcmp.eq.f32.partialorder %v1228, inf
        %v1232 = vsel %vm1231, %v1228, %v1230
        %vm1233 = vcmp.eq.f32.partialorder %v1228, 0.0
        %v1234 = vand.u32 %v1228, 2147483648
        %v1235 = vsel %vm1233, %v1234, %v1232
        %v1236 = vadd.f32 %v1235, 1e-06
        %v1237 = vrcp.pop %v1236
        %v1238 = vmul.f32 1.0, %v1237
        %v1239 = vmul.f32 %v1217, %v1238
        %v1240 = vmul.f32 %v1220, %v1238
        %v1241 = vmul.f32 %v1223, %v1238
        %v1242 = vmul.f32 %v1239, %v1028
        %v1243 = vmul.f32 %v1240, %v1029
        %v1244 = vadd.f32 %v1242, %v1243
        %v1245 = vmul.f32 %v1241, %v1030
        %v1246 = vadd.f32 %v1244, %v1245
        %vm1247 = vcmp.lt.f32.partialorder %v1246, 0.0
        %v1248 = vsel %vm1247, 1.0, 0.0
        %s1249 = scalar_lea.vmem %s148, 88 [#allocation5]
        %v1250 = vld [vmem:[%s1249] sm:$0xff]
        %v1251 = vmax.f32 %v1250, %v1248
        %1252 = vst [vmem:[%s1249] sm:$0xff] %v1251
        %v1253 = vld [vmem:[%s986] sm:$0xff]
        %v1254 = vld [vmem:[%s988] sm:$0xff]
        %v1255 = vld [vmem:[%s990] sm:$0xff]
        %v1256 = vsub.f32 %v1253, %v169
        %v1257 = vsub.f32 %v1254, %v171
        %v1258 = vsub.f32 %v1255, %v173
        %v1259 = vld [vmem:[%s174] sm:$0xff]
        %v1260 = vld [vmem:[%s176] sm:$0xff]
        %v1261 = vld [vmem:[%s178] sm:$0xff]
        %v1262 = vsub.f32 %v1259, %v169
        %v1263 = vsub.f32 %v1260, %v171
        %v1264 = vsub.f32 %v1261, %v173
        %v1265 = vmul.f32 %v1257, %v1264
        %v1266 = vmul.f32 %v1258, %v1263
        %v1267 = vsub.f32 %v1265, %v1266
        %v1268 = vmul.f32 %v1258, %v1262
        %v1269 = vmul.f32 %v1256, %v1264
        %v1270 = vsub.f32 %v1268, %v1269
        %v1271 = vmul.f32 %v1256, %v1263
        %v1272 = vmul.f32 %v1257, %v1262
        %v1273 = vsub.f32 %v1271, %v1272
        %v1274 = vmul.f32 %v1270, %v1258
        %v1275 = vmul.f32 %v1273, %v1257
        %v1276 = vsub.f32 %v1274, %v1275
        %v1277 = vmul.f32 %v1273, %v1256
        %v1278 = vmul.f32 %v1267, %v1258
        %v1279 = vsub.f32 %v1277, %v1278
        %v1280 = vmul.f32 %v1267, %v1257
        %v1281 = vmul.f32 %v1270, %v1256
        %v1282 = vsub.f32 %v1280, %v1281
        %v1283 = vmul.f32 %v1276, %v1276
        %v1284 = vmul.f32 %v1279, %v1279
        %v1285 = vadd.f32 %v1283, %v1284
        %v1286 = vmul.f32 %v1282, %v1282
        %v1287 = vadd.f32 %v1285, %v1286
        %v1288 = vrsqrt.pop %v1287
        %v1289 = vmul.f32 %v1287, %v1288
        %vm1290 = vcmp.eq.f32.partialorder %v1287, inf
        %v1291 = vsel %vm1290, %v1287, %v1289
        %vm1292 = vcmp.eq.f32.partialorder %v1287, 0.0
        %v1293 = vand.u32 %v1287, 2147483648
        %v1294 = vsel %vm1292, %v1293, %v1291
        %v1295 = vadd.f32 %v1294, 1e-06
        %v1296 = vrcp.pop %v1295
        %v1297 = vmul.f32 1.0, %v1296
        %v1298 = vmul.f32 %v1276, %v1297
        %v1299 = vmul.f32 %v1279, %v1297
        %v1300 = vmul.f32 %v1282, %v1297
        %v1301 = vld [vmem:[%s130] sm:$0xff]
        %v1302 = vld [vmem:[%s170] sm:$0xff]
        %v1303 = vld [vmem:[%s172] sm:$0xff]
        %v1304 = vsub.f32 %v1253, %v1301
        %v1305 = vsub.f32 %v1254, %v1302
        %v1306 = vsub.f32 %v1255, %v1303
        %v1307 = vmul.f32 %v1304, %v1304
        %v1308 = vmul.f32 %v1305, %v1305
        %v1309 = vadd.f32 %v1307, %v1308
        %v1310 = vmul.f32 %v1306, %v1306
        %v1311 = vadd.f32 %v1309, %v1310
        %v1312 = vrsqrt.pop %v1311
        %v1313 = vmul.f32 %v1311, %v1312
        %vm1314 = vcmp.eq.f32.partialorder %v1311, inf
        %v1315 = vsel %vm1314, %v1311, %v1313
        %vm1316 = vcmp.eq.f32.partialorder %v1311, 0.0
        %v1317 = vand.u32 %v1311, 2147483648
        %v1318 = vsel %vm1316, %v1317, %v1315
        %v1319 = vadd.f32 %v1318, 1e-06
        %v1320 = vrcp.pop %v1319
        %v1321 = vmul.f32 1.0, %v1320
        %v1322 = vmul.f32 %v1304, %v1321
        %v1323 = vmul.f32 %v1305, %v1321
        %v1324 = vmul.f32 %v1306, %v1321
        %s1325 = scalar_lea.vmem %s130, 336 [#allocation2]
        %v1326 = vld [vmem:[%s1325] sm:$0xff]
        %s1327 = scalar_lea.vmem %s130, 344 [#allocation2]
        %v1328 = vld [vmem:[%s1327] sm:$0xff]
        %s1329 = scalar_lea.vmem %s130, 352 [#allocation2]
        %v1330 = vld [vmem:[%s1329] sm:$0xff]
        %v1331 = vsub.f32 %v1326, %v1253
        %v1332 = vsub.f32 %v1328, %v1254
        %v1333 = vsub.f32 %v1330, %v1255
        %v1334 = vmul.f32 %v1331, %v1331
        %v1335 = vmul.f32 %v1332, %v1332
        %v1336 = vadd.f32 %v1334, %v1335
        %v1337 = vmul.f32 %v1333, %v1333
        %v1338 = vadd.f32 %v1336, %v1337
        %v1339 = vrsqrt.pop %v1338
        %v1340 = vmul.f32 %v1338, %v1339
        %vm1341 = vcmp.eq.f32.partialorder %v1338, inf
        %v1342 = vsel %vm1341, %v1338, %v1340
        %vm1343 = vcmp.eq.f32.partialorder %v1338, 0.0
        %v1344 = vand.u32 %v1338, 2147483648
        %v1345 = vsel %vm1343, %v1344, %v1342
        %v1346 = vadd.f32 %v1345, 1e-06
        %v1347 = vrcp.pop %v1346
        %v1348 = vmul.f32 1.0, %v1347
        %v1349 = vmul.f32 %v1331, %v1348
        %v1350 = vmul.f32 %v1332, %v1348
        %v1351 = vmul.f32 %v1333, %v1348
        %s1352 = scalar_lea.vmem %s130, 360 [#allocation2]
        %v1353 = vld [vmem:[%s1352] sm:$0xff]
        %s1354 = scalar_lea.vmem %s130, 368 [#allocation2]
        %v1355 = vld [vmem:[%s1354] sm:$0xff]
        %s1356 = scalar_lea.vmem %s130, 376 [#allocation2]
        %v1357 = vld [vmem:[%s1356] sm:$0xff]
        %v1358 = vsub.f32 %v1353, %v1326
        %v1359 = vsub.f32 %v1355, %v1328
        %v1360 = vsub.f32 %v1357, %v1330
        %v1361 = vmul.f32 %v1358, %v1358
        %v1362 = vmul.f32 %v1359, %v1359
        %v1363 = vadd.f32 %v1361, %v1362
        %v1364 = vmul.f32 %v1360, %v1360
        %v1365 = vadd.f32 %v1363, %v1364
        %v1366 = vrsqrt.pop %v1365
        %v1367 = vmul.f32 %v1365, %v1366
        %vm1368 = vcmp.eq.f32.partialorder %v1365, inf
        %v1369 = vsel %vm1368, %v1365, %v1367
        %vm1370 = vcmp.eq.f32.partialorder %v1365, 0.0
        %v1371 = vand.u32 %v1365, 2147483648
        %v1372 = vsel %vm1370, %v1371, %v1369
        %v1373 = vadd.f32 %v1372, 1e-06
        %v1374 = vrcp.pop %v1373
        %v1375 = vmul.f32 1.0, %v1374
        %v1376 = vmul.f32 %v1358, %v1375
        %v1377 = vmul.f32 %v1359, %v1375
        %v1378 = vmul.f32 %v1360, %v1375
        %s1379 = scalar_lea.vmem %s130, 384 [#allocation2]
        %v1380 = vld [vmem:[%s1379] sm:$0xff]
        %s1381 = scalar_lea.vmem %s130, 392 [#allocation2]
        %v1382 = vld [vmem:[%s1381] sm:$0xff]
        %s1383 = scalar_lea.vmem %s130, 400 [#allocation2]
        %v1384 = vld [vmem:[%s1383] sm:$0xff]
        %v1385 = vsub.f32 %v1380, %v1353
        %v1386 = vsub.f32 %v1382, %v1355
        %v1387 = vsub.f32 %v1384, %v1357
        %v1388 = vmul.f32 %v1385, %v1385
        %v1389 = vmul.f32 %v1386, %v1386
        %v1390 = vadd.f32 %v1388, %v1389
        %v1391 = vmul.f32 %v1387, %v1387
        %v1392 = vadd.f32 %v1390, %v1391
        %v1393 = vrsqrt.pop %v1392
        %v1394 = vmul.f32 %v1392, %v1393
        %vm1395 = vcmp.eq.f32.partialorder %v1392, inf
        %v1396 = vsel %vm1395, %v1392, %v1394
        %vm1397 = vcmp.eq.f32.partialorder %v1392, 0.0
        %v1398 = vand.u32 %v1392, 2147483648
        %v1399 = vsel %vm1397, %v1398, %v1396
        %v1400 = vadd.f32 %v1399, 1e-06
        %v1401 = vrcp.pop %v1400
        %v1402 = vmul.f32 1.0, %v1401
        %v1403 = vmul.f32 %v1385, %v1402
        %v1404 = vmul.f32 %v1386, %v1402
        %v1405 = vmul.f32 %v1387, %v1402
        %v1406 = vmul.f32 %v1323, %v1351
        %v1407 = vmul.f32 %v1324, %v1350
        %v1408 = vsub.f32 %v1406, %v1407
        %v1409 = vmul.f32 %v1324, %v1349
        %v1410 = vmul.f32 %v1322, %v1351
        %v1411 = vsub.f32 %v1409, %v1410
        %v1412 = vmul.f32 %v1322, %v1350
        %v1413 = vmul.f32 %v1323, %v1349
        %v1414 = vsub.f32 %v1412, %v1413
        %v1415 = vmul.f32 %v1408, %v1408
        %v1416 = vmul.f32 %v1411, %v1411
        %v1417 = vadd.f32 %v1415, %v1416
        %v1418 = vmul.f32 %v1414, %v1414
        %v1419 = vadd.f32 %v1417, %v1418
        %v1420 = vrsqrt.pop %v1419
        %v1421 = vmul.f32 %v1419, %v1420
        %vm1422 = vcmp.eq.f32.partialorder %v1419, inf
        %v1423 = vsel %vm1422, %v1419, %v1421
        %vm1424 = vcmp.eq.f32.partialorder %v1419, 0.0
        %v1425 = vand.u32 %v1419, 2147483648
        %v1426 = vsel %vm1424, %v1425, %v1423
        %v1427 = vadd.f32 %v1426, 1e-06
        %v1428 = vrcp.pop %v1427
        %v1429 = vmul.f32 1.0, %v1428
        %v1430 = vmul.f32 %v1408, %v1429
        %v1431 = vmul.f32 %v1411, %v1429
        %v1432 = vmul.f32 %v1414, %v1429
        %v1433 = vmul.f32 %v1430, %v1298
        %v1434 = vmul.f32 %v1431, %v1299
        %v1435 = vadd.f32 %v1433, %v1434
        %v1436 = vmul.f32 %v1432, %v1300
        %v1437 = vadd.f32 %v1435, %v1436
        %vm1438 = vcmp.lt.f32.partialorder %v1437, 0.0
        %v1439 = vsel %vm1438, 1.0, 0.0
        %s1440 = scalar_lea.vmem %s148, 96 [#allocation5]
        %v1441 = vld [vmem:[%s1440] sm:$0xff]
        %v1442 = vmax.f32 %v1441, %v1439
        %1443 = vst [vmem:[%s1440] sm:$0xff] %v1442
        %v1444 = vmul.f32 %v1350, %v1378
        %v1445 = vmul.f32 %v1351, %v1377
        %v1446 = vsub.f32 %v1444, %v1445
        %v1447 = vmul.f32 %v1351, %v1376
        %v1448 = vmul.f32 %v1349, %v1378
        %v1449 = vsub.f32 %v1447, %v1448
        %v1450 = vmul.f32 %v1349, %v1377
        %v1451 = vmul.f32 %v1350, %v1376
        %v1452 = vsub.f32 %v1450, %v1451
        %v1453 = vmul.f32 %v1446, %v1446
        %v1454 = vmul.f32 %v1449, %v1449
        %v1455 = vadd.f32 %v1453, %v1454
        %v1456 = vmul.f32 %v1452, %v1452
        %v1457 = vadd.f32 %v1455, %v1456
        %v1458 = vrsqrt.pop %v1457
        %v1459 = vmul.f32 %v1457, %v1458
        %vm1460 = vcmp.eq.f32.partialorder %v1457, inf
        %v1461 = vsel %vm1460, %v1457, %v1459
        %vm1462 = vcmp.eq.f32.partialorder %v1457, 0.0
        %v1463 = vand.u32 %v1457, 2147483648
        %v1464 = vsel %vm1462, %v1463, %v1461
        %v1465 = vadd.f32 %v1464, 1e-06
        %v1466 = vrcp.pop %v1465
        %v1467 = vmul.f32 1.0, %v1466
        %v1468 = vmul.f32 %v1446, %v1467
        %v1469 = vmul.f32 %v1449, %v1467
        %v1470 = vmul.f32 %v1452, %v1467
        %v1471 = vmul.f32 %v1468, %v1298
        %v1472 = vmul.f32 %v1469, %v1299
        %v1473 = vadd.f32 %v1471, %v1472
        %v1474 = vmul.f32 %v1470, %v1300
        %v1475 = vadd.f32 %v1473, %v1474
        %vm1476 = vcmp.lt.f32.partialorder %v1475, 0.0
        %v1477 = vsel %vm1476, 1.0, 0.0
        %s1478 = scalar_lea.vmem %s148, 104 [#allocation5]
        %v1479 = vld [vmem:[%s1478] sm:$0xff]
        %v1480 = vmax.f32 %v1479, %v1477
        %1481 = vst [vmem:[%s1478] sm:$0xff] %v1480
        %v1482 = vmul.f32 %v1377, %v1405
        %v1483 = vmul.f32 %v1378, %v1404
        %v1484 = vsub.f32 %v1482, %v1483
        %v1485 = vmul.f32 %v1378, %v1403
        %v1486 = vmul.f32 %v1376, %v1405
        %v1487 = vsub.f32 %v1485, %v1486
        %v1488 = vmul.f32 %v1376, %v1404
        %v1489 = vmul.f32 %v1377, %v1403
        %v1490 = vsub.f32 %v1488, %v1489
        %v1491 = vmul.f32 %v1484, %v1484
        %v1492 = vmul.f32 %v1487, %v1487
        %v1493 = vadd.f32 %v1491, %v1492
        %v1494 = vmul.f32 %v1490, %v1490
        %v1495 = vadd.f32 %v1493, %v1494
        %v1496 = vrsqrt.pop %v1495
        %v1497 = vmul.f32 %v1495, %v1496
        %vm1498 = vcmp.eq.f32.partialorder %v1495, inf
        %v1499 = vsel %vm1498, %v1495, %v1497
        %vm1500 = vcmp.eq.f32.partialorder %v1495, 0.0
        %v1501 = vand.u32 %v1495, 2147483648
        %v1502 = vsel %vm1500, %v1501, %v1499
        %v1503 = vadd.f32 %v1502, 1e-06
        %v1504 = vrcp.pop %v1503
        %v1505 = vmul.f32 1.0, %v1504
        %v1506 = vmul.f32 %v1484, %v1505
        %v1507 = vmul.f32 %v1487, %v1505
        %v1508 = vmul.f32 %v1490, %v1505
        %v1509 = vmul.f32 %v1506, %v1298
        %v1510 = vmul.f32 %v1507, %v1299
        %v1511 = vadd.f32 %v1509, %v1510
        %v1512 = vmul.f32 %v1508, %v1300
        %v1513 = vadd.f32 %v1511, %v1512
        %vm1514 = vcmp.lt.f32.partialorder %v1513, 0.0
        %v1515 = vsel %vm1514, 1.0, 0.0
        %s1516 = scalar_lea.vmem %s148, 112 [#allocation5]
        %v1517 = vld [vmem:[%s1516] sm:$0xff]
        %v1518 = vmax.f32 %v1517, %v1515
        %1519 = vst [vmem:[%s1516] sm:$0xff] %v1518
        %s1520 = sand.u32 %s66, 1
        %s1521 = scalar_lea.sflag [#allocation4], %s1520
        %s1522 = sand.u32 %s66, 1
        %s1523 = smul.addr %s1522, 120
        %s1524 = scalar_lea.vmem [#allocation5], %s1523
        // Predicated region
        $region33: #{tpu_custom_call.1} parent=23 // pred_check
          %p1525 = pneg %p76
        $region34: #{tpu_custom_call.1} parent=23 // pred_check_branch
          %1527 = sbr.rel (%p1525) target = $region36
        $region35: #{tpu_custom_call.1} parent=23 // pred_region
          %s1529 = ssub.s32 1920, 1920
          %1530 = vsyncadd %s1521, %s1529
          %s1531 = smul.addr %s22, 15
          %s1532 = smul.addr %s1531, 128
          %s1533 = scalar_lea.hbm %s1, %s1532
          %s1534 = sshll.u32 %s1524, 4
          %s1535 = int_to_ptr.vmem [resolvable:$true] %s1534
          %1540 = dma.vmem_to_hbm [thread:$0]  %s1535, 1920, %s1533, %s1521, 128, 128, 8
        $region36: #{tpu_custom_call.1} parent=23 // pred_fallthru
          _
      $region24: #{tpu_custom_call.1} parent=5 // pred_fallthru
        _
      %p1541 = scmp.le.s32.totalorder 2, %s13
      // Predicated region
      $region37: #{tpu_custom_call.1} parent=5 // pred_check
        %p1542 = pneg %p1541
      $region38: #{tpu_custom_call.1} parent=5 // pred_check_branch
        %1544 = sbr.rel (%p1542) target = $region40
      $region39: #{tpu_custom_call.1} parent=5 // pred_region
        %s1545 = ssub.s32 %s13, 2
        // Predicated region
        $region41: #{tpu_custom_call.1} parent=39 // pred_check
          %p1546 = pneg %p82
        $region42: #{tpu_custom_call.1} parent=39 // pred_check_branch
          %1548 = sbr.rel (%p1546) target = $region44
        $region43: #{tpu_custom_call.1} parent=39 // pred_region
          %s1549 = sand.u32 %s67, 1
          %s1550 = scalar_lea.sflag [#allocation4], %s1549
          %s1551 = sand.u32 %s67, 1
          %s1552 = smul.addr %s1551, 120
          %s1553 = scalar_lea.vmem [#allocation5], %s1552
          %1554 = dma.done %s1550, 1920
        $region44: #{tpu_custom_call.1} parent=39 // pred_fallthru
          _
      $region40: #{tpu_custom_call.1} parent=5 // pred_fallthru
        _
    $region6: #{tpu_custom_call.1} parent=1 // loop_footer
      %s17 = sadd.s32 1, %s13
    $region7: #{tpu_custom_call.1} parent=1 // loop_footer_branch
      %12 = sbr.rel target = $region3
    $region8: #{tpu_custom_call.1} parent=1 // loop_exit
      _
    %1555 = vsyncpa [#allocation3], 1
    %s1556 = scalar_lea.sflag [#allocation3], 1
    %1557 = vsyncpa %s1556, 1
    %1558 = vsyncpa [#allocation4], 1
    %s1559 = scalar_lea.sflag [#allocation4], 1
    %1560 = vsyncpa %s1559, 1

</llo_original>
